<compile_context>
chip_gen: v5e
topology: v5e:2x2
jax: 0.10.0
libtpu: 0.0.40
codegen_flags: <defaults>
</compile_context>

<pallas_src>
import functools

import jax
import jax.numpy as jnp
import numpy as np
from jax.experimental import pallas as pl
from jax.experimental.pallas import tpu as pltpu


# ---------------------------------------------------------------------------
# Fused kernel: CE + cardinality + boxes + contrastive alignment.
# ---------------------------------------------------------------------------
def _fused_losses_kernel(logits_ref, q_ref, t_ref, beg_ref, end_ref, tlen_ref,
                         mlog_ref, mpos_ref, mmask_ref, sbox_ref, tbox_ref,
                         out_ref,
                         ce_acc, b2t_acc, card_acc, ct_c, ct_l, ct_psum, ct_npos,
                         *, eos_coef, inv_temp, nbatch, ca_dtype):
    b = pl.program_id(0)          # batch slice ("parallel" -> megacore on v7x)
    qstep = pl.program_id(1)      # Q tile    ("arbitrary" -> carries accumulators)
    nq = pl.num_programs(1)

    def _rowsum11(x2d):
        # (R, C) -> (1, 1), staying 2-D the whole way (finalize-only; not per step).
        return jnp.sum(jnp.sum(x2d, axis=1, keepdims=True), axis=0, keepdims=True)

    @pl.when(qstep == 0)
    def _init():
        ce_acc[...] = jnp.zeros_like(ce_acc)
        b2t_acc[...] = jnp.zeros_like(b2t_acc)
        card_acc[...] = jnp.zeros_like(card_acc)
        ct_c[...] = jnp.full_like(ct_c, -1e30)
        ct_l[...] = jnp.zeros_like(ct_l)
        ct_psum[...] = jnp.zeros_like(ct_psum)
        ct_npos[...] = jnp.zeros_like(ct_npos)

    # ---- soft-token CE (bulk "no-object" part) + cardinality for this (b, Q-tile) ----
    logits = logits_ref[...]                                  # (1, tq, C1)
    C1 = logits.shape[-1]
    mk = jnp.max(logits, axis=-1, keepdims=True)
    lse = mk + jnp.log(jnp.sum(jnp.exp(logits - mk), axis=-1, keepdims=True))  # (1,tq,1)
    last = logits[..., C1 - 1:C1]                             # (1, tq, 1)
    # every query contributes eos_coef * (-log p[no_object]); matched queries are
    # corrected at the final step from the tiny gathered matched rows.  Accumulate the
    # per-query values elementwise (no per-step cross-lane reduction / scalar RMW).
    ce_acc[...] += eos_coef * (lse - last)[..., 0]            # (1, tq)

    # cardinality: argmax != no-object  <=>  some other class logit >= no-object logit
    # (count >= 2 since the no-object class always compares >= itself -> exactly
    #  reproduces jnp.argmax's first-index tie rule, no iota needed).
    ge_last = (logits >= last).astype(jnp.float32)            # (1, tq, C1)
    card_acc[...] += (jnp.sum(ge_last, axis=-1) >= 2.0).astype(jnp.float32)    # (1, tq)

    # ---- contrastive alignment, this (b, Q-tile) ----
    # temperature folded into the small operand; tokens arrive pre-transposed (D, T).
    qv = (q_ref[...] * inv_temp).astype(ca_dtype)             # (1, tq, D)
    tvT = t_ref[...].astype(ca_dtype)                         # (1, D, T) (resident)
    scores = jnp.einsum('bqd,bdt->bqt', qv, tvT,
                        preferred_element_type=jnp.float32)   # (1, tq, T)
    T = scores.shape[-1]

    # rebuild the 0/1 positive map in-register from token spans; (1,1,T) iota broadcasts.
    lane_t = jax.lax.broadcasted_iota(jnp.int32, (1, 1, T), 2)
    beg = beg_ref[...]                                        # (1, tq, 1) int32
    end = end_ref[...]
    pos = jnp.logical_and(lane_t >= beg, lane_t < end).astype(jnp.float32)     # (1,tq,T)
    neg_pos = -scores * pos

    # ONE shared exp pass with an online per-batch shift.  Safe because embeddings are
    # L2-normalized => |score| <= inv_temp, so exp(scores - c) never underflows a row.
    tile_c = jnp.max(jnp.max(scores, axis=2), axis=1, keepdims=True)           # (1, 1)
    c_old = ct_c[...]
    c_new = jnp.maximum(c_old, tile_c)                        # (1, 1)
    e = jnp.exp(scores - c_new[:, :, None])                   # (1, tq, T)

    # box -> token : full-T reduction is local to the tile; accumulate per-query terms.
    lse_row = c_new + jnp.log(jnp.sum(e, axis=2))             # (1, tq)
    psum_row = jnp.sum(neg_pos, axis=2)                       # (1, tq)
    npos_row = jnp.maximum(jnp.minimum(end, T) - jnp.maximum(beg, 0), 0)
    npos_row = npos_row[..., 0].astype(jnp.float32)           # (1, tq)  (= sum_T pos)
    b2t_acc[...] += jnp.where(npos_row > 0,
                              psum_row / (npos_row + 1e-6) + lse_row, 0.0)

    # token -> box : the Q reduction spans the grid -> online exp-sum per token column.
    ct_l[...] = ct_l[...] * jnp.exp(c_old - c_new) + jnp.sum(e, axis=1)        # (1, T)
    ct_c[...] = c_new
    ct_psum[...] += jnp.sum(neg_pos, axis=1)                  # (1, T)
    ct_npos[...] += jnp.sum(pos, axis=1)                      # (1, T)

    # ---- finalize this batch slice: matched corrections, box losses, single store ----
    @pl.when(qstep == nq - 1)
    def _finalize():
        is_b0 = b == 0   # matched-row terms are global -> only the b==0 slice emits them

        # matched soft-token CE rows (tiny (Mpad, C1) gathered slab, resident in VMEM)
        ml = mlog_ref[...]
        mp = mpos_ref[...]
        mm = mmask_ref[...]                                   # (Mpad, 1)
        mmax = jnp.max(ml, axis=-1, keepdims=True)
        mlse = mmax + jnp.log(jnp.sum(jnp.exp(ml - mmax), axis=-1, keepdims=True))
        mlogp = ml - mlse
        m_last = ml[:, C1 - 1:C1]
        corr = -jnp.sum(mlogp * mp, axis=-1, keepdims=True) - eos_coef * (mlse - m_last)
        corr_sum = _rowsum11(corr * mm)                       # (1, 1)

        ce_total = _rowsum11(ce_acc[...]) + \
            jnp.where(is_b0, corr_sum, jnp.zeros_like(corr_sum))

        # cardinality error contribution of this batch row (host sums rows -> mean)
        cnt = _rowsum11(card_acc[...])
        tl = tlen_ref[...][0]                                 # (1, 1)
        card_err = jnp.abs(cnt - tl) * (1.0 / nbatch)

        # box losses on matched (padded + masked) pairs
        src = sbox_ref[...]
        tgt = tbox_ref[...]
        l1_sum = _rowsum11(jnp.abs(src - tgt) * mm)

        def to_xyxy(bx):
            cx, cy, w, h = bx[:, 0:1], bx[:, 1:2], bx[:, 2:3], bx[:, 3:4]
            return cx - 0.5 * w, cy - 0.5 * h, cx + 0.5 * w, cy + 0.5 * h

        sx1, sy1, sx2, sy2 = to_xyxy(src)
        tx1, ty1, tx2, ty2 = to_xyxy(tgt)
        area_s = (sx2 - sx1) * (sy2 - sy1)
        area_t = (tx2 - tx1) * (ty2 - ty1)
        iw = jnp.maximum(jnp.minimum(sx2, tx2) - jnp.maximum(sx1, tx1), 0.0)
        ih = jnp.maximum(jnp.minimum(sy2, ty2) - jnp.maximum(sy1, ty1), 0.0)
        inter = iw * ih
        union = area_s + area_t - inter
        iou = inter / (union + 1e-12)
        ew = jnp.maximum(jnp.maximum(sx2, tx2) - jnp.minimum(sx1, tx1), 0.0)
        eh = jnp.maximum(jnp.maximum(sy2, ty2) - jnp.minimum(sy1, ty1), 0.0)
        earea = ew * eh
        giou = iou - (earea - union) / (earea + 1e-12)
        # mask with where BEFORE the sum so padded / degenerate rows cannot leak NaN
        giou_sum = _rowsum11(jnp.where(mm > 0, 1.0 - giou, 0.0))

        l1_out = jnp.where(is_b0, l1_sum, jnp.zeros_like(l1_sum))
        giou_out = jnp.where(is_b0, giou_sum, jnp.zeros_like(giou_sum))

        # token -> box finalize (per this batch slice)
        lse_col = ct_c[...] + jnp.log(ct_l[...])              # (1, T)
        npos_col = ct_npos[...]
        t2b_terms = jnp.where(npos_col > 0,
                              ct_psum[...] / (npos_col + 1e-6) + lse_col, 0.0)
        t2b = _rowsum11(t2b_terms)
        contr = (_rowsum11(b2t_acc[...]) + t2b) * 0.5         # (1, 1)

        # single lane-dense (1,1,128) output row for this batch slice (one vector store)
        lane = jax.lax.broadcasted_iota(jnp.int32, (1, 1, 128), 2)
        out_ref[...] = (jnp.where(lane == 0, ce_total, 0.0)
                        + jnp.where(lane == 1, card_err, 0.0)
                        + jnp.where(lane == 2, l1_out, 0.0)
                        + jnp.where(lane == 3, giou_out, 0.0)
                        + jnp.where(lane == 4, contr, 0.0))


def _pick_block_q(Q):
    # Prefer one whole-Q tile (per-step overhead ~0.35us would dominate tiny tiles);
    # otherwise the largest >=128 divisor; never fall back to 8/16.
    if Q <= 1024:
        return Q
    for cand in (512, 384, 256, 128):
        if Q % cand == 0:
            return cand
    best = 1
    for d in range(1, min(Q, 512) + 1):
        if Q % d == 0:
            best = d
    return best


def _vmem_limit_bytes(tq, C1, D, T, Mpad):
    # Rough per-core footprint: double-buffered streamed tiles + resident constants +
    # scratch (sublane/lane padded) + in-flight score/exp/pos slabs; capped against the
    # chip's VMEM capacity (important on v7x's 64 MiB).
    f32 = 4
    streamed = 2 * f32 * tq * (C1 + D + 2)
    resident = f32 * (D * T + 1 + Mpad * (2 * C1 + 9))
    scratch = f32 * 8 * (3 * max(tq, 128) + 3 * max(T, 128) + 128)
    live = f32 * 4 * tq * max(T, 128)
    need = streamed + 2 * resident + scratch + live + (1 << 20)
    cap = 64 * 1024 * 1024
    try:
        cap = int(0.8 * pltpu.get_tpu_info().vmem_capacity_bytes)
    except Exception:
        pass
    return int(min(cap, max(32 * 1024 * 1024, 2 * need)))


def fused_setcriterion_pallas(pred_logits, proj_queries, proj_tokens,
                              span_beg, span_end, tgt_len,
                              matched_logits, matched_pos, matched_mask,
                              src_boxes, tgt_boxes,
                              *, eos_coef, temperature, block_q=None,
                              ca_compute_dtype=jnp.float32):
    B, Q, C1 = pred_logits.shape
    D = proj_queries.shape[-1]
    T = proj_tokens.shape[1]
    Mpad = matched_logits.shape[0]
    tq = block_q if block_q is not None else _pick_block_q(Q)
    assert Q % tq == 0, (Q, tq)

    # one-time wrapper transpose -> (B, D, T): lane-dense T output for the MXU contraction
    tokens_t = jnp.swapaxes(proj_tokens, 1, 2)
    tlen3 = tgt_len.reshape(B, 1, 1)

    kernel = functools.partial(_fused_losses_kernel,
                               eos_coef=float(eos_coef),
                               inv_temp=float(1.0 / temperature),
                               nbatch=float(B),
                               ca_dtype=ca_compute_dtype)
    vmem_limit = _vmem_limit_bytes(tq, C1, D, T, Mpad)

    def build(use_buffered):
        def const_spec(shape, imap):
            # constant-index slabs: single-buffer (no useless double-buffering / swaps)
            if use_buffered:
                return pl.BlockSpec(shape, imap, pipeline_mode=pl.Buffered(1))
            return pl.BlockSpec(shape, imap)

        grid_spec = pltpu.PrefetchScalarGridSpec(
            num_scalar_prefetch=0,
            grid=(B, Q // tq),
            in_specs=[
                pl.BlockSpec((1, tq, C1), lambda b, i: (b, i, 0)),   # pred_logits tile
                pl.BlockSpec((1, tq, D), lambda b, i: (b, i, 0)),    # proj_queries tile
                pl.BlockSpec((1, D, T), lambda b, i: (b, 0, 0)),     # tokens^T (per-batch resident)
                pl.BlockSpec((1, tq, 1), lambda b, i: (b, i, 0)),    # span begins
                pl.BlockSpec((1, tq, 1), lambda b, i: (b, i, 0)),    # span ends (exclusive)
                pl.BlockSpec((1, 1, 1), lambda b, i: (b, 0, 0)),     # #gt boxes of this batch
                const_spec((Mpad, C1), lambda b, i: (0, 0)),         # matched logits rows
                const_spec((Mpad, C1), lambda b, i: (0, 0)),         # matched positive-map rows
                const_spec((Mpad, 1), lambda b, i: (0, 0)),          # matched validity mask
                const_spec((Mpad, 4), lambda b, i: (0, 0)),          # matched pred boxes
                const_spec((Mpad, 4), lambda b, i: (0, 0)),          # matched target boxes
            ],
            out_specs=pl.BlockSpec((1, 1, 128), lambda b, i: (b, 0, 0)),
            scratch_shapes=[
                pltpu.VMEM((1, tq), jnp.float32),   # CE per-query partial sums
                pltpu.VMEM((1, tq), jnp.float32),   # box->token per-query terms
                pltpu.VMEM((1, tq), jnp.float32),   # non-empty indicators
                pltpu.VMEM((1, 1), jnp.float32),    # online shift for token->box lse
                pltpu.VMEM((1, T), jnp.float32),    # online exp-sum per token
                pltpu.VMEM((1, T), jnp.float32),    # positive-logit sums per token
                pltpu.VMEM((1, T), jnp.float32),    # positive counts per token
            ])
        return pl.pallas_call(
            kernel,
            out_shape=jax.ShapeDtypeStruct((B, 1, 128), jnp.float32),
            grid_spec=grid_spec,
            compiler_params=pltpu.CompilerParams(
                dimension_semantics=("parallel", "arbitrary"),
                vmem_limit_bytes=vmem_limit))

    args = (pred_logits, proj_queries, tokens_t, span_beg, span_end, tlen3,
            matched_logits, matched_pos, matched_mask, src_boxes, tgt_boxes)
    try:
        return build(True)(*args)
    except Exception:
        # pipeline_mode / pl.Buffered unsupported in this JAX build: default buffering.
        return build(False)(*args)


# ---------------------------------------------------------------------------
# SetCriterion forward (tiny host-side glue, hot math in the fused Pallas kernel).
# ---------------------------------------------------------------------------
class SetCriterionPallas:
    def __init__(self, num_classes, eos_coef, temperature, losses):
        self.num_classes = num_classes
        self.eos_coef = float(eos_coef)
        self.temperature = float(temperature)
        self.losses = losses
        # buffer from __init__ (unused by the implemented loss paths, kept for parity)
        self.empty_weight = jnp.ones((num_classes + 1,), jnp.float32).at[-1].set(eos_coef)

    def forward(self, outputs, targets, positive_map, indices, query_spans, block_q=None):
        # TODO(synk): Hungarian matcher, tokenizer.char_to_token, dist.all_reduce and the
        # aux_outputs / enc_outputs re-matching loops are host-level control flow with no
        # Pallas equivalent; match indices and per-query token spans come in precomputed.
        B, Q, C1 = outputs['pred_logits'].shape
        num_boxes = float(max(sum(len(t['labels']) for t in targets), 1))

        # _get_src_permutation_idx + target offsets (tiny host-side glue)
        batch_idx = jnp.concatenate(
            [jnp.full(src.shape, i, jnp.int32) for i, (src, _) in enumerate(indices)])
        src_idx = jnp.concatenate([src for src, _ in indices])
        tgt_idx, off = [], 0
        for i, (_, tgt) in enumerate(indices):
            tgt_idx.append(tgt + off)
            off += targets[i]['boxes'].shape[0]
        tgt_idx = jnp.concatenate(tgt_idx)
        M = int(src_idx.shape[0])
        Mpad = max(8, -(-M // 8) * 8)
        pad_rows = Mpad - M

        # tiny gathered slabs (M rows) replace the dense (B,Q,C1) / (B,Q,T) target tensors
        matched_logits = outputs['pred_logits'][batch_idx, src_idx]           # (M, C1)
        matched_pos = positive_map[tgt_idx]                                   # (M, C1)
        src_boxes = outputs['pred_boxes'][batch_idx, src_idx]                 # (M, 4)
        tgt_boxes = jnp.concatenate(
            [t['boxes'][tgt] for t, (_, tgt) in zip(targets, indices)], axis=0)

        matched_logits = jnp.pad(matched_logits, ((0, pad_rows), (0, 0)))
        matched_pos = jnp.pad(matched_pos, ((0, pad_rows), (0, 0)))
        pad_box = jnp.tile(jnp.array([[0.5, 0.5, 0.1, 0.1]], jnp.float32), (pad_rows, 1))
        src_boxes = jnp.concatenate([src_boxes, pad_box], axis=0)
        tgt_boxes = jnp.concatenate([tgt_boxes, pad_box], axis=0)
        matched_mask = (jnp.arange(Mpad) < M).astype(jnp.float32)[:, None]

        tgt_len = jnp.array([[len(t['labels'])] for t in targets], jnp.float32)   # (B,1)
        # TODO(synk): one contiguous token span per query; multi-span boxes would need an
        # extended span list (or the dense map fallback).
        span_beg = query_spans[..., 0:1].astype(jnp.int32)                    # (B,Q,1)
        span_end = query_spans[..., 1:2].astype(jnp.int32)                    # (B,Q,1)

        out = fused_setcriterion_pallas(
            outputs['pred_logits'], outputs['proj_queries'], outputs['proj_tokens'],
            span_beg, span_end, tgt_len,
            matched_logits, matched_pos, matched_mask, src_boxes, tgt_boxes,
            eos_coef=self.eos_coef, temperature=self.temperature, block_q=block_q)

        # combine the per-batch output rows (tiny host-side sum over B lane-dense rows)
        tot = jnp.sum(out[:, 0, :], axis=0)

        losses = {}
        if 'labels' in self.losses:
            losses['loss_ce'] = tot[0] / num_boxes
        if 'cardinality' in self.losses:
            losses['cardinality_error'] = tot[1]
        if 'boxes' in self.losses:
            losses['loss_bbox'] = tot[2] / num_boxes
            losses['loss_giou'] = tot[3] / num_boxes
        if 'contrastive_align' in self.losses:
            losses['loss_contrastive_align'] = tot[4] / num_boxes
        return losses


# ---------------------------------------------------------------------------
# Pure-JAX reference (mirrors the PyTorch math) for a sanity check.
# ---------------------------------------------------------------------------
def reference_losses(outputs, targets, positive_map, indices, ca_pos_map,
                     eos_coef, temperature):
    B, Q, C1 = outputs['pred_logits'].shape
    num_boxes = float(max(sum(len(t['labels']) for t in targets), 1))
    batch_idx = jnp.concatenate(
        [jnp.full(src.shape, i, jnp.int32) for i, (src, _) in enumerate(indices)])
    src_idx = jnp.concatenate([src for src, _ in indices])
    tgt_idx, off = [], 0
    for i, (_, tgt) in enumerate(indices):
        tgt_idx.append(tgt + off)
        off += targets[i]['boxes'].shape[0]
    tgt_idx = jnp.concatenate(tgt_idx)

    logp = jax.nn.log_softmax(outputs['pred_logits'], -1)
    tsim = jnp.zeros((B, Q, C1)).at[:, :, -1].set(1.0)
    tsim = tsim.at[batch_idx, src_idx].set(positive_map[tgt_idx])
    eos = jnp.full((B, Q), eos_coef).at[batch_idx, src_idx].set(1.0)
    loss_ce = (-(logp * tsim).sum(-1) * eos).sum() / num_boxes

    card_pred = jnp.sum(jnp.argmax(outputs['pred_logits'], -1) != C1 - 1, axis=1)
    tgt_len = jnp.array([len(t['labels']) for t in targets], jnp.float32)
    card_err = jnp.mean(jnp.abs(card_pred.astype(jnp.float32) - tgt_len))

    src_b = outputs['pred_boxes'][batch_idx, src_idx]
    tgt_b = jnp.concatenate([t['boxes'][tgt] for t, (_, tgt) in zip(targets, indices)], 0)
    loss_bbox = jnp.abs(src_b - tgt_b).sum() / num_boxes

    def xyxy(b):
        return jnp.stack([b[:, 0] - 0.5 * b[:, 2], b[:, 1] - 0.5 * b[:, 3],
                          b[:, 0] + 0.5 * b[:, 2], b[:, 1] + 0.5 * b[:, 3]], -1)
    s, t = xyxy(src_b), xyxy(tgt_b)
    area_s = (s[:, 2] - s[:, 0]) * (s[:, 3] - s[:, 1])
    area_t = (t[:, 2] - t[:, 0]) * (t[:, 3] - t[:, 1])
    iw = jnp.clip(jnp.minimum(s[:, 2], t[:, 2]) - jnp.maximum(s[:, 0], t[:, 0]), 0)
    ih = jnp.clip(jnp.minimum(s[:, 3], t[:, 3]) - jnp.maximum(s[:, 1], t[:, 1]), 0)
    inter = iw * ih
    union = area_s + area_t - inter
    iou = inter / union
    ew = jnp.clip(jnp.maximum(s[:, 2], t[:, 2]) - jnp.minimum(s[:, 0], t[:, 0]), 0)
    eh = jnp.clip(jnp.maximum(s[:, 3], t[:, 3]) - jnp.minimum(s[:, 1], t[:, 1]), 0)
    earea = ew * eh
    giou = iou - (earea - union) / earea
    loss_giou = (1 - giou).sum() / num_boxes

    logits = jnp.einsum('bqd,btd->bqt', outputs['proj_queries'],
                        outputs['proj_tokens']) / temperature
    pos = ca_pos_map
    pos_logits = -logits * pos
    neg2 = jax.nn.logsumexp(logits, axis=2)
    b2t = jnp.where(pos.sum(2) > 0, pos_logits.sum(2) / (pos.sum(2) + 1e-6) + neg2, 0.0).sum()
    neg1 = jax.nn.logsumexp(logits, axis=1)
    t2b = jnp.where(pos.sum(1) > 0, pos_logits.sum(1) / (pos.sum(1) + 1e-6) + neg1, 0.0).sum()
    loss_ca = (b2t + t2b) / 2 / num_boxes

    return {'loss_ce': loss_ce, 'cardinality_error': card_err,
            'loss_bbox': loss_bbox, 'loss_giou': loss_giou,
            'loss_contrastive_align': loss_ca}


if __name__ == "__main__":
    key = jax.random.PRNGKey(0)
    B, Q, D, T = 2, 16, 32, 128
    num_classes = 127
    C1 = num_classes + 1
    eos_coef, temperature = 0.1, 0.07

    k1, k2, k3, k4, k5, k6 = jax.random.split(key, 6)
    pred_logits = jax.random.normal(k1, (B, Q, C1), jnp.float32)
    pred_boxes = jax.nn.sigmoid(jax.random.normal(k2, (B, Q, 4), jnp.float32)) * 0.5 + 0.25
    proj_queries = jax.random.normal(k3, (B, Q, D), jnp.float32)
    proj_queries = proj_queries / jnp.linalg.norm(proj_queries, axis=-1, keepdims=True)
    proj_tokens = jax.random.normal(k4, (B, T, D), jnp.float32)
    proj_tokens = proj_tokens / jnp.linalg.norm(proj_tokens, axis=-1, keepdims=True)

    # targets: 3 and 2 ground-truth boxes
    targets = [
        {'boxes': jax.nn.sigmoid(jax.random.normal(k5, (3, 4))) * 0.5 + 0.25,
         'labels': jnp.array([1, 2, 3], jnp.int32)},
        {'boxes': jax.nn.sigmoid(jax.random.normal(k6, (2, 4))) * 0.5 + 0.25,
         'labels': jnp.array([4, 5], jnp.int32)},
    ]
    # precomputed Hungarian match indices (matcher is untranslatable host code)
    indices = [(jnp.array([0, 5, 7], jnp.int32), jnp.array([0, 1, 2], jnp.int32)),
               (jnp.array([2, 9], jnp.int32), jnp.array([0, 1], jnp.int32))]

    # soft-token positive map for the 5 GT boxes (each spread over 2 classes)
    total_gt = 5
    positive_map = np.zeros((total_gt, C1), np.float32)
    for r in range(total_gt):
        positive_map[r, 2 * r] = 0.5
        positive_map[r, 2 * r + 1] = 0.5
    positive_map = jnp.asarray(positive_map)

    # per-query token spans (replace tokenizer.char_to_token lookups); dense map is
    # built only for the pure-JAX reference below.
    spans = np.zeros((B, Q, 2), np.int32)
    ca_pos = np.zeros((B, Q, T), np.float32)
    for b, (src, tgt) in enumerate(indices):
        for s, t in zip(np.asarray(src), np.asarray(tgt)):
            spans[b, s, 0] = 3 * t
            spans[b, s, 1] = 3 * t + 4
            ca_pos[b, s, 3 * t:3 * t + 4] = 1.0
    spans = jnp.asarray(spans)
    ca_pos = jnp.asarray(ca_pos)

    outputs = {'pred_logits': pred_logits, 'pred_boxes': pred_boxes,
               'proj_queries': proj_queries, 'proj_tokens': proj_tokens}

    criterion = SetCriterionPallas(num_classes, eos_coef, temperature,
                                   losses=['labels', 'cardinality', 'boxes',
                                           'contrastive_align'])
    ref = reference_losses(outputs, targets, positive_map, indices, ca_pos,
                           eos_coef, temperature)

    # default config: single whole-Q tile per batch slice (preferred large-tile path)
    losses = criterion.forward(outputs, targets, positive_map, indices, spans)
    losses = jax.tree_util.tree_map(jax.block_until_ready, losses)
    for k in ref:
        np.testing.assert_allclose(np.asarray(losses[k]), np.asarray(ref[k]),
                                   rtol=2e-4, atol=2e-4)

    # block_q=8 forces a multi-step Q grid so the online accumulators are also exercised
    losses_mt = criterion.forward(outputs, targets, positive_map, indices, spans, block_q=8)
    losses_mt = jax.tree_util.tree_map(jax.block_until_ready, losses_mt)
    for k in ref:
        np.testing.assert_allclose(np.asarray(losses_mt[k]), np.asarray(ref[k]),
                                   rtol=2e-4, atol=2e-4)

    print("KERNEL_OK")
</pallas_src>

<mosaic_0001>
module attributes {stable_mosaic.version = 11 : i64} {
  func.func @_fused_losses_kernel(%arg0: i32, %arg1: i32, %arg2: memref<1x16x128xf32, #tpu.memory_space<vmem>>, %arg3: memref<1x16x32xf32, #tpu.memory_space<vmem>>, %arg4: memref<1x32x128xf32, #tpu.memory_space<vmem>>, %arg5: memref<1x16x1xi32, #tpu.memory_space<vmem>>, %arg6: memref<1x16x1xi32, #tpu.memory_space<vmem>>, %arg7: memref<1x1x1xf32, #tpu.memory_space<vmem>>, %arg8: memref<8x128xf32, #tpu.memory_space<vmem>>, %arg9: memref<8x128xf32, #tpu.memory_space<vmem>>, %arg10: memref<8x1xf32, #tpu.memory_space<vmem>>, %arg11: memref<8x4xf32, #tpu.memory_space<vmem>>, %arg12: memref<8x4xf32, #tpu.memory_space<vmem>>, %arg13: memref<1x1x128xf32, #tpu.memory_space<vmem>>, %arg14: memref<1x16xf32, #tpu.memory_space<vmem>>, %arg15: memref<1x16xf32, #tpu.memory_space<vmem>>, %arg16: memref<1x16xf32, #tpu.memory_space<vmem>>, %arg17: memref<1x1xf32, #tpu.memory_space<vmem>>, %arg18: memref<1x128xf32, #tpu.memory_space<vmem>>, %arg19: memref<1x128xf32, #tpu.memory_space<vmem>>, %arg20: memref<1x128xf32, #tpu.memory_space<vmem>>) attributes {dimension_semantics = [#tpu.dimension_semantics<parallel>, #tpu.dimension_semantics<arbitrary>], iteration_bounds = array<i64: 2, 1>, scalar_prefetch = 0 : i64, scratch_operands = 7 : i64, tpu.core_type = #tpu.core_type<tc>, window_params = [{transform_indices = @transform_0, window_bounds = array<i64: 1, 16, 128>}, {transform_indices = @transform_1, window_bounds = array<i64: 1, 16, 32>}, {transform_indices = @transform_2, window_bounds = array<i64: 1, 32, 128>}, {transform_indices = @transform_3, window_bounds = array<i64: 1, 16, 1>}, {transform_indices = @transform_4, window_bounds = array<i64: 1, 16, 1>}, {transform_indices = @transform_5, window_bounds = array<i64: 1, 1, 1>}, {pipeline_mode = #tpu.pipeline_mode<synchronous>, transform_indices = @transform_6, window_bounds = array<i64: 8, 128>}, {pipeline_mode = #tpu.pipeline_mode<synchronous>, transform_indices = @transform_7, window_bounds = array<i64: 8, 128>}, {pipeline_mode = #tpu.pipeline_mode<synchronous>, transform_indices = @transform_8, window_bounds = array<i64: 8, 1>}, {pipeline_mode = #tpu.pipeline_mode<synchronous>, transform_indices = @transform_9, window_bounds = array<i64: 8, 4>}, {pipeline_mode = #tpu.pipeline_mode<synchronous>, transform_indices = @transform_10, window_bounds = array<i64: 8, 4>}, {transform_indices = @transform_11, window_bounds = array<i64: 1, 1, 128>}]} {
    %c0_i32 = arith.constant 0 : i32
    %0 = arith.cmpi eq, %arg1, %c0_i32 : i32
    %1 = arith.extui %0 : i1 to i32
    %c0_i32_0 = arith.constant 0 : i32
    %2 = arith.cmpi ne, %1, %c0_i32_0 : i32
    scf.if %2 {
      %cst_64 = arith.constant 0.000000e+00 : f32
      %107 = vector.broadcast %cst_64 : f32 to vector<1x16xf32>
      %c0_65 = arith.constant 0 : index
      %c0_66 = arith.constant 0 : index
      %108 = vector.load %arg14[%c0_65, %c0_66] : memref<1x16xf32, #tpu.memory_space<vmem>>, vector<1x16xf32>
      tpu.vector_store %arg14[%c0_65, %c0_66], %107 {strides = array<i32>} : memref<1x16xf32, #tpu.memory_space<vmem>>, vector<1x16xf32>,
      %cst_67 = arith.constant 0.000000e+00 : f32
      %109 = vector.broadcast %cst_67 : f32 to vector<1x16xf32>
      %c0_68 = arith.constant 0 : index
      %c0_69 = arith.constant 0 : index
      %110 = vector.load %arg15[%c0_68, %c0_69] : memref<1x16xf32, #tpu.memory_space<vmem>>, vector<1x16xf32>
      tpu.vector_store %arg15[%c0_68, %c0_69], %109 {strides = array<i32>} : memref<1x16xf32, #tpu.memory_space<vmem>>, vector<1x16xf32>,
      %cst_70 = arith.constant 0.000000e+00 : f32
      %111 = vector.broadcast %cst_70 : f32 to vector<1x16xf32>
      %c0_71 = arith.constant 0 : index
      %c0_72 = arith.constant 0 : index
      %112 = vector.load %arg16[%c0_71, %c0_72] : memref<1x16xf32, #tpu.memory_space<vmem>>, vector<1x16xf32>
      tpu.vector_store %arg16[%c0_71, %c0_72], %111 {strides = array<i32>} : memref<1x16xf32, #tpu.memory_space<vmem>>, vector<1x16xf32>,
      %cst_73 = arith.constant -1.000000e+30 : f32
      %113 = vector.broadcast %cst_73 : f32 to vector<1x1xf32>
      %c0_74 = arith.constant 0 : index
      %c0_75 = arith.constant 0 : index
      %114 = vector.load %arg17[%c0_74, %c0_75] : memref<1x1xf32, #tpu.memory_space<vmem>>, vector<1x1xf32>
      tpu.vector_store %arg17[%c0_74, %c0_75], %113 {strides = array<i32>} : memref<1x1xf32, #tpu.memory_space<vmem>>, vector<1x1xf32>,
      %cst_76 = arith.constant 0.000000e+00 : f32
      %115 = vector.broadcast %cst_76 : f32 to vector<1x128xf32>
      %c0_77 = arith.constant 0 : index
      %c0_78 = arith.constant 0 : index
      %116 = vector.load %arg18[%c0_77, %c0_78] : memref<1x128xf32, #tpu.memory_space<vmem>>, vector<1x128xf32>
      tpu.vector_store %arg18[%c0_77, %c0_78], %115 {strides = array<i32>} : memref<1x128xf32, #tpu.memory_space<vmem>>, vector<1x128xf32>,
      %cst_79 = arith.constant 0.000000e+00 : f32
      %117 = vector.broadcast %cst_79 : f32 to vector<1x128xf32>
      %c0_80 = arith.constant 0 : index
      %c0_81 = arith.constant 0 : index
      %118 = vector.load %arg19[%c0_80, %c0_81] : memref<1x128xf32, #tpu.memory_space<vmem>>, vector<1x128xf32>
      tpu.vector_store %arg19[%c0_80, %c0_81], %117 {strides = array<i32>} : memref<1x128xf32, #tpu.memory_space<vmem>>, vector<1x128xf32>,
      %cst_82 = arith.constant 0.000000e+00 : f32
      %119 = vector.broadcast %cst_82 : f32 to vector<1x128xf32>
      %c0_83 = arith.constant 0 : index
      %c0_84 = arith.constant 0 : index
      %120 = vector.load %arg20[%c0_83, %c0_84] : memref<1x128xf32, #tpu.memory_space<vmem>>, vector<1x128xf32>
      tpu.vector_store %arg20[%c0_83, %c0_84], %119 {strides = array<i32>} : memref<1x128xf32, #tpu.memory_space<vmem>>, vector<1x128xf32>,
    } else {
    }
    %c0 = arith.constant 0 : index
    %c0_1 = arith.constant 0 : index
    %c0_2 = arith.constant 0 : index
    %3 = vector.load %arg2[%c0, %c0_1, %c0_2] : memref<1x16x128xf32, #tpu.memory_space<vmem>>, vector<1x16x128xf32>
    %cst = arith.constant dense<0xFF800000> : vector<1x16xf32>
    %4 = vector.multi_reduction <maximumf>, %3, %cst [2] : vector<1x16x128xf32> to vector<1x16xf32>
    %5 = vector.shape_cast %4 : vector<1x16xf32> to vector<1x16x1xf32>
    %6 = vector.broadcast %5 : vector<1x16x1xf32> to vector<1x16x128xf32>
    %7 = arith.subf %3, %6 : vector<1x16x128xf32>
    %8 = math.exp %7 : vector<1x16x128xf32>
    %cst_3 = arith.constant dense<0.000000e+00> : vector<1x16xf32>
    %9 = vector.multi_reduction <add>, %8, %cst_3 [2] : vector<1x16x128xf32> to vector<1x16xf32>
    %10 = vector.shape_cast %9 : vector<1x16xf32> to vector<1x16x1xf32>
    %11 = math.log %10 : vector<1x16x1xf32>
    %12 = arith.addf %5, %11 : vector<1x16x1xf32>
    %13 = vector.extract_strided_slice %3 {offsets = [0, 0, 127], sizes = [1, 16, 1], strides = [1, 1, 1]} : vector<1x16x128xf32> to vector<1x16x1xf32>
    %c0_4 = arith.constant 0 : index
    %c0_5 = arith.constant 0 : index
    %14 = vector.load %arg14[%c0_4, %c0_5] : memref<1x16xf32, #tpu.memory_space<vmem>>, vector<1x16xf32>
    %15 = arith.subf %12, %13 : vector<1x16x1xf32>
    %16 = vector.shape_cast %15 : vector<1x16x1xf32> to vector<1x16xf32>
    %cst_6 = arith.constant 1.000000e-01 : f32
    %17 = vector.broadcast %cst_6 : f32 to vector<1x16xf32>
    %18 = arith.mulf %17, %16 : vector<1x16xf32>
    %19 = arith.addf %14, %18 : vector<1x16xf32>
    %c0_7 = arith.constant 0 : index
    %c0_8 = arith.constant 0 : index
    %20 = vector.load %arg14[%c0_7, %c0_8] : memref<1x16xf32, #tpu.memory_space<vmem>>, vector<1x16xf32>
    tpu.vector_store %arg14[%c0_7, %c0_8], %19 {strides = array<i32>} : memref<1x16xf32, #tpu.memory_space<vmem>>, vector<1x16xf32>,
    %21 = vector.broadcast %13 : vector<1x16x1xf32> to vector<1x16x128xf32>
    %22 = arith.cmpf oge, %3, %21 : vector<1x16x128xf32>
    %23 = arith.extui %22 : vector<1x16x128xi1> to vector<1x16x128xi32>
    %24 = arith.sitofp %23 : vector<1x16x128xi32> to vector<1x16x128xf32>
    %c0_9 = arith.constant 0 : index
    %c0_10 = arith.constant 0 : index
    %25 = vector.load %arg16[%c0_9, %c0_10] : memref<1x16xf32, #tpu.memory_space<vmem>>, vector<1x16xf32>
    %cst_11 = arith.constant dense<0.000000e+00> : vector<1x16xf32>
    %26 = vector.multi_reduction <add>, %24, %cst_11 [2] : vector<1x16x128xf32> to vector<1x16xf32>
    %cst_12 = arith.constant 2.000000e+00 : f32
    %27 = vector.broadcast %cst_12 : f32 to vector<1x16xf32>
    %28 = arith.cmpf oge, %26, %27 : vector<1x16xf32>
    %29 = arith.extui %28 : vector<1x16xi1> to vector<1x16xi32>
    %30 = arith.sitofp %29 : vector<1x16xi32> to vector<1x16xf32>
    %31 = arith.addf %25, %30 : vector<1x16xf32>
    %c0_13 = arith.constant 0 : index
    %c0_14 = arith.constant 0 : index
    %32 = vector.load %arg16[%c0_13, %c0_14] : memref<1x16xf32, #tpu.memory_space<vmem>>, vector<1x16xf32>
    tpu.vector_store %arg16[%c0_13, %c0_14], %31 {strides = array<i32>} : memref<1x16xf32, #tpu.memory_space<vmem>>, vector<1x16xf32>,
    %c0_15 = arith.constant 0 : index
    %c0_16 = arith.constant 0 : index
    %c0_17 = arith.constant 0 : index
    %33 = vector.load %arg3[%c0_15, %c0_16, %c0_17] : memref<1x16x32xf32, #tpu.memory_space<vmem>>, vector<1x16x32xf32>
    %cst_18 = arith.constant 14.2857141 : f32
    %34 = vector.broadcast %cst_18 : f32 to vector<1x16x32xf32>
    %35 = arith.mulf %33, %34 : vector<1x16x32xf32>
    %c0_19 = arith.constant 0 : index
    %c0_20 = arith.constant 0 : index
    %c0_21 = arith.constant 0 : index
    %36 = vector.load %arg4[%c0_19, %c0_20, %c0_21] : memref<1x32x128xf32, #tpu.memory_space<vmem>>, vector<1x32x128xf32>
    "tpu.trace_start"() <{level = 10 : i32, message = "bqd,bdt->bqt"}> : () -> ()
    %cst_22 = arith.constant dense<0.000000e+00> : vector<1x16x128xf32>
    %37 = tpu.matmul %35, %36, %cst_22 {dimension_numbers = #tpu.dot_dimension_numbers<[2], [1], [1], [2], [0, 0, 0, 1, 1, 2], [0], [0]>} : vector<1x16x32xf32>, vector<1x32x128xf32>, vector<1x16x128xf32> -> vector<1x16x128xf32>
    "tpu.trace_stop"() : () -> ()
    %38 = tpu.iota {dimensions = array<i32: 2>} : vector<1x1x128xi32>
    %c0_23 = arith.constant 0 : index
    %c0_24 = arith.constant 0 : index
    %c0_25 = arith.constant 0 : index
    %39 = vector.load %arg5[%c0_23, %c0_24, %c0_25] : memref<1x16x1xi32, #tpu.memory_space<vmem>>, vector<1x16x1xi32>
    %c0_26 = arith.constant 0 : index
    %c0_27 = arith.constant 0 : index
    %c0_28 = arith.constant 0 : index
    %40 = vector.load %arg6[%c0_26, %c0_27, %c0_28] : memref<1x16x1xi32, #tpu.memory_space<vmem>>, vector<1x16x1xi32>
    %41 = vector.broadcast %38 : vector<1x1x128xi32> to vector<1x16x128xi32>
    %42 = vector.broadcast %39 : vector<1x16x1xi32> to vector<1x16x128xi32>
    %43 = arith.cmpi sge, %41, %42 : vector<1x16x128xi32>
    %44 = vector.broadcast %38 : vector<1x1x128xi32> to vector<1x16x128xi32>
    %45 = vector.broadcast %40 : vector<1x16x1xi32> to vector<1x16x128xi32>
    %46 = arith.cmpi slt, %44, %45 : vector<1x16x128xi32>
    %47 = arith.andi %43, %46 : vector<1x16x128xi1>
    %48 = arith.extui %47 : vector<1x16x128xi1> to vector<1x16x128xi32>
    %49 = arith.sitofp %48 : vector<1x16x128xi32> to vector<1x16x128xf32>
    %cst_29 = arith.constant 0.000000e+00 : f32
    %50 = vector.broadcast %cst_29 : f32 to vector<1x16x128xf32>
    %51 = arith.subf %50, %37 : vector<1x16x128xf32>
    %52 = arith.mulf %51, %49 : vector<1x16x128xf32>
    %cst_30 = arith.constant dense<0xFF800000> : vector<1x16xf32>
    %53 = vector.multi_reduction <maximumf>, %37, %cst_30 [2] : vector<1x16x128xf32> to vector<1x16xf32>
    %cst_31 = arith.constant dense<0xFF800000> : vector<1xf32>
    %54 = vector.multi_reduction <maximumf>, %53, %cst_31 [1] : vector<1x16xf32> to vector<1xf32>
    %55 = vector.shape_cast %54 : vector<1xf32> to vector<1x1xf32>
    %c0_32 = arith.constant 0 : index
    %c0_33 = arith.constant 0 : index
    %56 = vector.load %arg17[%c0_32, %c0_33] : memref<1x1xf32, #tpu.memory_space<vmem>>, vector<1x1xf32>
    %57 = arith.maximumf %56, %55 : vector<1x1xf32>
    %58 = vector.shape_cast %57 : vector<1x1xf32> to vector<1x1x1xf32>
    %59 = vector.broadcast %58 : vector<1x1x1xf32> to vector<1x16x128xf32>
    %60 = arith.subf %37, %59 : vector<1x16x128xf32>
    %61 = math.exp %60 : vector<1x16x128xf32>
    %cst_34 = arith.constant dense<0.000000e+00> : vector<1x16xf32>
    %62 = vector.multi_reduction <add>, %61, %cst_34 [2] : vector<1x16x128xf32> to vector<1x16xf32>
    %63 = math.log %62 : vector<1x16xf32>
    %64 = vector.broadcast %57 : vector<1x1xf32> to vector<1x16xf32>
    %65 = arith.addf %64, %63 : vector<1x16xf32>
    %cst_35 = arith.constant dense<0.000000e+00> : vector<1x16xf32>
    %66 = vector.multi_reduction <add>, %52, %cst_35 [2] : vector<1x16x128xf32> to vector<1x16xf32>
    %c128_i32 = arith.constant 128 : i32
    %67 = vector.broadcast %c128_i32 : i32 to vector<1x16x1xi32>
    %68 = arith.minsi %40, %67 : vector<1x16x1xi32>
    %c0_i32_36 = arith.constant 0 : i32
    %69 = vector.broadcast %c0_i32_36 : i32 to vector<1x16x1xi32>
    %70 = arith.maxsi %39, %69 : vector<1x16x1xi32>
    %71 = arith.subi %68, %70 : vector<1x16x1xi32>
    %c0_i32_37 = arith.constant 0 : i32
    %72 = vector.broadcast %c0_i32_37 : i32 to vector<1x16x1xi32>
    %73 = arith.maxsi %71, %72 : vector<1x16x1xi32>
    %74 = vector.shape_cast %73 : vector<1x16x1xi32> to vector<1x16xi32>
    %75 = arith.sitofp %74 : vector<1x16xi32> to vector<1x16xf32>
    %c0_38 = arith.constant 0 : index
    %c0_39 = arith.constant 0 : index
    %76 = vector.load %arg15[%c0_38, %c0_39] : memref<1x16xf32, #tpu.memory_space<vmem>>, vector<1x16xf32>
    %cst_40 = arith.constant 0.000000e+00 : f32
    %77 = vector.broadcast %cst_40 : f32 to vector<1x16xf32>
    %78 = arith.cmpf ogt, %75, %77 : vector<1x16xf32>
    %cst_41 = arith.constant 9.99999997E-7 : f32
    %79 = vector.broadcast %cst_41 : f32 to vector<1x16xf32>
    %80 = arith.addf %75, %79 : vector<1x16xf32>
    %81 = arith.divf %66, %80 : vector<1x16xf32>
    %82 = arith.addf %81, %65 : vector<1x16xf32>
    %cst_42 = arith.constant 0.000000e+00 : f32
    %83 = vector.broadcast %cst_42 : f32 to vector<1x16xf32>
    %84 = arith.select %78, %82, %83 : vector<1x16xi1>, vector<1x16xf32>
    %85 = arith.addf %76, %84 : vector<1x16xf32>
    %c0_43 = arith.constant 0 : index
    %c0_44 = arith.constant 0 : index
    %86 = vector.load %arg15[%c0_43, %c0_44] : memref<1x16xf32, #tpu.memory_space<vmem>>, vector<1x16xf32>
    tpu.vector_store %arg15[%c0_43, %c0_44], %85 {strides = array<i32>} : memref<1x16xf32, #tpu.memory_space<vmem>>, vector<1x16xf32>,
    %c0_45 = arith.constant 0 : index
    %c0_46 = arith.constant 0 : index
    %87 = vector.load %arg18[%c0_45, %c0_46] : memref<1x128xf32, #tpu.memory_space<vmem>>, vector<1x128xf32>
    %88 = arith.subf %56, %57 : vector<1x1xf32>
    %89 = math.exp %88 : vector<1x1xf32>
    %90 = vector.broadcast %89 : vector<1x1xf32> to vector<1x128xf32>
    %91 = arith.mulf %87, %90 : vector<1x128xf32>
    %cst_47 = arith.constant dense<0.000000e+00> : vector<1x128xf32>
    %92 = vector.multi_reduction <add>, %61, %cst_47 [1] : vector<1x16x128xf32> to vector<1x128xf32>
    %93 = arith.addf %91, %92 : vector<1x128xf32>
    %c0_48 = arith.constant 0 : index
    %c0_49 = arith.constant 0 : index
    %94 = vector.load %arg18[%c0_48, %c0_49] : memref<1x128xf32, #tpu.memory_space<vmem>>, vector<1x128xf32>
    tpu.vector_store %arg18[%c0_48, %c0_49], %93 {strides = array<i32>} : memref<1x128xf32, #tpu.memory_space<vmem>>, vector<1x128xf32>,
    %c0_50 = arith.constant 0 : index
    %c0_51 = arith.constant 0 : index
    %95 = vector.load %arg17[%c0_50, %c0_51] : memref<1x1xf32, #tpu.memory_space<vmem>>, vector<1x1xf32>
    tpu.vector_store %arg17[%c0_50, %c0_51], %57 {strides = array<i32>} : memref<1x1xf32, #tpu.memory_space<vmem>>, vector<1x1xf32>,
    %c0_52 = arith.constant 0 : index
    %c0_53 = arith.constant 0 : index
    %96 = vector.load %arg19[%c0_52, %c0_53] : memref<1x128xf32, #tpu.memory_space<vmem>>, vector<1x128xf32>
    %cst_54 = arith.constant dense<0.000000e+00> : vector<1x128xf32>
    %97 = vector.multi_reduction <add>, %52, %cst_54 [1] : vector<1x16x128xf32> to vector<1x128xf32>
    %98 = arith.addf %96, %97 : vector<1x128xf32>
    %c0_55 = arith.constant 0 : index
    %c0_56 = arith.constant 0 : index
    %99 = vector.load %arg19[%c0_55, %c0_56] : memref<1x128xf32, #tpu.memory_space<vmem>>, vector<1x128xf32>
    tpu.vector_store %arg19[%c0_55, %c0_56], %98 {strides = array<i32>} : memref<1x128xf32, #tpu.memory_space<vmem>>, vector<1x128xf32>,
    %c0_57 = arith.constant 0 : index
    %c0_58 = arith.constant 0 : index
    %100 = vector.load %arg20[%c0_57, %c0_58] : memref<1x128xf32, #tpu.memory_space<vmem>>, vector<1x128xf32>
    %cst_59 = arith.constant dense<0.000000e+00> : vector<1x128xf32>
    %101 = vector.multi_reduction <add>, %49, %cst_59 [1] : vector<1x16x128xf32> to vector<1x128xf32>
    %102 = arith.addf %100, %101 : vector<1x128xf32>
    %c0_60 = arith.constant 0 : index
    %c0_61 = arith.constant 0 : index
    %103 = vector.load %arg20[%c0_60, %c0_61] : memref<1x128xf32, #tpu.memory_space<vmem>>, vector<1x128xf32>
    tpu.vector_store %arg20[%c0_60, %c0_61], %102 {strides = array<i32>} : memref<1x128xf32, #tpu.memory_space<vmem>>, vector<1x128xf32>,
    %c0_i32_62 = arith.constant 0 : i32
    %104 = arith.cmpi eq, %arg1, %c0_i32_62 : i32
    %105 = arith.extui %104 : i1 to i32
    %c0_i32_63 = arith.constant 0 : i32
    %106 = arith.cmpi ne, %105, %c0_i32_63 : i32
    scf.if %106 {
      %c0_i32_64 = arith.constant 0 : i32
      %107 = arith.cmpi eq, %arg0, %c0_i32_64 : i32
      %c0_65 = arith.constant 0 : index
      %c0_66 = arith.constant 0 : index
      %108 = vector.load %arg8[%c0_65, %c0_66] : memref<8x128xf32, #tpu.memory_space<vmem>>, vector<8x128xf32>
      %c0_67 = arith.constant 0 : index
      %c0_68 = arith.constant 0 : index
      %109 = vector.load %arg9[%c0_67, %c0_68] : memref<8x128xf32, #tpu.memory_space<vmem>>, vector<8x128xf32>
      %c0_69 = arith.constant 0 : index
      %c0_70 = arith.constant 0 : index
      %110 = vector.load %arg10[%c0_69, %c0_70] : memref<8x1xf32, #tpu.memory_space<vmem>>, vector<8x1xf32>
      %cst_71 = arith.constant dense<0xFF800000> : vector<8xf32>
      %111 = vector.multi_reduction <maximumf>, %108, %cst_71 [1] : vector<8x128xf32> to vector<8xf32>
      %112 = vector.shape_cast %111 : vector<8xf32> to vector<8x1xf32>
      %113 = vector.broadcast %112 : vector<8x1xf32> to vector<8x128xf32>
      %114 = arith.subf %108, %113 : vector<8x128xf32>
      %115 = math.exp %114 : vector<8x128xf32>
      %cst_72 = arith.constant dense<0.000000e+00> : vector<8xf32>
      %116 = vector.multi_reduction <add>, %115, %cst_72 [1] : vector<8x128xf32> to vector<8xf32>
      %117 = vector.shape_cast %116 : vector<8xf32> to vector<8x1xf32>
      %118 = math.log %117 : vector<8x1xf32>
      %119 = arith.addf %112, %118 : vector<8x1xf32>
      %120 = vector.broadcast %119 : vector<8x1xf32> to vector<8x128xf32>
      %121 = arith.subf %108, %120 : vector<8x128xf32>
      %122 = vector.extract_strided_slice %108 {offsets = [0, 127], sizes = [8, 1], strides = [1, 1]} : vector<8x128xf32> to vector<8x1xf32>
      %123 = arith.mulf %121, %109 : vector<8x128xf32>
      %cst_73 = arith.constant dense<0.000000e+00> : vector<8xf32>
      %124 = vector.multi_reduction <add>, %123, %cst_73 [1] : vector<8x128xf32> to vector<8xf32>
      %125 = vector.shape_cast %124 : vector<8xf32> to vector<8x1xf32>
      %cst_74 = arith.constant 0.000000e+00 : f32
      %126 = vector.broadcast %cst_74 : f32 to vector<8x1xf32>
      %127 = arith.subf %126, %125 : vector<8x1xf32>
      %128 = arith.subf %119, %122 : vector<8x1xf32>
      %cst_75 = arith.constant 1.000000e-01 : f32
      %129 = vector.broadcast %cst_75 : f32 to vector<8x1xf32>
      %130 = arith.mulf %129, %128 : vector<8x1xf32>
      %131 = arith.subf %127, %130 : vector<8x1xf32>
      %132 = arith.mulf %131, %110 : vector<8x1xf32>
      %cst_76 = arith.constant dense<0.000000e+00> : vector<8xf32>
      %133 = vector.multi_reduction <add>, %132, %cst_76 [1] : vector<8x1xf32> to vector<8xf32>
      %134 = vector.shape_cast %133 : vector<8xf32> to vector<8x1xf32>
      %cst_77 = arith.constant dense<0.000000e+00> : vector<1xf32>
      %135 = vector.multi_reduction <add>, %134, %cst_77 [0] : vector<8x1xf32> to vector<1xf32>
      %136 = vector.shape_cast %135 : vector<1xf32> to vector<1x1xf32>
      %c0_78 = arith.constant 0 : index
      %c0_79 = arith.constant 0 : index
      %137 = vector.load %arg14[%c0_78, %c0_79] : memref<1x16xf32, #tpu.memory_space<vmem>>, vector<1x16xf32>
      %cst_80 = arith.constant dense<0.000000e+00> : vector<1xf32>
      %138 = vector.multi_reduction <add>, %137, %cst_80 [1] : vector<1x16xf32> to vector<1xf32>
      %139 = vector.shape_cast %138 : vector<1xf32> to vector<1x1xf32>
      %cst_81 = arith.constant dense<0.000000e+00> : vector<1xf32>
      %140 = vector.multi_reduction <add>, %139, %cst_81 [0] : vector<1x1xf32> to vector<1xf32>
      %141 = vector.shape_cast %140 : vector<1xf32> to vector<1x1xf32>
      %cst_82 = arith.constant 0.000000e+00 : f32
      %142 = vector.broadcast %cst_82 : f32 to vector<1x1xf32>
      %143 = arith.select %107, %136, %142 : vector<1x1xf32>
      %144 = arith.addf %141, %143 : vector<1x1xf32>
      %c0_83 = arith.constant 0 : index
      %c0_84 = arith.constant 0 : index
      %145 = vector.load %arg16[%c0_83, %c0_84] : memref<1x16xf32, #tpu.memory_space<vmem>>, vector<1x16xf32>
      %cst_85 = arith.constant dense<0.000000e+00> : vector<1xf32>
      %146 = vector.multi_reduction <add>, %145, %cst_85 [1] : vector<1x16xf32> to vector<1xf32>
      %147 = vector.shape_cast %146 : vector<1xf32> to vector<1x1xf32>
      %cst_86 = arith.constant dense<0.000000e+00> : vector<1xf32>
      %148 = vector.multi_reduction <add>, %147, %cst_86 [0] : vector<1x1xf32> to vector<1xf32>
      %149 = vector.shape_cast %148 : vector<1xf32> to vector<1x1xf32>
      %c0_87 = arith.constant 0 : index
      %c0_88 = arith.constant 0 : index
      %c0_89 = arith.constant 0 : index
      %150 = vector.load %arg7[%c0_87, %c0_88, %c0_89] : memref<1x1x1xf32, #tpu.memory_space<vmem>>, vector<1x1x1xf32>
      %151 = vector.shape_cast %150 : vector<1x1x1xf32> to vector<1x1xf32>
      %152 = arith.subf %149, %151 : vector<1x1xf32>
      %153 = math.absf %152 : vector<1x1xf32>
      %cst_90 = arith.constant 5.000000e-01 : f32
      %154 = vector.broadcast %cst_90 : f32 to vector<1x1xf32>
      %155 = arith.mulf %153, %154 : vector<1x1xf32>
      %c0_91 = arith.constant 0 : index
      %c0_92 = arith.constant 0 : index
      %156 = vector.load %arg11[%c0_91, %c0_92] : memref<8x4xf32, #tpu.memory_space<vmem>>, vector<8x4xf32>
      %c0_93 = arith.constant 0 : index
      %c0_94 = arith.constant 0 : index
      %157 = vector.load %arg12[%c0_93, %c0_94] : memref<8x4xf32, #tpu.memory_space<vmem>>, vector<8x4xf32>
      %158 = arith.subf %156, %157 : vector<8x4xf32>
      %159 = math.absf %158 : vector<8x4xf32>
      %160 = vector.broadcast %110 : vector<8x1xf32> to vector<8x4xf32>
      %161 = arith.mulf %159, %160 : vector<8x4xf32>
      %cst_95 = arith.constant dense<0.000000e+00> : vector<8xf32>
      %162 = vector.multi_reduction <add>, %161, %cst_95 [1] : vector<8x4xf32> to vector<8xf32>
      %163 = vector.shape_cast %162 : vector<8xf32> to vector<8x1xf32>
      %cst_96 = arith.constant dense<0.000000e+00> : vector<1xf32>
      %164 = vector.multi_reduction <add>, %163, %cst_96 [0] : vector<8x1xf32> to vector<1xf32>
      %165 = vector.shape_cast %164 : vector<1xf32> to vector<1x1xf32>
      %166 = vector.extract_strided_slice %156 {offsets = [0, 0], sizes = [8, 1], strides = [1, 1]} : vector<8x4xf32> to vector<8x1xf32>
      %167 = vector.extract_strided_slice %156 {offsets = [0, 1], sizes = [8, 1], strides = [1, 1]} : vector<8x4xf32> to vector<8x1xf32>
      %168 = vector.extract_strided_slice %156 {offsets = [0, 2], sizes = [8, 1], strides = [1, 1]} : vector<8x4xf32> to vector<8x1xf32>
      %169 = vector.extract_strided_slice %156 {offsets = [0, 3], sizes = [8, 1], strides = [1, 1]} : vector<8x4xf32> to vector<8x1xf32>
      %cst_97 = arith.constant 5.000000e-01 : f32
      %170 = vector.broadcast %cst_97 : f32 to vector<8x1xf32>
      %171 = arith.mulf %170, %168 : vector<8x1xf32>
      %172 = arith.subf %166, %171 : vector<8x1xf32>
      %cst_98 = arith.constant 5.000000e-01 : f32
      %173 = vector.broadcast %cst_98 : f32 to vector<8x1xf32>
      %174 = arith.mulf %173, %169 : vector<8x1xf32>
      %175 = arith.subf %167, %174 : vector<8x1xf32>
      %cst_99 = arith.constant 5.000000e-01 : f32
      %176 = vector.broadcast %cst_99 : f32 to vector<8x1xf32>
      %177 = arith.mulf %176, %168 : vector<8x1xf32>
      %178 = arith.addf %166, %177 : vector<8x1xf32>
      %cst_100 = arith.constant 5.000000e-01 : f32
      %179 = vector.broadcast %cst_100 : f32 to vector<8x1xf32>
      %180 = arith.mulf %179, %169 : vector<8x1xf32>
      %181 = arith.addf %167, %180 : vector<8x1xf32>
      %182 = vector.extract_strided_slice %157 {offsets = [0, 0], sizes = [8, 1], strides = [1, 1]} : vector<8x4xf32> to vector<8x1xf32>
      %183 = vector.extract_strided_slice %157 {offsets = [0, 1], sizes = [8, 1], strides = [1, 1]} : vector<8x4xf32> to vector<8x1xf32>
      %184 = vector.extract_strided_slice %157 {offsets = [0, 2], sizes = [8, 1], strides = [1, 1]} : vector<8x4xf32> to vector<8x1xf32>
      %185 = vector.extract_strided_slice %157 {offsets = [0, 3], sizes = [8, 1], strides = [1, 1]} : vector<8x4xf32> to vector<8x1xf32>
      %cst_101 = arith.constant 5.000000e-01 : f32
      %186 = vector.broadcast %cst_101 : f32 to vector<8x1xf32>
      %187 = arith.mulf %186, %184 : vector<8x1xf32>
      %188 = arith.subf %182, %187 : vector<8x1xf32>
      %cst_102 = arith.constant 5.000000e-01 : f32
      %189 = vector.broadcast %cst_102 : f32 to vector<8x1xf32>
      %190 = arith.mulf %189, %185 : vector<8x1xf32>
      %191 = arith.subf %183, %190 : vector<8x1xf32>
      %cst_103 = arith.constant 5.000000e-01 : f32
      %192 = vector.broadcast %cst_103 : f32 to vector<8x1xf32>
      %193 = arith.mulf %192, %184 : vector<8x1xf32>
      %194 = arith.addf %182, %193 : vector<8x1xf32>
      %cst_104 = arith.constant 5.000000e-01 : f32
      %195 = vector.broadcast %cst_104 : f32 to vector<8x1xf32>
      %196 = arith.mulf %195, %185 : vector<8x1xf32>
      %197 = arith.addf %183, %196 : vector<8x1xf32>
      %198 = arith.subf %178, %172 : vector<8x1xf32>
      %199 = arith.subf %181, %175 : vector<8x1xf32>
      %200 = arith.mulf %198, %199 : vector<8x1xf32>
      %201 = arith.subf %194, %188 : vector<8x1xf32>
      %202 = arith.subf %197, %191 : vector<8x1xf32>
      %203 = arith.mulf %201, %202 : vector<8x1xf32>
      %204 = arith.minimumf %178, %194 : vector<8x1xf32>
      %205 = arith.maximumf %172, %188 : vector<8x1xf32>
      %206 = arith.subf %204, %205 : vector<8x1xf32>
      %cst_105 = arith.constant 0.000000e+00 : f32
      %207 = vector.broadcast %cst_105 : f32 to vector<8x1xf32>
      %208 = arith.maximumf %206, %207 : vector<8x1xf32>
      %209 = arith.minimumf %181, %197 : vector<8x1xf32>
      %210 = arith.maximumf %175, %191 : vector<8x1xf32>
      %211 = arith.subf %209, %210 : vector<8x1xf32>
      %cst_106 = arith.constant 0.000000e+00 : f32
      %212 = vector.broadcast %cst_106 : f32 to vector<8x1xf32>
      %213 = arith.maximumf %211, %212 : vector<8x1xf32>
      %214 = arith.mulf %208, %213 : vector<8x1xf32>
      %215 = arith.addf %200, %203 : vector<8x1xf32>
      %216 = arith.subf %215, %214 : vector<8x1xf32>
      %cst_107 = arith.constant 9.99999996E-13 : f32
      %217 = vector.broadcast %cst_107 : f32 to vector<8x1xf32>
      %218 = arith.addf %216, %217 : vector<8x1xf32>
      %219 = arith.divf %214, %218 : vector<8x1xf32>
      %220 = arith.maximumf %178, %194 : vector<8x1xf32>
      %221 = arith.minimumf %172, %188 : vector<8x1xf32>
      %222 = arith.subf %220, %221 : vector<8x1xf32>
      %cst_108 = arith.constant 0.000000e+00 : f32
      %223 = vector.broadcast %cst_108 : f32 to vector<8x1xf32>
      %224 = arith.maximumf %222, %223 : vector<8x1xf32>
      %225 = arith.maximumf %181, %197 : vector<8x1xf32>
      %226 = arith.minimumf %175, %191 : vector<8x1xf32>
      %227 = arith.subf %225, %226 : vector<8x1xf32>
      %cst_109 = arith.constant 0.000000e+00 : f32
      %228 = vector.broadcast %cst_109 : f32 to vector<8x1xf32>
      %229 = arith.maximumf %227, %228 : vector<8x1xf32>
      %230 = arith.mulf %224, %229 : vector<8x1xf32>
      %231 = arith.subf %230, %216 : vector<8x1xf32>
      %cst_110 = arith.constant 9.99999996E-13 : f32
      %232 = vector.broadcast %cst_110 : f32 to vector<8x1xf32>
      %233 = arith.addf %230, %232 : vector<8x1xf32>
      %234 = arith.divf %231, %233 : vector<8x1xf32>
      %235 = arith.subf %219, %234 : vector<8x1xf32>
      %cst_111 = arith.constant 0.000000e+00 : f32
      %236 = vector.broadcast %cst_111 : f32 to vector<8x1xf32>
      %237 = arith.cmpf ogt, %110, %236 : vector<8x1xf32>
      %cst_112 = arith.constant 1.000000e+00 : f32
      %238 = vector.broadcast %cst_112 : f32 to vector<8x1xf32>
      %239 = arith.subf %238, %235 : vector<8x1xf32>
      %cst_113 = arith.constant 0.000000e+00 : f32
      %240 = vector.broadcast %cst_113 : f32 to vector<8x1xf32>
      %241 = arith.select %237, %239, %240 : vector<8x1xi1>, vector<8x1xf32>
      %cst_114 = arith.constant dense<0.000000e+00> : vector<8xf32>
      %242 = vector.multi_reduction <add>, %241, %cst_114 [1] : vector<8x1xf32> to vector<8xf32>
      %243 = vector.shape_cast %242 : vector<8xf32> to vector<8x1xf32>
      %cst_115 = arith.constant dense<0.000000e+00> : vector<1xf32>
      %244 = vector.multi_reduction <add>, %243, %cst_115 [0] : vector<8x1xf32> to vector<1xf32>
      %245 = vector.shape_cast %244 : vector<1xf32> to vector<1x1xf32>
      %cst_116 = arith.constant 0.000000e+00 : f32
      %246 = vector.broadcast %cst_116 : f32 to vector<1x1xf32>
      %247 = arith.select %107, %165, %246 : vector<1x1xf32>
      %cst_117 = arith.constant 0.000000e+00 : f32
      %248 = vector.broadcast %cst_117 : f32 to vector<1x1xf32>
      %249 = arith.select %107, %245, %248 : vector<1x1xf32>
      %c0_118 = arith.constant 0 : index
      %c0_119 = arith.constant 0 : index
      %250 = vector.load %arg17[%c0_118, %c0_119] : memref<1x1xf32, #tpu.memory_space<vmem>>, vector<1x1xf32>
      %c0_120 = arith.constant 0 : index
      %c0_121 = arith.constant 0 : index
      %251 = vector.load %arg18[%c0_120, %c0_121] : memref<1x128xf32, #tpu.memory_space<vmem>>, vector<1x128xf32>
      %252 = math.log %251 : vector<1x128xf32>
      %253 = vector.broadcast %250 : vector<1x1xf32> to vector<1x128xf32>
      %254 = arith.addf %253, %252 : vector<1x128xf32>
      %c0_122 = arith.constant 0 : index
      %c0_123 = arith.constant 0 : index
      %255 = vector.load %arg20[%c0_122, %c0_123] : memref<1x128xf32, #tpu.memory_space<vmem>>, vector<1x128xf32>
      %cst_124 = arith.constant 0.000000e+00 : f32
      %256 = vector.broadcast %cst_124 : f32 to vector<1x128xf32>
      %257 = arith.cmpf ogt, %255, %256 : vector<1x128xf32>
      %c0_125 = arith.constant 0 : index
      %c0_126 = arith.constant 0 : index
      %258 = vector.load %arg19[%c0_125, %c0_126] : memref<1x128xf32, #tpu.memory_space<vmem>>, vector<1x128xf32>
      %cst_127 = arith.constant 9.99999997E-7 : f32
      %259 = vector.broadcast %cst_127 : f32 to vector<1x128xf32>
      %260 = arith.addf %255, %259 : vector<1x128xf32>
      %261 = arith.divf %258, %260 : vector<1x128xf32>
      %262 = arith.addf %261, %254 : vector<1x128xf32>
      %cst_128 = arith.constant 0.000000e+00 : f32
      %263 = vector.broadcast %cst_128 : f32 to vector<1x128xf32>
      %264 = arith.select %257, %262, %263 : vector<1x128xi1>, vector<1x128xf32>
      %cst_129 = arith.constant dense<0.000000e+00> : vector<1xf32>
      %265 = vector.multi_reduction <add>, %264, %cst_129 [1] : vector<1x128xf32> to vector<1xf32>
      %266 = vector.shape_cast %265 : vector<1xf32> to vector<1x1xf32>
      %cst_130 = arith.constant dense<0.000000e+00> : vector<1xf32>
      %267 = vector.multi_reduction <add>, %266, %cst_130 [0] : vector<1x1xf32> to vector<1xf32>
      %268 = vector.shape_cast %267 : vector<1xf32> to vector<1x1xf32>
      %c0_131 = arith.constant 0 : index
      %c0_132 = arith.constant 0 : index
      %269 = vector.load %arg15[%c0_131, %c0_132] : memref<1x16xf32, #tpu.memory_space<vmem>>, vector<1x16xf32>
      %cst_133 = arith.constant dense<0.000000e+00> : vector<1xf32>
      %270 = vector.multi_reduction <add>, %269, %cst_133 [1] : vector<1x16xf32> to vector<1xf32>
      %271 = vector.shape_cast %270 : vector<1xf32> to vector<1x1xf32>
      %cst_134 = arith.constant dense<0.000000e+00> : vector<1xf32>
      %272 = vector.multi_reduction <add>, %271, %cst_134 [0] : vector<1x1xf32> to vector<1xf32>
      %273 = vector.shape_cast %272 : vector<1xf32> to vector<1x1xf32>
      %274 = arith.addf %273, %268 : vector<1x1xf32>
      %cst_135 = arith.constant 5.000000e-01 : f32
      %275 = vector.broadcast %cst_135 : f32 to vector<1x1xf32>
      %276 = arith.mulf %274, %275 : vector<1x1xf32>
      %277 = tpu.iota {dimensions = array<i32: 2>} : vector<1x1x128xi32>
      %c0_i32_136 = arith.constant 0 : i32
      %278 = vector.broadcast %c0_i32_136 : i32 to vector<1x1x128xi32>
      %279 = arith.cmpi eq, %277, %278 : vector<1x1x128xi32>
      %cst_137 = arith.constant 0.000000e+00 : f32
      %280 = vector.shape_cast %144 : vector<1x1xf32> to vector<1x1x1xf32>
      %281 = vector.broadcast %280 : vector<1x1x1xf32> to vector<1x1x128xf32>
      %282 = vector.broadcast %cst_137 : f32 to vector<1x1x128xf32>
      %283 = arith.select %279, %281, %282 : vector<1x1x128xi1>, vector<1x1x128xf32>
      %c1_i32 = arith.constant 1 : i32
      %284 = vector.broadcast %c1_i32 : i32 to vector<1x1x128xi32>
      %285 = arith.cmpi eq, %277, %284 : vector<1x1x128xi32>
      %cst_138 = arith.constant 0.000000e+00 : f32
      %286 = vector.shape_cast %155 : vector<1x1xf32> to vector<1x1x1xf32>
      %287 = vector.broadcast %286 : vector<1x1x1xf32> to vector<1x1x128xf32>
      %288 = vector.broadcast %cst_138 : f32 to vector<1x1x128xf32>
      %289 = arith.select %285, %287, %288 : vector<1x1x128xi1>, vector<1x1x128xf32>
      %290 = arith.addf %283, %289 : vector<1x1x128xf32>
      %c2_i32 = arith.constant 2 : i32
      %291 = vector.broadcast %c2_i32 : i32 to vector<1x1x128xi32>
      %292 = arith.cmpi eq, %277, %291 : vector<1x1x128xi32>
      %cst_139 = arith.constant 0.000000e+00 : f32
      %293 = vector.shape_cast %247 : vector<1x1xf32> to vector<1x1x1xf32>
      %294 = vector.broadcast %293 : vector<1x1x1xf32> to vector<1x1x128xf32>
      %295 = vector.broadcast %cst_139 : f32 to vector<1x1x128xf32>
      %296 = arith.select %292, %294, %295 : vector<1x1x128xi1>, vector<1x1x128xf32>
      %297 = arith.addf %290, %296 : vector<1x1x128xf32>
      %c3_i32 = arith.constant 3 : i32
      %298 = vector.broadcast %c3_i32 : i32 to vector<1x1x128xi32>
      %299 = arith.cmpi eq, %277, %298 : vector<1x1x128xi32>
      %cst_140 = arith.constant 0.000000e+00 : f32
      %300 = vector.shape_cast %249 : vector<1x1xf32> to vector<1x1x1xf32>
      %301 = vector.broadcast %300 : vector<1x1x1xf32> to vector<1x1x128xf32>
      %302 = vector.broadcast %cst_140 : f32 to vector<1x1x128xf32>
      %303 = arith.select %299, %301, %302 : vector<1x1x128xi1>, vector<1x1x128xf32>
      %304 = arith.addf %297, %303 : vector<1x1x128xf32>
      %c4_i32 = arith.constant 4 : i32
      %305 = vector.broadcast %c4_i32 : i32 to vector<1x1x128xi32>
      %306 = arith.cmpi eq, %277, %305 : vector<1x1x128xi32>
      %cst_141 = arith.constant 0.000000e+00 : f32
      %307 = vector.shape_cast %276 : vector<1x1xf32> to vector<1x1x1xf32>
      %308 = vector.broadcast %307 : vector<1x1x1xf32> to vector<1x1x128xf32>
      %309 = vector.broadcast %cst_141 : f32 to vector<1x1x128xf32>
      %310 = arith.select %306, %308, %309 : vector<1x1x128xi1>, vector<1x1x128xf32>
      %311 = arith.addf %304, %310 : vector<1x1x128xf32>
      %c0_142 = arith.constant 0 : index
      %c0_143 = arith.constant 0 : index
      %c0_144 = arith.constant 0 : index
      %312 = vector.load %arg13[%c0_142, %c0_143, %c0_144] : memref<1x1x128xf32, #tpu.memory_space<vmem>>, vector<1x1x128xf32>
      tpu.vector_store %arg13[%c0_142, %c0_143, %c0_144], %311 {strides = array<i32>} : memref<1x1x128xf32, #tpu.memory_space<vmem>>, vector<1x1x128xf32>,
    } else {
    }
    return
  }
  func.func @transform_0(%arg0: i32, %arg1: i32) -> (i32, i32, i32) {
    %c0_i32 = arith.constant 0 : i32
    %c0_i32_0 = arith.constant 0 : i32
    return %arg0, %arg1, %c0_i32 : i32, i32, i32
  }
  func.func @transform_1(%arg0: i32, %arg1: i32) -> (i32, i32, i32) {
    %c0_i32 = arith.constant 0 : i32
    %c0_i32_0 = arith.constant 0 : i32
    return %arg0, %arg1, %c0_i32 : i32, i32, i32
  }
  func.func @transform_2(%arg0: i32, %arg1: i32) -> (i32, i32, i32) {
    %c0_i32 = arith.constant 0 : i32
    %c0_i32_0 = arith.constant 0 : i32
    %c0_i32_1 = arith.constant 0 : i32
    return %arg0, %c0_i32, %c0_i32_0 : i32, i32, i32
  }
  func.func @transform_3(%arg0: i32, %arg1: i32) -> (i32, i32, i32) {
    %c0_i32 = arith.constant 0 : i32
    %c0_i32_0 = arith.constant 0 : i32
    return %arg0, %arg1, %c0_i32 : i32, i32, i32
  }
  func.func @transform_4(%arg0: i32, %arg1: i32) -> (i32, i32, i32) {
    %c0_i32 = arith.constant 0 : i32
    %c0_i32_0 = arith.constant 0 : i32
    return %arg0, %arg1, %c0_i32 : i32, i32, i32
  }
  func.func @transform_5(%arg0: i32, %arg1: i32) -> (i32, i32, i32) {
    %c0_i32 = arith.constant 0 : i32
    %c0_i32_0 = arith.constant 0 : i32
    %c0_i32_1 = arith.constant 0 : i32
    return %arg0, %c0_i32, %c0_i32_0 : i32, i32, i32
  }
  func.func @transform_6(%arg0: i32, %arg1: i32) -> (i32, i32) {
    %c0_i32 = arith.constant 0 : i32
    %c0_i32_0 = arith.constant 0 : i32
    %c0_i32_1 = arith.constant 0 : i32
    return %c0_i32, %c0_i32_0 : i32, i32
  }
  func.func @transform_7(%arg0: i32, %arg1: i32) -> (i32, i32) {
    %c0_i32 = arith.constant 0 : i32
    %c0_i32_0 = arith.constant 0 : i32
    %c0_i32_1 = arith.constant 0 : i32
    return %c0_i32, %c0_i32_0 : i32, i32
  }
  func.func @transform_8(%arg0: i32, %arg1: i32) -> (i32, i32) {
    %c0_i32 = arith.constant 0 : i32
    %c0_i32_0 = arith.constant 0 : i32
    %c0_i32_1 = arith.constant 0 : i32
    return %c0_i32, %c0_i32_0 : i32, i32
  }
  func.func @transform_9(%arg0: i32, %arg1: i32) -> (i32, i32) {
    %c0_i32 = arith.constant 0 : i32
    %c0_i32_0 = arith.constant 0 : i32
    %c0_i32_1 = arith.constant 0 : i32
    return %c0_i32, %c0_i32_0 : i32, i32
  }
  func.func @transform_10(%arg0: i32, %arg1: i32) -> (i32, i32) {
    %c0_i32 = arith.constant 0 : i32
    %c0_i32_0 = arith.constant 0 : i32
    %c0_i32_1 = arith.constant 0 : i32
    return %c0_i32, %c0_i32_0 : i32, i32
  }
  func.func @transform_11(%arg0: i32, %arg1: i32) -> (i32, i32, i32) {
    %c0_i32 = arith.constant 0 : i32
    %c0_i32_0 = arith.constant 0 : i32
    %c0_i32_1 = arith.constant 0 : i32
    return %arg0, %c0_i32, %c0_i32_0 : i32, i32, i32
  }
}

module attributes {stable_mosaic.version = 11 : i64} {
  func.func @_fused_losses_kernel(%arg0: i32, %arg1: i32, %arg2: memref<1x16x128xf32, #tpu.memory_space<vmem>>, %arg3: memref<1x16x32xf32, #tpu.memory_space<vmem>>, %arg4: memref<1x32x128xf32, #tpu.memory_space<vmem>>, %arg5: memref<1x16x1xi32, #tpu.memory_space<vmem>>, %arg6: memref<1x16x1xi32, #tpu.memory_space<vmem>>, %arg7: memref<1x1x1xf32, #tpu.memory_space<vmem>>, %arg8: memref<8x128xf32, #tpu.memory_space<vmem>>, %arg9: memref<8x128xf32, #tpu.memory_space<vmem>>, %arg10: memref<8x1xf32, #tpu.memory_space<vmem>>, %arg11: memref<8x4xf32, #tpu.memory_space<vmem>>, %arg12: memref<8x4xf32, #tpu.memory_space<vmem>>, %arg13: memref<1x1x128xf32, #tpu.memory_space<vmem>>, %arg14: memref<1x16xf32, #tpu.memory_space<vmem>>, %arg15: memref<1x16xf32, #tpu.memory_space<vmem>>, %arg16: memref<1x16xf32, #tpu.memory_space<vmem>>, %arg17: memref<1x1xf32, #tpu.memory_space<vmem>>, %arg18: memref<1x128xf32, #tpu.memory_space<vmem>>, %arg19: memref<1x128xf32, #tpu.memory_space<vmem>>, %arg20: memref<1x128xf32, #tpu.memory_space<vmem>>) attributes {dimension_semantics = [#tpu.dimension_semantics<parallel>, #tpu.dimension_semantics<arbitrary>], iteration_bounds = array<i64: 2, 1>, scalar_prefetch = 0 : i64, scratch_operands = 7 : i64, tpu.core_type = #tpu.core_type<tc>, window_params = [{transform_indices = @transform_0, window_bounds = array<i64: 1, 16, 128>}, {transform_indices = @transform_1, window_bounds = array<i64: 1, 16, 32>}, {transform_indices = @transform_2, window_bounds = array<i64: 1, 32, 128>}, {transform_indices = @transform_3, window_bounds = array<i64: 1, 16, 1>}, {transform_indices = @transform_4, window_bounds = array<i64: 1, 16, 1>}, {transform_indices = @transform_5, window_bounds = array<i64: 1, 1, 1>}, {pipeline_mode = #tpu.pipeline_mode<synchronous>, transform_indices = @transform_6, window_bounds = array<i64: 8, 128>}, {pipeline_mode = #tpu.pipeline_mode<synchronous>, transform_indices = @transform_7, window_bounds = array<i64: 8, 128>}, {pipeline_mode = #tpu.pipeline_mode<synchronous>, transform_indices = @transform_8, window_bounds = array<i64: 8, 1>}, {pipeline_mode = #tpu.pipeline_mode<synchronous>, transform_indices = @transform_9, window_bounds = array<i64: 8, 4>}, {pipeline_mode = #tpu.pipeline_mode<synchronous>, transform_indices = @transform_10, window_bounds = array<i64: 8, 4>}, {transform_indices = @transform_11, window_bounds = array<i64: 1, 1, 128>}]} {
    %c0_i32 = arith.constant 0 : i32
    %0 = arith.cmpi eq, %arg1, %c0_i32 : i32
    %1 = arith.extui %0 : i1 to i32
    %c0_i32_0 = arith.constant 0 : i32
    %2 = arith.cmpi ne, %1, %c0_i32_0 : i32
    scf.if %2 {
      %cst_64 = arith.constant 0.000000e+00 : f32
      %107 = vector.broadcast %cst_64 : f32 to vector<1x16xf32>
      %c0_65 = arith.constant 0 : index
      %c0_66 = arith.constant 0 : index
      %108 = vector.load %arg14[%c0_65, %c0_66] : memref<1x16xf32, #tpu.memory_space<vmem>>, vector<1x16xf32>
      tpu.vector_store %arg14[%c0_65, %c0_66], %107 {strides = array<i32>} : memref<1x16xf32, #tpu.memory_space<vmem>>, vector<1x16xf32>,
      %cst_67 = arith.constant 0.000000e+00 : f32
      %109 = vector.broadcast %cst_67 : f32 to vector<1x16xf32>
      %c0_68 = arith.constant 0 : index
      %c0_69 = arith.constant 0 : index
      %110 = vector.load %arg15[%c0_68, %c0_69] : memref<1x16xf32, #tpu.memory_space<vmem>>, vector<1x16xf32>
      tpu.vector_store %arg15[%c0_68, %c0_69], %109 {strides = array<i32>} : memref<1x16xf32, #tpu.memory_space<vmem>>, vector<1x16xf32>,
      %cst_70 = arith.constant 0.000000e+00 : f32
      %111 = vector.broadcast %cst_70 : f32 to vector<1x16xf32>
      %c0_71 = arith.constant 0 : index
      %c0_72 = arith.constant 0 : index
      %112 = vector.load %arg16[%c0_71, %c0_72] : memref<1x16xf32, #tpu.memory_space<vmem>>, vector<1x16xf32>
      tpu.vector_store %arg16[%c0_71, %c0_72], %111 {strides = array<i32>} : memref<1x16xf32, #tpu.memory_space<vmem>>, vector<1x16xf32>,
      %cst_73 = arith.constant -1.000000e+30 : f32
      %113 = vector.broadcast %cst_73 : f32 to vector<1x1xf32>
      %c0_74 = arith.constant 0 : index
      %c0_75 = arith.constant 0 : index
      %114 = vector.load %arg17[%c0_74, %c0_75] : memref<1x1xf32, #tpu.memory_space<vmem>>, vector<1x1xf32>
      tpu.vector_store %arg17[%c0_74, %c0_75], %113 {strides = array<i32>} : memref<1x1xf32, #tpu.memory_space<vmem>>, vector<1x1xf32>,
      %cst_76 = arith.constant 0.000000e+00 : f32
      %115 = vector.broadcast %cst_76 : f32 to vector<1x128xf32>
      %c0_77 = arith.constant 0 : index
      %c0_78 = arith.constant 0 : index
      %116 = vector.load %arg18[%c0_77, %c0_78] : memref<1x128xf32, #tpu.memory_space<vmem>>, vector<1x128xf32>
      tpu.vector_store %arg18[%c0_77, %c0_78], %115 {strides = array<i32>} : memref<1x128xf32, #tpu.memory_space<vmem>>, vector<1x128xf32>,
      %cst_79 = arith.constant 0.000000e+00 : f32
      %117 = vector.broadcast %cst_79 : f32 to vector<1x128xf32>
      %c0_80 = arith.constant 0 : index
      %c0_81 = arith.constant 0 : index
      %118 = vector.load %arg19[%c0_80, %c0_81] : memref<1x128xf32, #tpu.memory_space<vmem>>, vector<1x128xf32>
      tpu.vector_store %arg19[%c0_80, %c0_81], %117 {strides = array<i32>} : memref<1x128xf32, #tpu.memory_space<vmem>>, vector<1x128xf32>,
      %cst_82 = arith.constant 0.000000e+00 : f32
      %119 = vector.broadcast %cst_82 : f32 to vector<1x128xf32>
      %c0_83 = arith.constant 0 : index
      %c0_84 = arith.constant 0 : index
      %120 = vector.load %arg20[%c0_83, %c0_84] : memref<1x128xf32, #tpu.memory_space<vmem>>, vector<1x128xf32>
      tpu.vector_store %arg20[%c0_83, %c0_84], %119 {strides = array<i32>} : memref<1x128xf32, #tpu.memory_space<vmem>>, vector<1x128xf32>,
    } else {
    }
    %c0 = arith.constant 0 : index
    %c0_1 = arith.constant 0 : index
    %c0_2 = arith.constant 0 : index
    %3 = vector.load %arg2[%c0, %c0_1, %c0_2] : memref<1x16x128xf32, #tpu.memory_space<vmem>>, vector<1x16x128xf32>
    %cst = arith.constant dense<0xFF800000> : vector<1x16xf32>
    %4 = vector.multi_reduction <maximumf>, %3, %cst [2] : vector<1x16x128xf32> to vector<1x16xf32>
    %5 = vector.shape_cast %4 : vector<1x16xf32> to vector<1x16x1xf32>
    %6 = vector.broadcast %5 : vector<1x16x1xf32> to vector<1x16x128xf32>
    %7 = arith.subf %3, %6 : vector<1x16x128xf32>
    %8 = math.exp %7 : vector<1x16x128xf32>
    %cst_3 = arith.constant dense<0.000000e+00> : vector<1x16xf32>
    %9 = vector.multi_reduction <add>, %8, %cst_3 [2] : vector<1x16x128xf32> to vector<1x16xf32>
    %10 = vector.shape_cast %9 : vector<1x16xf32> to vector<1x16x1xf32>
    %11 = math.log %10 : vector<1x16x1xf32>
    %12 = arith.addf %5, %11 : vector<1x16x1xf32>
    %13 = vector.extract_strided_slice %3 {offsets = [0, 0, 127], sizes = [1, 16, 1], strides = [1, 1, 1]} : vector<1x16x128xf32> to vector<1x16x1xf32>
    %c0_4 = arith.constant 0 : index
    %c0_5 = arith.constant 0 : index
    %14 = vector.load %arg14[%c0_4, %c0_5] : memref<1x16xf32, #tpu.memory_space<vmem>>, vector<1x16xf32>
    %15 = arith.subf %12, %13 : vector<1x16x1xf32>
    %16 = vector.shape_cast %15 : vector<1x16x1xf32> to vector<1x16xf32>
    %cst_6 = arith.constant 1.000000e-01 : f32
    %17 = vector.broadcast %cst_6 : f32 to vector<1x16xf32>
    %18 = arith.mulf %17, %16 : vector<1x16xf32>
    %19 = arith.addf %14, %18 : vector<1x16xf32>
    %c0_7 = arith.constant 0 : index
    %c0_8 = arith.constant 0 : index
    %20 = vector.load %arg14[%c0_7, %c0_8] : memref<1x16xf32, #tpu.memory_space<vmem>>, vector<1x16xf32>
    tpu.vector_store %arg14[%c0_7, %c0_8], %19 {strides = array<i32>} : memref<1x16xf32, #tpu.memory_space<vmem>>, vector<1x16xf32>,
    %21 = vector.broadcast %13 : vector<1x16x1xf32> to vector<1x16x128xf32>
    %22 = arith.cmpf oge, %3, %21 : vector<1x16x128xf32>
    %23 = arith.extui %22 : vector<1x16x128xi1> to vector<1x16x128xi32>
    %24 = arith.sitofp %23 : vector<1x16x128xi32> to vector<1x16x128xf32>
    %c0_9 = arith.constant 0 : index
    %c0_10 = arith.constant 0 : index
    %25 = vector.load %arg16[%c0_9, %c0_10] : memref<1x16xf32, #tpu.memory_space<vmem>>, vector<1x16xf32>
    %cst_11 = arith.constant dense<0.000000e+00> : vector<1x16xf32>
    %26 = vector.multi_reduction <add>, %24, %cst_11 [2] : vector<1x16x128xf32> to vector<1x16xf32>
    %cst_12 = arith.constant 2.000000e+00 : f32
    %27 = vector.broadcast %cst_12 : f32 to vector<1x16xf32>
    %28 = arith.cmpf oge, %26, %27 : vector<1x16xf32>
    %29 = arith.extui %28 : vector<1x16xi1> to vector<1x16xi32>
    %30 = arith.sitofp %29 : vector<1x16xi32> to vector<1x16xf32>
    %31 = arith.addf %25, %30 : vector<1x16xf32>
    %c0_13 = arith.constant 0 : index
    %c0_14 = arith.constant 0 : index
    %32 = vector.load %arg16[%c0_13, %c0_14] : memref<1x16xf32, #tpu.memory_space<vmem>>, vector<1x16xf32>
    tpu.vector_store %arg16[%c0_13, %c0_14], %31 {strides = array<i32>} : memref<1x16xf32, #tpu.memory_space<vmem>>, vector<1x16xf32>,
    %c0_15 = arith.constant 0 : index
    %c0_16 = arith.constant 0 : index
    %c0_17 = arith.constant 0 : index
    %33 = vector.load %arg3[%c0_15, %c0_16, %c0_17] : memref<1x16x32xf32, #tpu.memory_space<vmem>>, vector<1x16x32xf32>
    %cst_18 = arith.constant 14.2857141 : f32
    %34 = vector.broadcast %cst_18 : f32 to vector<1x16x32xf32>
    %35 = arith.mulf %33, %34 : vector<1x16x32xf32>
    %c0_19 = arith.constant 0 : index
    %c0_20 = arith.constant 0 : index
    %c0_21 = arith.constant 0 : index
    %36 = vector.load %arg4[%c0_19, %c0_20, %c0_21] : memref<1x32x128xf32, #tpu.memory_space<vmem>>, vector<1x32x128xf32>
    "tpu.trace_start"() <{level = 10 : i32, message = "bqd,bdt->bqt"}> : () -> ()
    %cst_22 = arith.constant dense<0.000000e+00> : vector<1x16x128xf32>
    %37 = tpu.matmul %35, %36, %cst_22 {dimension_numbers = #tpu.dot_dimension_numbers<[2], [1], [1], [2], [0, 0, 0, 1, 1, 2], [0], [0]>} : vector<1x16x32xf32>, vector<1x32x128xf32>, vector<1x16x128xf32> -> vector<1x16x128xf32>
    "tpu.trace_stop"() : () -> ()
    %38 = tpu.iota {dimensions = array<i32: 2>} : vector<1x1x128xi32>
    %c0_23 = arith.constant 0 : index
    %c0_24 = arith.constant 0 : index
    %c0_25 = arith.constant 0 : index
    %39 = vector.load %arg5[%c0_23, %c0_24, %c0_25] : memref<1x16x1xi32, #tpu.memory_space<vmem>>, vector<1x16x1xi32>
    %c0_26 = arith.constant 0 : index
    %c0_27 = arith.constant 0 : index
    %c0_28 = arith.constant 0 : index
    %40 = vector.load %arg6[%c0_26, %c0_27, %c0_28] : memref<1x16x1xi32, #tpu.memory_space<vmem>>, vector<1x16x1xi32>
    %41 = vector.broadcast %38 : vector<1x1x128xi32> to vector<1x16x128xi32>
    %42 = vector.broadcast %39 : vector<1x16x1xi32> to vector<1x16x128xi32>
    %43 = arith.cmpi sge, %41, %42 : vector<1x16x128xi32>
    %44 = vector.broadcast %38 : vector<1x1x128xi32> to vector<1x16x128xi32>
    %45 = vector.broadcast %40 : vector<1x16x1xi32> to vector<1x16x128xi32>
    %46 = arith.cmpi slt, %44, %45 : vector<1x16x128xi32>
    %47 = arith.andi %43, %46 : vector<1x16x128xi1>
    %48 = arith.extui %47 : vector<1x16x128xi1> to vector<1x16x128xi32>
    %49 = arith.sitofp %48 : vector<1x16x128xi32> to vector<1x16x128xf32>
    %cst_29 = arith.constant 0.000000e+00 : f32
    %50 = vector.broadcast %cst_29 : f32 to vector<1x16x128xf32>
    %51 = arith.subf %50, %37 : vector<1x16x128xf32>
    %52 = arith.mulf %51, %49 : vector<1x16x128xf32>
    %cst_30 = arith.constant dense<0xFF800000> : vector<1x16xf32>
    %53 = vector.multi_reduction <maximumf>, %37, %cst_30 [2] : vector<1x16x128xf32> to vector<1x16xf32>
    %cst_31 = arith.constant dense<0xFF800000> : vector<1xf32>
    %54 = vector.multi_reduction <maximumf>, %53, %cst_31 [1] : vector<1x16xf32> to vector<1xf32>
    %55 = vector.shape_cast %54 : vector<1xf32> to vector<1x1xf32>
    %c0_32 = arith.constant 0 : index
    %c0_33 = arith.constant 0 : index
    %56 = vector.load %arg17[%c0_32, %c0_33] : memref<1x1xf32, #tpu.memory_space<vmem>>, vector<1x1xf32>
    %57 = arith.maximumf %56, %55 : vector<1x1xf32>
    %58 = vector.shape_cast %57 : vector<1x1xf32> to vector<1x1x1xf32>
    %59 = vector.broadcast %58 : vector<1x1x1xf32> to vector<1x16x128xf32>
    %60 = arith.subf %37, %59 : vector<1x16x128xf32>
    %61 = math.exp %60 : vector<1x16x128xf32>
    %cst_34 = arith.constant dense<0.000000e+00> : vector<1x16xf32>
    %62 = vector.multi_reduction <add>, %61, %cst_34 [2] : vector<1x16x128xf32> to vector<1x16xf32>
    %63 = math.log %62 : vector<1x16xf32>
    %64 = vector.broadcast %57 : vector<1x1xf32> to vector<1x16xf32>
    %65 = arith.addf %64, %63 : vector<1x16xf32>
    %cst_35 = arith.constant dense<0.000000e+00> : vector<1x16xf32>
    %66 = vector.multi_reduction <add>, %52, %cst_35 [2] : vector<1x16x128xf32> to vector<1x16xf32>
    %c128_i32 = arith.constant 128 : i32
    %67 = vector.broadcast %c128_i32 : i32 to vector<1x16x1xi32>
    %68 = arith.minsi %40, %67 : vector<1x16x1xi32>
    %c0_i32_36 = arith.constant 0 : i32
    %69 = vector.broadcast %c0_i32_36 : i32 to vector<1x16x1xi32>
    %70 = arith.maxsi %39, %69 : vector<1x16x1xi32>
    %71 = arith.subi %68, %70 : vector<1x16x1xi32>
    %c0_i32_37 = arith.constant 0 : i32
    %72 = vector.broadcast %c0_i32_37 : i32 to vector<1x16x1xi32>
    %73 = arith.maxsi %71, %72 : vector<1x16x1xi32>
    %74 = vector.shape_cast %73 : vector<1x16x1xi32> to vector<1x16xi32>
    %75 = arith.sitofp %74 : vector<1x16xi32> to vector<1x16xf32>
    %c0_38 = arith.constant 0 : index
    %c0_39 = arith.constant 0 : index
    %76 = vector.load %arg15[%c0_38, %c0_39] : memref<1x16xf32, #tpu.memory_space<vmem>>, vector<1x16xf32>
    %cst_40 = arith.constant 0.000000e+00 : f32
    %77 = vector.broadcast %cst_40 : f32 to vector<1x16xf32>
    %78 = arith.cmpf ogt, %75, %77 : vector<1x16xf32>
    %cst_41 = arith.constant 9.99999997E-7 : f32
    %79 = vector.broadcast %cst_41 : f32 to vector<1x16xf32>
    %80 = arith.addf %75, %79 : vector<1x16xf32>
    %81 = arith.divf %66, %80 : vector<1x16xf32>
    %82 = arith.addf %81, %65 : vector<1x16xf32>
    %cst_42 = arith.constant 0.000000e+00 : f32
    %83 = vector.broadcast %cst_42 : f32 to vector<1x16xf32>
    %84 = arith.select %78, %82, %83 : vector<1x16xi1>, vector<1x16xf32>
    %85 = arith.addf %76, %84 : vector<1x16xf32>
    %c0_43 = arith.constant 0 : index
    %c0_44 = arith.constant 0 : index
    %86 = vector.load %arg15[%c0_43, %c0_44] : memref<1x16xf32, #tpu.memory_space<vmem>>, vector<1x16xf32>
    tpu.vector_store %arg15[%c0_43, %c0_44], %85 {strides = array<i32>} : memref<1x16xf32, #tpu.memory_space<vmem>>, vector<1x16xf32>,
    %c0_45 = arith.constant 0 : index
    %c0_46 = arith.constant 0 : index
    %87 = vector.load %arg18[%c0_45, %c0_46] : memref<1x128xf32, #tpu.memory_space<vmem>>, vector<1x128xf32>
    %88 = arith.subf %56, %57 : vector<1x1xf32>
    %89 = math.exp %88 : vector<1x1xf32>
    %90 = vector.broadcast %89 : vector<1x1xf32> to vector<1x128xf32>
    %91 = arith.mulf %87, %90 : vector<1x128xf32>
    %cst_47 = arith.constant dense<0.000000e+00> : vector<1x128xf32>
    %92 = vector.multi_reduction <add>, %61, %cst_47 [1] : vector<1x16x128xf32> to vector<1x128xf32>
    %93 = arith.addf %91, %92 : vector<1x128xf32>
    %c0_48 = arith.constant 0 : index
    %c0_49 = arith.constant 0 : index
    %94 = vector.load %arg18[%c0_48, %c0_49] : memref<1x128xf32, #tpu.memory_space<vmem>>, vector<1x128xf32>
    tpu.vector_store %arg18[%c0_48, %c0_49], %93 {strides = array<i32>} : memref<1x128xf32, #tpu.memory_space<vmem>>, vector<1x128xf32>,
    %c0_50 = arith.constant 0 : index
    %c0_51 = arith.constant 0 : index
    %95 = vector.load %arg17[%c0_50, %c0_51] : memref<1x1xf32, #tpu.memory_space<vmem>>, vector<1x1xf32>
    tpu.vector_store %arg17[%c0_50, %c0_51], %57 {strides = array<i32>} : memref<1x1xf32, #tpu.memory_space<vmem>>, vector<1x1xf32>,
    %c0_52 = arith.constant 0 : index
    %c0_53 = arith.constant 0 : index
    %96 = vector.load %arg19[%c0_52, %c0_53] : memref<1x128xf32, #tpu.memory_space<vmem>>, vector<1x128xf32>
    %cst_54 = arith.constant dense<0.000000e+00> : vector<1x128xf32>
    %97 = vector.multi_reduction <add>, %52, %cst_54 [1] : vector<1x16x128xf32> to vector<1x128xf32>
    %98 = arith.addf %96, %97 : vector<1x128xf32>
    %c0_55 = arith.constant 0 : index
    %c0_56 = arith.constant 0 : index
    %99 = vector.load %arg19[%c0_55, %c0_56] : memref<1x128xf32, #tpu.memory_space<vmem>>, vector<1x128xf32>
    tpu.vector_store %arg19[%c0_55, %c0_56], %98 {strides = array<i32>} : memref<1x128xf32, #tpu.memory_space<vmem>>, vector<1x128xf32>,
    %c0_57 = arith.constant 0 : index
    %c0_58 = arith.constant 0 : index
    %100 = vector.load %arg20[%c0_57, %c0_58] : memref<1x128xf32, #tpu.memory_space<vmem>>, vector<1x128xf32>
    %cst_59 = arith.constant dense<0.000000e+00> : vector<1x128xf32>
    %101 = vector.multi_reduction <add>, %49, %cst_59 [1] : vector<1x16x128xf32> to vector<1x128xf32>
    %102 = arith.addf %100, %101 : vector<1x128xf32>
    %c0_60 = arith.constant 0 : index
    %c0_61 = arith.constant 0 : index
    %103 = vector.load %arg20[%c0_60, %c0_61] : memref<1x128xf32, #tpu.memory_space<vmem>>, vector<1x128xf32>
    tpu.vector_store %arg20[%c0_60, %c0_61], %102 {strides = array<i32>} : memref<1x128xf32, #tpu.memory_space<vmem>>, vector<1x128xf32>,
    %c0_i32_62 = arith.constant 0 : i32
    %104 = arith.cmpi eq, %arg1, %c0_i32_62 : i32
    %105 = arith.extui %104 : i1 to i32
    %c0_i32_63 = arith.constant 0 : i32
    %106 = arith.cmpi ne, %105, %c0_i32_63 : i32
    scf.if %106 {
      %c0_i32_64 = arith.constant 0 : i32
      %107 = arith.cmpi eq, %arg0, %c0_i32_64 : i32
      %c0_65 = arith.constant 0 : index
      %c0_66 = arith.constant 0 : index
      %108 = vector.load %arg8[%c0_65, %c0_66] : memref<8x128xf32, #tpu.memory_space<vmem>>, vector<8x128xf32>
      %c0_67 = arith.constant 0 : index
      %c0_68 = arith.constant 0 : index
      %109 = vector.load %arg9[%c0_67, %c0_68] : memref<8x128xf32, #tpu.memory_space<vmem>>, vector<8x128xf32>
      %c0_69 = arith.constant 0 : index
      %c0_70 = arith.constant 0 : index
      %110 = vector.load %arg10[%c0_69, %c0_70] : memref<8x1xf32, #tpu.memory_space<vmem>>, vector<8x1xf32>
      %cst_71 = arith.constant dense<0xFF800000> : vector<8xf32>
      %111 = vector.multi_reduction <maximumf>, %108, %cst_71 [1] : vector<8x128xf32> to vector<8xf32>
      %112 = vector.shape_cast %111 : vector<8xf32> to vector<8x1xf32>
      %113 = vector.broadcast %112 : vector<8x1xf32> to vector<8x128xf32>
      %114 = arith.subf %108, %113 : vector<8x128xf32>
      %115 = math.exp %114 : vector<8x128xf32>
      %cst_72 = arith.constant dense<0.000000e+00> : vector<8xf32>
      %116 = vector.multi_reduction <add>, %115, %cst_72 [1] : vector<8x128xf32> to vector<8xf32>
      %117 = vector.shape_cast %116 : vector<8xf32> to vector<8x1xf32>
      %118 = math.log %117 : vector<8x1xf32>
      %119 = arith.addf %112, %118 : vector<8x1xf32>
      %120 = vector.broadcast %119 : vector<8x1xf32> to vector<8x128xf32>
      %121 = arith.subf %108, %120 : vector<8x128xf32>
      %122 = vector.extract_strided_slice %108 {offsets = [0, 127], sizes = [8, 1], strides = [1, 1]} : vector<8x128xf32> to vector<8x1xf32>
      %123 = arith.mulf %121, %109 : vector<8x128xf32>
      %cst_73 = arith.constant dense<0.000000e+00> : vector<8xf32>
      %124 = vector.multi_reduction <add>, %123, %cst_73 [1] : vector<8x128xf32> to vector<8xf32>
      %125 = vector.shape_cast %124 : vector<8xf32> to vector<8x1xf32>
      %cst_74 = arith.constant 0.000000e+00 : f32
      %126 = vector.broadcast %cst_74 : f32 to vector<8x1xf32>
      %127 = arith.subf %126, %125 : vector<8x1xf32>
      %128 = arith.subf %119, %122 : vector<8x1xf32>
      %cst_75 = arith.constant 1.000000e-01 : f32
      %129 = vector.broadcast %cst_75 : f32 to vector<8x1xf32>
      %130 = arith.mulf %129, %128 : vector<8x1xf32>
      %131 = arith.subf %127, %130 : vector<8x1xf32>
      %132 = arith.mulf %131, %110 : vector<8x1xf32>
      %cst_76 = arith.constant dense<0.000000e+00> : vector<8xf32>
      %133 = vector.multi_reduction <add>, %132, %cst_76 [1] : vector<8x1xf32> to vector<8xf32>
      %134 = vector.shape_cast %133 : vector<8xf32> to vector<8x1xf32>
      %cst_77 = arith.constant dense<0.000000e+00> : vector<1xf32>
      %135 = vector.multi_reduction <add>, %134, %cst_77 [0] : vector<8x1xf32> to vector<1xf32>
      %136 = vector.shape_cast %135 : vector<1xf32> to vector<1x1xf32>
      %c0_78 = arith.constant 0 : index
      %c0_79 = arith.constant 0 : index
      %137 = vector.load %arg14[%c0_78, %c0_79] : memref<1x16xf32, #tpu.memory_space<vmem>>, vector<1x16xf32>
      %cst_80 = arith.constant dense<0.000000e+00> : vector<1xf32>
      %138 = vector.multi_reduction <add>, %137, %cst_80 [1] : vector<1x16xf32> to vector<1xf32>
      %139 = vector.shape_cast %138 : vector<1xf32> to vector<1x1xf32>
      %cst_81 = arith.constant dense<0.000000e+00> : vector<1xf32>
      %140 = vector.multi_reduction <add>, %139, %cst_81 [0] : vector<1x1xf32> to vector<1xf32>
      %141 = vector.shape_cast %140 : vector<1xf32> to vector<1x1xf32>
      %cst_82 = arith.constant 0.000000e+00 : f32
      %142 = vector.broadcast %cst_82 : f32 to vector<1x1xf32>
      %143 = arith.select %107, %136, %142 : vector<1x1xf32>
      %144 = arith.addf %141, %143 : vector<1x1xf32>
      %c0_83 = arith.constant 0 : index
      %c0_84 = arith.constant 0 : index
      %145 = vector.load %arg16[%c0_83, %c0_84] : memref<1x16xf32, #tpu.memory_space<vmem>>, vector<1x16xf32>
      %cst_85 = arith.constant dense<0.000000e+00> : vector<1xf32>
      %146 = vector.multi_reduction <add>, %145, %cst_85 [1] : vector<1x16xf32> to vector<1xf32>
      %147 = vector.shape_cast %146 : vector<1xf32> to vector<1x1xf32>
      %cst_86 = arith.constant dense<0.000000e+00> : vector<1xf32>
      %148 = vector.multi_reduction <add>, %147, %cst_86 [0] : vector<1x1xf32> to vector<1xf32>
      %149 = vector.shape_cast %148 : vector<1xf32> to vector<1x1xf32>
      %c0_87 = arith.constant 0 : index
      %c0_88 = arith.constant 0 : index
      %c0_89 = arith.constant 0 : index
      %150 = vector.load %arg7[%c0_87, %c0_88, %c0_89] : memref<1x1x1xf32, #tpu.memory_space<vmem>>, vector<1x1x1xf32>
      %151 = vector.shape_cast %150 : vector<1x1x1xf32> to vector<1x1xf32>
      %152 = arith.subf %149, %151 : vector<1x1xf32>
      %153 = math.absf %152 : vector<1x1xf32>
      %cst_90 = arith.constant 5.000000e-01 : f32
      %154 = vector.broadcast %cst_90 : f32 to vector<1x1xf32>
      %155 = arith.mulf %153, %154 : vector<1x1xf32>
      %c0_91 = arith.constant 0 : index
      %c0_92 = arith.constant 0 : index
      %156 = vector.load %arg11[%c0_91, %c0_92] : memref<8x4xf32, #tpu.memory_space<vmem>>, vector<8x4xf32>
      %c0_93 = arith.constant 0 : index
      %c0_94 = arith.constant 0 : index
      %157 = vector.load %arg12[%c0_93, %c0_94] : memref<8x4xf32, #tpu.memory_space<vmem>>, vector<8x4xf32>
      %158 = arith.subf %156, %157 : vector<8x4xf32>
      %159 = math.absf %158 : vector<8x4xf32>
      %160 = vector.broadcast %110 : vector<8x1xf32> to vector<8x4xf32>
      %161 = arith.mulf %159, %160 : vector<8x4xf32>
      %cst_95 = arith.constant dense<0.000000e+00> : vector<8xf32>
      %162 = vector.multi_reduction <add>, %161, %cst_95 [1] : vector<8x4xf32> to vector<8xf32>
      %163 = vector.shape_cast %162 : vector<8xf32> to vector<8x1xf32>
      %cst_96 = arith.constant dense<0.000000e+00> : vector<1xf32>
      %164 = vector.multi_reduction <add>, %163, %cst_96 [0] : vector<8x1xf32> to vector<1xf32>
      %165 = vector.shape_cast %164 : vector<1xf32> to vector<1x1xf32>
      %166 = vector.extract_strided_slice %156 {offsets = [0, 0], sizes = [8, 1], strides = [1, 1]} : vector<8x4xf32> to vector<8x1xf32>
      %167 = vector.extract_strided_slice %156 {offsets = [0, 1], sizes = [8, 1], strides = [1, 1]} : vector<8x4xf32> to vector<8x1xf32>
      %168 = vector.extract_strided_slice %156 {offsets = [0, 2], sizes = [8, 1], strides = [1, 1]} : vector<8x4xf32> to vector<8x1xf32>
      %169 = vector.extract_strided_slice %156 {offsets = [0, 3], sizes = [8, 1], strides = [1, 1]} : vector<8x4xf32> to vector<8x1xf32>
      %cst_97 = arith.constant 5.000000e-01 : f32
      %170 = vector.broadcast %cst_97 : f32 to vector<8x1xf32>
      %171 = arith.mulf %170, %168 : vector<8x1xf32>
      %172 = arith.subf %166, %171 : vector<8x1xf32>
      %cst_98 = arith.constant 5.000000e-01 : f32
      %173 = vector.broadcast %cst_98 : f32 to vector<8x1xf32>
      %174 = arith.mulf %173, %169 : vector<8x1xf32>
      %175 = arith.subf %167, %174 : vector<8x1xf32>
      %cst_99 = arith.constant 5.000000e-01 : f32
      %176 = vector.broadcast %cst_99 : f32 to vector<8x1xf32>
      %177 = arith.mulf %176, %168 : vector<8x1xf32>
      %178 = arith.addf %166, %177 : vector<8x1xf32>
      %cst_100 = arith.constant 5.000000e-01 : f32
      %179 = vector.broadcast %cst_100 : f32 to vector<8x1xf32>
      %180 = arith.mulf %179, %169 : vector<8x1xf32>
      %181 = arith.addf %167, %180 : vector<8x1xf32>
      %182 = vector.extract_strided_slice %157 {offsets = [0, 0], sizes = [8, 1], strides = [1, 1]} : vector<8x4xf32> to vector<8x1xf32>
      %183 = vector.extract_strided_slice %157 {offsets = [0, 1], sizes = [8, 1], strides = [1, 1]} : vector<8x4xf32> to vector<8x1xf32>
      %184 = vector.extract_strided_slice %157 {offsets = [0, 2], sizes = [8, 1], strides = [1, 1]} : vector<8x4xf32> to vector<8x1xf32>
      %185 = vector.extract_strided_slice %157 {offsets = [0, 3], sizes = [8, 1], strides = [1, 1]} : vector<8x4xf32> to vector<8x1xf32>
      %cst_101 = arith.constant 5.000000e-01 : f32
      %186 = vector.broadcast %cst_101 : f32 to vector<8x1xf32>
      %187 = arith.mulf %186, %184 : vector<8x1xf32>
      %188 = arith.subf %182, %187 : vector<8x1xf32>
      %cst_102 = arith.constant 5.000000e-01 : f32
      %189 = vector.broadcast %cst_102 : f32 to vector<8x1xf32>
      %190 = arith.mulf %189, %185 : vector<8x1xf32>
      %191 = arith.subf %183, %190 : vector<8x1xf32>
      %cst_103 = arith.constant 5.000000e-01 : f32
      %192 = vector.broadcast %cst_103 : f32 to vector<8x1xf32>
      %193 = arith.mulf %192, %184 : vector<8x1xf32>
      %194 = arith.addf %182, %193 : vector<8x1xf32>
      %cst_104 = arith.constant 5.000000e-01 : f32
      %195 = vector.broadcast %cst_104 : f32 to vector<8x1xf32>
      %196 = arith.mulf %195, %185 : vector<8x1xf32>
      %197 = arith.addf %183, %196 : vector<8x1xf32>
      %198 = arith.subf %178, %172 : vector<8x1xf32>
      %199 = arith.subf %181, %175 : vector<8x1xf32>
      %200 = arith.mulf %198, %199 : vector<8x1xf32>
      %201 = arith.subf %194, %188 : vector<8x1xf32>
      %202 = arith.subf %197, %191 : vector<8x1xf32>
      %203 = arith.mulf %201, %202 : vector<8x1xf32>
      %204 = arith.minimumf %178, %194 : vector<8x1xf32>
      %205 = arith.maximumf %172, %188 : vector<8x1xf32>
      %206 = arith.subf %204, %205 : vector<8x1xf32>
      %cst_105 = arith.constant 0.000000e+00 : f32
      %207 = vector.broadcast %cst_105 : f32 to vector<8x1xf32>
      %208 = arith.maximumf %206, %207 : vector<8x1xf32>
      %209 = arith.minimumf %181, %197 : vector<8x1xf32>
      %210 = arith.maximumf %175, %191 : vector<8x1xf32>
      %211 = arith.subf %209, %210 : vector<8x1xf32>
      %cst_106 = arith.constant 0.000000e+00 : f32
      %212 = vector.broadcast %cst_106 : f32 to vector<8x1xf32>
      %213 = arith.maximumf %211, %212 : vector<8x1xf32>
      %214 = arith.mulf %208, %213 : vector<8x1xf32>
      %215 = arith.addf %200, %203 : vector<8x1xf32>
      %216 = arith.subf %215, %214 : vector<8x1xf32>
      %cst_107 = arith.constant 9.99999996E-13 : f32
      %217 = vector.broadcast %cst_107 : f32 to vector<8x1xf32>
      %218 = arith.addf %216, %217 : vector<8x1xf32>
      %219 = arith.divf %214, %218 : vector<8x1xf32>
      %220 = arith.maximumf %178, %194 : vector<8x1xf32>
      %221 = arith.minimumf %172, %188 : vector<8x1xf32>
      %222 = arith.subf %220, %221 : vector<8x1xf32>
      %cst_108 = arith.constant 0.000000e+00 : f32
      %223 = vector.broadcast %cst_108 : f32 to vector<8x1xf32>
      %224 = arith.maximumf %222, %223 : vector<8x1xf32>
      %225 = arith.maximumf %181, %197 : vector<8x1xf32>
      %226 = arith.minimumf %175, %191 : vector<8x1xf32>
      %227 = arith.subf %225, %226 : vector<8x1xf32>
      %cst_109 = arith.constant 0.000000e+00 : f32
      %228 = vector.broadcast %cst_109 : f32 to vector<8x1xf32>
      %229 = arith.maximumf %227, %228 : vector<8x1xf32>
      %230 = arith.mulf %224, %229 : vector<8x1xf32>
      %231 = arith.subf %230, %216 : vector<8x1xf32>
      %cst_110 = arith.constant 9.99999996E-13 : f32
      %232 = vector.broadcast %cst_110 : f32 to vector<8x1xf32>
      %233 = arith.addf %230, %232 : vector<8x1xf32>
      %234 = arith.divf %231, %233 : vector<8x1xf32>
      %235 = arith.subf %219, %234 : vector<8x1xf32>
      %cst_111 = arith.constant 0.000000e+00 : f32
      %236 = vector.broadcast %cst_111 : f32 to vector<8x1xf32>
      %237 = arith.cmpf ogt, %110, %236 : vector<8x1xf32>
      %cst_112 = arith.constant 1.000000e+00 : f32
      %238 = vector.broadcast %cst_112 : f32 to vector<8x1xf32>
      %239 = arith.subf %238, %235 : vector<8x1xf32>
      %cst_113 = arith.constant 0.000000e+00 : f32
      %240 = vector.broadcast %cst_113 : f32 to vector<8x1xf32>
      %241 = arith.select %237, %239, %240 : vector<8x1xi1>, vector<8x1xf32>
      %cst_114 = arith.constant dense<0.000000e+00> : vector<8xf32>
      %242 = vector.multi_reduction <add>, %241, %cst_114 [1] : vector<8x1xf32> to vector<8xf32>
      %243 = vector.shape_cast %242 : vector<8xf32> to vector<8x1xf32>
      %cst_115 = arith.constant dense<0.000000e+00> : vector<1xf32>
      %244 = vector.multi_reduction <add>, %243, %cst_115 [0] : vector<8x1xf32> to vector<1xf32>
      %245 = vector.shape_cast %244 : vector<1xf32> to vector<1x1xf32>
      %cst_116 = arith.constant 0.000000e+00 : f32
      %246 = vector.broadcast %cst_116 : f32 to vector<1x1xf32>
      %247 = arith.select %107, %165, %246 : vector<1x1xf32>
      %cst_117 = arith.constant 0.000000e+00 : f32
      %248 = vector.broadcast %cst_117 : f32 to vector<1x1xf32>
      %249 = arith.select %107, %245, %248 : vector<1x1xf32>
      %c0_118 = arith.constant 0 : index
      %c0_119 = arith.constant 0 : index
      %250 = vector.load %arg17[%c0_118, %c0_119] : memref<1x1xf32, #tpu.memory_space<vmem>>, vector<1x1xf32>
      %c0_120 = arith.constant 0 : index
      %c0_121 = arith.constant 0 : index
      %251 = vector.load %arg18[%c0_120, %c0_121] : memref<1x128xf32, #tpu.memory_space<vmem>>, vector<1x128xf32>
      %252 = math.log %251 : vector<1x128xf32>
      %253 = vector.broadcast %250 : vector<1x1xf32> to vector<1x128xf32>
      %254 = arith.addf %253, %252 : vector<1x128xf32>
      %c0_122 = arith.constant 0 : index
      %c0_123 = arith.constant 0 : index
      %255 = vector.load %arg20[%c0_122, %c0_123] : memref<1x128xf32, #tpu.memory_space<vmem>>, vector<1x128xf32>
      %cst_124 = arith.constant 0.000000e+00 : f32
      %256 = vector.broadcast %cst_124 : f32 to vector<1x128xf32>
      %257 = arith.cmpf ogt, %255, %256 : vector<1x128xf32>
      %c0_125 = arith.constant 0 : index
      %c0_126 = arith.constant 0 : index
      %258 = vector.load %arg19[%c0_125, %c0_126] : memref<1x128xf32, #tpu.memory_space<vmem>>, vector<1x128xf32>
      %cst_127 = arith.constant 9.99999997E-7 : f32
      %259 = vector.broadcast %cst_127 : f32 to vector<1x128xf32>
      %260 = arith.addf %255, %259 : vector<1x128xf32>
      %261 = arith.divf %258, %260 : vector<1x128xf32>
      %262 = arith.addf %261, %254 : vector<1x128xf32>
      %cst_128 = arith.constant 0.000000e+00 : f32
      %263 = vector.broadcast %cst_128 : f32 to vector<1x128xf32>
      %264 = arith.select %257, %262, %263 : vector<1x128xi1>, vector<1x128xf32>
      %cst_129 = arith.constant dense<0.000000e+00> : vector<1xf32>
      %265 = vector.multi_reduction <add>, %264, %cst_129 [1] : vector<1x128xf32> to vector<1xf32>
      %266 = vector.shape_cast %265 : vector<1xf32> to vector<1x1xf32>
      %cst_130 = arith.constant dense<0.000000e+00> : vector<1xf32>
      %267 = vector.multi_reduction <add>, %266, %cst_130 [0] : vector<1x1xf32> to vector<1xf32>
      %268 = vector.shape_cast %267 : vector<1xf32> to vector<1x1xf32>
      %c0_131 = arith.constant 0 : index
      %c0_132 = arith.constant 0 : index
      %269 = vector.load %arg15[%c0_131, %c0_132] : memref<1x16xf32, #tpu.memory_space<vmem>>, vector<1x16xf32>
      %cst_133 = arith.constant dense<0.000000e+00> : vector<1xf32>
      %270 = vector.multi_reduction <add>, %269, %cst_133 [1] : vector<1x16xf32> to vector<1xf32>
      %271 = vector.shape_cast %270 : vector<1xf32> to vector<1x1xf32>
      %cst_134 = arith.constant dense<0.000000e+00> : vector<1xf32>
      %272 = vector.multi_reduction <add>, %271, %cst_134 [0] : vector<1x1xf32> to vector<1xf32>
      %273 = vector.shape_cast %272 : vector<1xf32> to vector<1x1xf32>
      %274 = arith.addf %273, %268 : vector<1x1xf32>
      %cst_135 = arith.constant 5.000000e-01 : f32
      %275 = vector.broadcast %cst_135 : f32 to vector<1x1xf32>
      %276 = arith.mulf %274, %275 : vector<1x1xf32>
      %277 = tpu.iota {dimensions = array<i32: 2>} : vector<1x1x128xi32>
      %c0_i32_136 = arith.constant 0 : i32
      %278 = vector.broadcast %c0_i32_136 : i32 to vector<1x1x128xi32>
      %279 = arith.cmpi eq, %277, %278 : vector<1x1x128xi32>
      %cst_137 = arith.constant 0.000000e+00 : f32
      %280 = vector.shape_cast %144 : vector<1x1xf32> to vector<1x1x1xf32>
      %281 = vector.broadcast %280 : vector<1x1x1xf32> to vector<1x1x128xf32>
      %282 = vector.broadcast %cst_137 : f32 to vector<1x1x128xf32>
      %283 = arith.select %279, %281, %282 : vector<1x1x128xi1>, vector<1x1x128xf32>
      %c1_i32 = arith.constant 1 : i32
      %284 = vector.broadcast %c1_i32 : i32 to vector<1x1x128xi32>
      %285 = arith.cmpi eq, %277, %284 : vector<1x1x128xi32>
      %cst_138 = arith.constant 0.000000e+00 : f32
      %286 = vector.shape_cast %155 : vector<1x1xf32> to vector<1x1x1xf32>
      %287 = vector.broadcast %286 : vector<1x1x1xf32> to vector<1x1x128xf32>
      %288 = vector.broadcast %cst_138 : f32 to vector<1x1x128xf32>
      %289 = arith.select %285, %287, %288 : vector<1x1x128xi1>, vector<1x1x128xf32>
      %290 = arith.addf %283, %289 : vector<1x1x128xf32>
      %c2_i32 = arith.constant 2 : i32
      %291 = vector.broadcast %c2_i32 : i32 to vector<1x1x128xi32>
      %292 = arith.cmpi eq, %277, %291 : vector<1x1x128xi32>
      %cst_139 = arith.constant 0.000000e+00 : f32
      %293 = vector.shape_cast %247 : vector<1x1xf32> to vector<1x1x1xf32>
      %294 = vector.broadcast %293 : vector<1x1x1xf32> to vector<1x1x128xf32>
      %295 = vector.broadcast %cst_139 : f32 to vector<1x1x128xf32>
      %296 = arith.select %292, %294, %295 : vector<1x1x128xi1>, vector<1x1x128xf32>
      %297 = arith.addf %290, %296 : vector<1x1x128xf32>
      %c3_i32 = arith.constant 3 : i32
      %298 = vector.broadcast %c3_i32 : i32 to vector<1x1x128xi32>
      %299 = arith.cmpi eq, %277, %298 : vector<1x1x128xi32>
      %cst_140 = arith.constant 0.000000e+00 : f32
      %300 = vector.shape_cast %249 : vector<1x1xf32> to vector<1x1x1xf32>
      %301 = vector.broadcast %300 : vector<1x1x1xf32> to vector<1x1x128xf32>
      %302 = vector.broadcast %cst_140 : f32 to vector<1x1x128xf32>
      %303 = arith.select %299, %301, %302 : vector<1x1x128xi1>, vector<1x1x128xf32>
      %304 = arith.addf %297, %303 : vector<1x1x128xf32>
      %c4_i32 = arith.constant 4 : i32
      %305 = vector.broadcast %c4_i32 : i32 to vector<1x1x128xi32>
      %306 = arith.cmpi eq, %277, %305 : vector<1x1x128xi32>
      %cst_141 = arith.constant 0.000000e+00 : f32
      %307 = vector.shape_cast %276 : vector<1x1xf32> to vector<1x1x1xf32>
      %308 = vector.broadcast %307 : vector<1x1x1xf32> to vector<1x1x128xf32>
      %309 = vector.broadcast %cst_141 : f32 to vector<1x1x128xf32>
      %310 = arith.select %306, %308, %309 : vector<1x1x128xi1>, vector<1x1x128xf32>
      %311 = arith.addf %304, %310 : vector<1x1x128xf32>
      %c0_142 = arith.constant 0 : index
      %c0_143 = arith.constant 0 : index
      %c0_144 = arith.constant 0 : index
      %312 = vector.load %arg13[%c0_142, %c0_143, %c0_144] : memref<1x1x128xf32, #tpu.memory_space<vmem>>, vector<1x1x128xf32>
      tpu.vector_store %arg13[%c0_142, %c0_143, %c0_144], %311 {strides = array<i32>} : memref<1x1x128xf32, #tpu.memory_space<vmem>>, vector<1x1x128xf32>,
    } else {
    }
    return
  }
  func.func @transform_0(%arg0: i32, %arg1: i32) -> (i32, i32, i32) {
    %c0_i32 = arith.constant 0 : i32
    %c0_i32_0 = arith.constant 0 : i32
    return %arg0, %arg1, %c0_i32 : i32, i32, i32
  }
  func.func @transform_1(%arg0: i32, %arg1: i32) -> (i32, i32, i32) {
    %c0_i32 = arith.constant 0 : i32
    %c0_i32_0 = arith.constant 0 : i32
    return %arg0, %arg1, %c0_i32 : i32, i32, i32
  }
  func.func @transform_2(%arg0: i32, %arg1: i32) -> (i32, i32, i32) {
    %c0_i32 = arith.constant 0 : i32
    %c0_i32_0 = arith.constant 0 : i32
    %c0_i32_1 = arith.constant 0 : i32
    return %arg0, %c0_i32, %c0_i32_0 : i32, i32, i32
  }
  func.func @transform_3(%arg0: i32, %arg1: i32) -> (i32, i32, i32) {
    %c0_i32 = arith.constant 0 : i32
    %c0_i32_0 = arith.constant 0 : i32
    return %arg0, %arg1, %c0_i32 : i32, i32, i32
  }
  func.func @transform_4(%arg0: i32, %arg1: i32) -> (i32, i32, i32) {
    %c0_i32 = arith.constant 0 : i32
    %c0_i32_0 = arith.constant 0 : i32
    return %arg0, %arg1, %c0_i32 : i32, i32, i32
  }
  func.func @transform_5(%arg0: i32, %arg1: i32) -> (i32, i32, i32) {
    %c0_i32 = arith.constant 0 : i32
    %c0_i32_0 = arith.constant 0 : i32
    %c0_i32_1 = arith.constant 0 : i32
    return %arg0, %c0_i32, %c0_i32_0 : i32, i32, i32
  }
  func.func @transform_6(%arg0: i32, %arg1: i32) -> (i32, i32) {
    %c0_i32 = arith.constant 0 : i32
    %c0_i32_0 = arith.constant 0 : i32
    %c0_i32_1 = arith.constant 0 : i32
    return %c0_i32, %c0_i32_0 : i32, i32
  }
  func.func @transform_7(%arg0: i32, %arg1: i32) -> (i32, i32) {
    %c0_i32 = arith.constant 0 : i32
    %c0_i32_0 = arith.constant 0 : i32
    %c0_i32_1 = arith.constant 0 : i32
    return %c0_i32, %c0_i32_0 : i32, i32
  }
  func.func @transform_8(%arg0: i32, %arg1: i32) -> (i32, i32) {
    %c0_i32 = arith.constant 0 : i32
    %c0_i32_0 = arith.constant 0 : i32
    %c0_i32_1 = arith.constant 0 : i32
    return %c0_i32, %c0_i32_0 : i32, i32
  }
  func.func @transform_9(%arg0: i32, %arg1: i32) -> (i32, i32) {
    %c0_i32 = arith.constant 0 : i32
    %c0_i32_0 = arith.constant 0 : i32
    %c0_i32_1 = arith.constant 0 : i32
    return %c0_i32, %c0_i32_0 : i32, i32
  }
  func.func @transform_10(%arg0: i32, %arg1: i32) -> (i32, i32) {
    %c0_i32 = arith.constant 0 : i32
    %c0_i32_0 = arith.constant 0 : i32
    %c0_i32_1 = arith.constant 0 : i32
    return %c0_i32, %c0_i32_0 : i32, i32
  }
  func.func @transform_11(%arg0: i32, %arg1: i32) -> (i32, i32, i32) {
    %c0_i32 = arith.constant 0 : i32
    %c0_i32_0 = arith.constant 0 : i32
    %c0_i32_1 = arith.constant 0 : i32
    return %arg0, %c0_i32, %c0_i32_0 : i32, i32, i32
  }
}

</mosaic_0001>

<llo_original>
// kernel: tpu_custom_call.1
$region0: #{tpu_custom_call.1}
  #allocation0 [shape = 'u32[]', space=smem, size = 0x4, offset = 0x4, fixed_abs, tag = 'smem constant byte address 0x4 - core index']
  #allocation1 [shape = 'u32[72,128]{1,0:T(1,128)}', space=vmem, size = 0x9000, scoped, tag = 'internal scratch']
  #allocation2 [shape = 'f32[1,16]{1,0:T(1,128)}', space=vmem, size = 0x200, scoped, tag = 'scratch operand']
  #allocation3 [shape = 'f32[1,16]{1,0:T(1,128)}', space=vmem, size = 0x200, scoped, tag = 'scratch operand']
  #allocation4 [shape = 'f32[1,16]{1,0:T(1,128)}', space=vmem, size = 0x200, scoped, tag = 'scratch operand']
  #allocation5 [shape = 'f32[1,1]{1,0:T(1,128)}', space=vmem, size = 0x200, scoped, tag = 'scratch operand']
  #allocation6 [shape = 'f32[1,128]{1,0:T(1,128)}', space=vmem, size = 0x200, scoped, tag = 'scratch operand']
  #allocation7 [shape = 'f32[1,128]{1,0:T(1,128)}', space=vmem, size = 0x200, scoped, tag = 'scratch operand']
  #allocation8 [shape = 'f32[1,128]{1,0:T(1,128)}', space=vmem, size = 0x200, scoped, tag = 'scratch operand']
  %s0 = inlined_call_operand.hbm [shape: f32[2,16,128], index: 0, kind: input, shape index: {}]
  %s1 = inlined_call_operand.hbm [shape: f32[2,16,32], index: 1, kind: input, shape index: {}]
  %s2 = inlined_call_operand.vmem [shape: f32[2,32,128], index: 2, kind: input, shape index: {}]
  %s3 = inlined_call_operand.vmem [shape: s32[2,16,1], index: 3, kind: input, shape index: {}]
  %s4 = inlined_call_operand.vmem [shape: s32[2,16,1], index: 4, kind: input, shape index: {}]
  %s5 = inlined_call_operand.vmem [shape: f32[2,1,1], index: 5, kind: input, shape index: {}]
  %s6 = inlined_call_operand.vmem [shape: f32[8,128], index: 6, kind: input, shape index: {}]
  %s7 = inlined_call_operand.vmem [shape: f32[8,128], index: 7, kind: input, shape index: {}]
  %s8 = inlined_call_operand.vmem [shape: f32[8,1], index: 8, kind: input, shape index: {}]
  %s9 = inlined_call_operand.vmem [shape: f32[8,4], index: 9, kind: input, shape index: {}]
  %s10 = inlined_call_operand.vmem [shape: f32[8,4], index: 10, kind: input, shape index: {}]
  %s11 = inlined_call_operand.hbm [shape: f32[2,1,128], index: 11, kind: output, shape index: {}]
  %s12 = sld [smem:[#allocation0]]
  $region93: #{tpu_custom_call.1} parent=0
    _
  %s14 = ssub.s32 1, %s12
  %s15 = scalar_select 0, %s14, %s12
  $region1: #{tpu_custom_call.1} parent=0
    #allocation9 [shape = 'u8[16384]{0}', space=vmem, size = 0x4000, scoped, tag = 'input window, operand 0']
    #allocation10 [shape = 's32[2]{0}', space=sflag, size = 0x8, scoped, tag = 'scoped memory for tpu_custom_call.1']
    #allocation11 [shape = 's32[2]{0}', space=sflag, size = 0x8, scoped, tag = 'scoped memory for tpu_custom_call.1']
    #allocation12 [shape = 'u8[16384]{0}', space=vmem, size = 0x4000, scoped, tag = 'input window, operand 1']
    #allocation13 [shape = 's32[2]{0}', space=sflag, size = 0x8, scoped, tag = 'scoped memory for tpu_custom_call.1']
    #allocation14 [shape = 'u8[1024]{0}', space=vmem, size = 0x400, scoped, tag = 'output window, operand 0']
    %16 = vsyncpa [#allocation10], 0
    %s17 = scalar_lea.sflag [#allocation10], 1
    %18 = vsyncpa %s17, 0
    %19 = vsyncpa [#allocation13], 0
    %s20 = scalar_lea.sflag [#allocation13], 1
    %21 = vsyncpa %s20, 0
    %22 = vsyncpa [#allocation11], 0
    %s23 = scalar_lea.sflag [#allocation11], 1
    %24 = vsyncpa %s23, 0
    loop: start=0, step=1, limit=4
    $region2: #{tpu_custom_call.1} parent=1 // loop_pre_header
      _
    $region3: #{tpu_custom_call.1} parent=1 // loop_header
      %s26 = sphi 0, %s30
      %p27 = scmp.ge.s32.totalorder %s26, 4
      %s33 = sphi 0, %s45
      %s34 = sphi 0, %s41
      %s35 = sphi 0, %s33
      %s36 = sphi 0, %s34
      %s37 = sphi 0, %s35
      %s38 = sphi 0, %s36
      %s50 = sphi 0, %s52
      %s53 = sphi 0, %s50
      %s54 = sphi 0, %s53
      %s70 = sphi 0, %s54
      %s78 = sphi 0, %s80
      %s81 = sphi 0, %s78
      %s82 = sphi 0, %s81
      %s98 = sphi 0, %s82
      %s104 = sphi 0, %s106
      %s107 = sphi 0, %s104
      %s108 = sphi 0, %s107
      %s124 = sphi 0, %s108
      %s132 = sphi 0, %s134
      %s135 = sphi 0, %s132
      %s136 = sphi 0, %s135
      %s152 = sphi 0, %s136
      %s160 = sphi 0, %s162
      %s163 = sphi 0, %s160
      %s164 = sphi 0, %s163
      %s180 = sphi 0, %s164
      %s186 = sphi 0, %s188
      %s189 = sphi 0, %s186
      %s190 = sphi 0, %s189
      %s206 = sphi 0, %s190
      %s210 = sphi 0, %s210
      %s212 = sphi 0, %s210
      %s213 = sphi 0, %s212
      %s227 = sphi 0, %s213
      %s231 = sphi 0, %s231
      %s233 = sphi 0, %s231
      %s234 = sphi 0, %s233
      %s248 = sphi 0, %s234
      %s252 = sphi 0, %s252
      %s254 = sphi 0, %s252
      %s255 = sphi 0, %s254
      %s269 = sphi 0, %s255
      %s273 = sphi 0, %s273
      %s275 = sphi 0, %s273
      %s276 = sphi 0, %s275
      %s290 = sphi 0, %s276
      %s294 = sphi 0, %s294
      %s296 = sphi 0, %s294
      %s297 = sphi 0, %s296
      %s311 = sphi 0, %s297
      %s317 = sphi 0, %s319
      %s320 = sphi 0, %s317
      %s321 = sphi 0, %s320
      %s337 = sphi 0, %s321
    $region4: #{tpu_custom_call.1} parent=1 // loop_header_branch
      %29 = sbr.rel (%p27) target = $region8
    $region5: #{tpu_custom_call.1} parent=1 // loop_body
      %s31 = ssub.s32 %s26, 1
      %s32 = ssub.s32 %s26, 2
      %s39 = sadd.s32 1, %s34
      %p40 = scmp.ge.s32.totalorder %s39, 1
      %s41 = scalar_select %p40, 0, %s39
      %s42 = sadd.s32 1, %s33
      %s43 = scalar_select %p40, %s42, %s33
      %p44 = scmp.ge.s32.totalorder %s43, 2
      %s45 = scalar_select %p44, 0, %s43
      %s46 = ssub.s32 %s33, %s45
      %s47 = ssub.s32 %s34, %s41
      %s48 = sor.u32 %s46, %s47
      %p49 = scmp.eq.s32.totalorder %s48, 0
      %s51 = sadd.s32 %s50, 1
      %s52 = scalar_select %p49, %s50, %s51
      %p55 = pneg %p49
      %p56 = scmp.eq.s32.totalorder %s26, 1
      %p57 = por %p55, %p56
      %p58 = scmp.ne.s32.totalorder %s50, %s53
      %p59 = scmp.eq.s32.totalorder %s26, 0
      %p60 = por %p58, %p59
      %p61 = scmp.ne.s32.totalorder %s50, %s53
      %p62 = scmp.eq.s32.totalorder %s31, 1
      %p63 = por %p61, %p62
      %p64 = scmp.ne.s32.totalorder %s53, %s54
      %p65 = scmp.eq.s32.totalorder %s31, 0
      %p66 = por %p64, %p65
      %p67 = scmp.ne.s32.totalorder %s53, %s54
      %p68 = scmp.eq.s32.totalorder %s32, 1
      %p69 = por %p67, %p68
      %p71 = scmp.ne.s32.totalorder %s54, %s70
      %p72 = scmp.eq.s32.totalorder %s32, 0
      %p73 = por %p71, %p72
      %s74 = ssub.s32 %s33, %s45
      %s75 = ssub.s32 %s34, %s41
      %s76 = sor.u32 %s74, %s75
      %p77 = scmp.eq.s32.totalorder %s76, 0
      %s79 = sadd.s32 %s78, 1
      %s80 = scalar_select %p77, %s78, %s79
      %p83 = pneg %p77
      %p84 = scmp.eq.s32.totalorder %s26, 1
      %p85 = por %p83, %p84
      %p86 = scmp.ne.s32.totalorder %s78, %s81
      %p87 = scmp.eq.s32.totalorder %s26, 0
      %p88 = por %p86, %p87
      %p89 = scmp.ne.s32.totalorder %s78, %s81
      %p90 = scmp.eq.s32.totalorder %s31, 1
      %p91 = por %p89, %p90
      %p92 = scmp.ne.s32.totalorder %s81, %s82
      %p93 = scmp.eq.s32.totalorder %s31, 0
      %p94 = por %p92, %p93
      %p95 = scmp.ne.s32.totalorder %s81, %s82
      %p96 = scmp.eq.s32.totalorder %s32, 1
      %p97 = por %p95, %p96
      %p99 = scmp.ne.s32.totalorder %s82, %s98
      %p100 = scmp.eq.s32.totalorder %s32, 0
      %p101 = por %p99, %p100
      %s102 = ssub.s32 %s33, %s45
      %p103 = scmp.eq.s32.totalorder %s102, 0
      %s105 = sadd.s32 %s104, 1
      %s106 = scalar_select %p103, %s104, %s105
      %p109 = pneg %p103
      %p110 = scmp.eq.s32.totalorder %s26, 1
      %p111 = por %p109, %p110
      %p112 = scmp.ne.s32.totalorder %s104, %s107
      %p113 = scmp.eq.s32.totalorder %s26, 0
      %p114 = por %p112, %p113
      %p115 = scmp.ne.s32.totalorder %s104, %s107
      %p116 = scmp.eq.s32.totalorder %s31, 1
      %p117 = por %p115, %p116
      %p118 = scmp.ne.s32.totalorder %s107, %s108
      %p119 = scmp.eq.s32.totalorder %s31, 0
      %p120 = por %p118, %p119
      %p121 = scmp.ne.s32.totalorder %s107, %s108
      %p122 = scmp.eq.s32.totalorder %s32, 1
      %p123 = por %p121, %p122
      %p125 = scmp.ne.s32.totalorder %s108, %s124
      %p126 = scmp.eq.s32.totalorder %s32, 0
      %p127 = por %p125, %p126
      %s128 = ssub.s32 %s33, %s45
      %s129 = ssub.s32 %s34, %s41
      %s130 = sor.u32 %s128, %s129
      %p131 = scmp.eq.s32.totalorder %s130, 0
      %s133 = sadd.s32 %s132, 1
      %s134 = scalar_select %p131, %s132, %s133
      %p137 = pneg %p131
      %p138 = scmp.eq.s32.totalorder %s26, 1
      %p139 = por %p137, %p138
      %p140 = scmp.ne.s32.totalorder %s132, %s135
      %p141 = scmp.eq.s32.totalorder %s26, 0
      %p142 = por %p140, %p141
      %p143 = scmp.ne.s32.totalorder %s132, %s135
      %p144 = scmp.eq.s32.totalorder %s31, 1
      %p145 = por %p143, %p144
      %p146 = scmp.ne.s32.totalorder %s135, %s136
      %p147 = scmp.eq.s32.totalorder %s31, 0
      %p148 = por %p146, %p147
      %p149 = scmp.ne.s32.totalorder %s135, %s136
      %p150 = scmp.eq.s32.totalorder %s32, 1
      %p151 = por %p149, %p150
      %p153 = scmp.ne.s32.totalorder %s136, %s152
      %p154 = scmp.eq.s32.totalorder %s32, 0
      %p155 = por %p153, %p154
      %s156 = ssub.s32 %s33, %s45
      %s157 = ssub.s32 %s34, %s41
      %s158 = sor.u32 %s156, %s157
      %p159 = scmp.eq.s32.totalorder %s158, 0
      %s161 = sadd.s32 %s160, 1
      %s162 = scalar_select %p159, %s160, %s161
      %p165 = pneg %p159
      %p166 = scmp.eq.s32.totalorder %s26, 1
      %p167 = por %p165, %p166
      %p168 = scmp.ne.s32.totalorder %s160, %s163
      %p169 = scmp.eq.s32.totalorder %s26, 0
      %p170 = por %p168, %p169
      %p171 = scmp.ne.s32.totalorder %s160, %s163
      %p172 = scmp.eq.s32.totalorder %s31, 1
      %p173 = por %p171, %p172
      %p174 = scmp.ne.s32.totalorder %s163, %s164
      %p175 = scmp.eq.s32.totalorder %s31, 0
      %p176 = por %p174, %p175
      %p177 = scmp.ne.s32.totalorder %s163, %s164
      %p178 = scmp.eq.s32.totalorder %s32, 1
      %p179 = por %p177, %p178
      %p181 = scmp.ne.s32.totalorder %s164, %s180
      %p182 = scmp.eq.s32.totalorder %s32, 0
      %p183 = por %p181, %p182
      %s184 = ssub.s32 %s33, %s45
      %p185 = scmp.eq.s32.totalorder %s184, 0
      %s187 = sadd.s32 %s186, 1
      %s188 = scalar_select %p185, %s186, %s187
      %p191 = pneg %p185
      %p192 = scmp.eq.s32.totalorder %s26, 1
      %p193 = por %p191, %p192
      %p194 = scmp.ne.s32.totalorder %s186, %s189
      %p195 = scmp.eq.s32.totalorder %s26, 0
      %p196 = por %p194, %p195
      %p197 = scmp.ne.s32.totalorder %s186, %s189
      %p198 = scmp.eq.s32.totalorder %s31, 1
      %p199 = por %p197, %p198
      %p200 = scmp.ne.s32.totalorder %s189, %s190
      %p201 = scmp.eq.s32.totalorder %s31, 0
      %p202 = por %p200, %p201
      %p203 = scmp.ne.s32.totalorder %s189, %s190
      %p204 = scmp.eq.s32.totalorder %s32, 1
      %p205 = por %p203, %p204
      %p207 = scmp.ne.s32.totalorder %s190, %s206
      %p208 = scmp.eq.s32.totalorder %s32, 0
      %p209 = por %p207, %p208
      %s211 = sadd.s32 %s210, 1
      %p214 = scmp.eq.s32.totalorder %s26, 1
      %p215 = scmp.ne.s32.totalorder %s210, %s212
      %p216 = scmp.eq.s32.totalorder %s26, 0
      %p217 = por %p215, %p216
      %p218 = scmp.ne.s32.totalorder %s210, %s212
      %p219 = scmp.eq.s32.totalorder %s31, 1
      %p220 = por %p218, %p219
      %p221 = scmp.ne.s32.totalorder %s212, %s213
      %p222 = scmp.eq.s32.totalorder %s31, 0
      %p223 = por %p221, %p222
      %p224 = scmp.ne.s32.totalorder %s212, %s213
      %p225 = scmp.eq.s32.totalorder %s32, 1
      %p226 = por %p224, %p225
      %p228 = scmp.ne.s32.totalorder %s213, %s227
      %p229 = scmp.eq.s32.totalorder %s32, 0
      %p230 = por %p228, %p229
      %s232 = sadd.s32 %s231, 1
      %p235 = scmp.eq.s32.totalorder %s26, 1
      %p236 = scmp.ne.s32.totalorder %s231, %s233
      %p237 = scmp.eq.s32.totalorder %s26, 0
      %p238 = por %p236, %p237
      %p239 = scmp.ne.s32.totalorder %s231, %s233
      %p240 = scmp.eq.s32.totalorder %s31, 1
      %p241 = por %p239, %p240
      %p242 = scmp.ne.s32.totalorder %s233, %s234
      %p243 = scmp.eq.s32.totalorder %s31, 0
      %p244 = por %p242, %p243
      %p245 = scmp.ne.s32.totalorder %s233, %s234
      %p246 = scmp.eq.s32.totalorder %s32, 1
      %p247 = por %p245, %p246
      %p249 = scmp.ne.s32.totalorder %s234, %s248
      %p250 = scmp.eq.s32.totalorder %s32, 0
      %p251 = por %p249, %p250
      %s253 = sadd.s32 %s252, 1
      %p256 = scmp.eq.s32.totalorder %s26, 1
      %p257 = scmp.ne.s32.totalorder %s252, %s254
      %p258 = scmp.eq.s32.totalorder %s26, 0
      %p259 = por %p257, %p258
      %p260 = scmp.ne.s32.totalorder %s252, %s254
      %p261 = scmp.eq.s32.totalorder %s31, 1
      %p262 = por %p260, %p261
      %p263 = scmp.ne.s32.totalorder %s254, %s255
      %p264 = scmp.eq.s32.totalorder %s31, 0
      %p265 = por %p263, %p264
      %p266 = scmp.ne.s32.totalorder %s254, %s255
      %p267 = scmp.eq.s32.totalorder %s32, 1
      %p268 = por %p266, %p267
      %p270 = scmp.ne.s32.totalorder %s255, %s269
      %p271 = scmp.eq.s32.totalorder %s32, 0
      %p272 = por %p270, %p271
      %s274 = sadd.s32 %s273, 1
      %p277 = scmp.eq.s32.totalorder %s26, 1
      %p278 = scmp.ne.s32.totalorder %s273, %s275
      %p279 = scmp.eq.s32.totalorder %s26, 0
      %p280 = por %p278, %p279
      %p281 = scmp.ne.s32.totalorder %s273, %s275
      %p282 = scmp.eq.s32.totalorder %s31, 1
      %p283 = por %p281, %p282
      %p284 = scmp.ne.s32.totalorder %s275, %s276
      %p285 = scmp.eq.s32.totalorder %s31, 0
      %p286 = por %p284, %p285
      %p287 = scmp.ne.s32.totalorder %s275, %s276
      %p288 = scmp.eq.s32.totalorder %s32, 1
      %p289 = por %p287, %p288
      %p291 = scmp.ne.s32.totalorder %s276, %s290
      %p292 = scmp.eq.s32.totalorder %s32, 0
      %p293 = por %p291, %p292
      %s295 = sadd.s32 %s294, 1
      %p298 = scmp.eq.s32.totalorder %s26, 1
      %p299 = scmp.ne.s32.totalorder %s294, %s296
      %p300 = scmp.eq.s32.totalorder %s26, 0
      %p301 = por %p299, %p300
      %p302 = scmp.ne.s32.totalorder %s294, %s296
      %p303 = scmp.eq.s32.totalorder %s31, 1
      %p304 = por %p302, %p303
      %p305 = scmp.ne.s32.totalorder %s296, %s297
      %p306 = scmp.eq.s32.totalorder %s31, 0
      %p307 = por %p305, %p306
      %p308 = scmp.ne.s32.totalorder %s296, %s297
      %p309 = scmp.eq.s32.totalorder %s32, 1
      %p310 = por %p308, %p309
      %p312 = scmp.ne.s32.totalorder %s297, %s311
      %p313 = scmp.eq.s32.totalorder %s32, 0
      %p314 = por %p312, %p313
      %s315 = ssub.s32 %s33, %s45
      %p316 = scmp.eq.s32.totalorder %s315, 0
      %s318 = sadd.s32 %s317, 1
      %s319 = scalar_select %p316, %s317, %s318
      %p322 = pneg %p316
      %p323 = scmp.eq.s32.totalorder %s26, 1
      %p324 = por %p322, %p323
      %p325 = scmp.ne.s32.totalorder %s317, %s320
      %p326 = scmp.eq.s32.totalorder %s26, 0
      %p327 = por %p325, %p326
      %p328 = scmp.ne.s32.totalorder %s317, %s320
      %p329 = scmp.eq.s32.totalorder %s31, 1
      %p330 = por %p328, %p329
      %p331 = scmp.ne.s32.totalorder %s320, %s321
      %p332 = scmp.eq.s32.totalorder %s31, 0
      %p333 = por %p331, %p332
      %p334 = scmp.ne.s32.totalorder %s320, %s321
      %p335 = scmp.eq.s32.totalorder %s32, 1
      %p336 = por %p334, %p335
      %p338 = scmp.ne.s32.totalorder %s321, %s337
      %p339 = scmp.eq.s32.totalorder %s32, 0
      %p340 = por %p338, %p339
      %p341 = scmp.le.s32.totalorder 1, %s26
      %p342 = scmp.lt.s32.totalorder %s26, 3
      %p343 = pnand %p341, %p342
      %p344 = pneg %p343
      // Predicated region
      $region9: #{tpu_custom_call.1} parent=5 // pred_check
        _
      $region10: #{tpu_custom_call.1} parent=5 // pred_check_branch
        %346 = sbr.rel (%p343) target = $region12
      $region11: #{tpu_custom_call.1} parent=5 // pred_region
        %s347 = ssub.s32 %s26, 1
        // Predicated region
        $region13: #{tpu_custom_call.1} parent=11 // pred_check
          %p348 = pneg %p223
        $region14: #{tpu_custom_call.1} parent=11 // pred_check_branch
          %350 = sbr.rel (%p348) target = $region16
        $region15: #{tpu_custom_call.1} parent=11 // pred_region
          _
        $region16: #{tpu_custom_call.1} parent=11 // pred_fallthru
          _
        // Predicated region
        $region17: #{tpu_custom_call.1} parent=11 // pred_check
          %p351 = pneg %p244
        $region18: #{tpu_custom_call.1} parent=11 // pred_check_branch
          %353 = sbr.rel (%p351) target = $region20
        $region19: #{tpu_custom_call.1} parent=11 // pred_region
          _
        $region20: #{tpu_custom_call.1} parent=11 // pred_fallthru
          _
        // Predicated region
        $region21: #{tpu_custom_call.1} parent=11 // pred_check
          %p354 = pneg %p265
        $region22: #{tpu_custom_call.1} parent=11 // pred_check_branch
          %356 = sbr.rel (%p354) target = $region24
        $region23: #{tpu_custom_call.1} parent=11 // pred_region
          _
        $region24: #{tpu_custom_call.1} parent=11 // pred_fallthru
          _
        // Predicated region
        $region25: #{tpu_custom_call.1} parent=11 // pred_check
          %p357 = pneg %p286
        $region26: #{tpu_custom_call.1} parent=11 // pred_check_branch
          %359 = sbr.rel (%p357) target = $region28
        $region27: #{tpu_custom_call.1} parent=11 // pred_region
          _
        $region28: #{tpu_custom_call.1} parent=11 // pred_fallthru
          _
        // Predicated region
        $region29: #{tpu_custom_call.1} parent=11 // pred_check
          %p360 = pneg %p307
        $region30: #{tpu_custom_call.1} parent=11 // pred_check_branch
          %362 = sbr.rel (%p360) target = $region32
        $region31: #{tpu_custom_call.1} parent=11 // pred_region
          _
        $region32: #{tpu_custom_call.1} parent=11 // pred_fallthru
          _
      $region12: #{tpu_custom_call.1} parent=5 // pred_fallthru
        _
      %p363 = scmp.lt.s32.totalorder %s26, 2
      // Predicated region
      $region33: #{tpu_custom_call.1} parent=5 // pred_check
        %p364 = pneg %p363
      $region34: #{tpu_custom_call.1} parent=5 // pred_check_branch
        %366 = sbr.rel (%p364) target = $region36
      $region35: #{tpu_custom_call.1} parent=5 // pred_region
        // Predicated region
        $region37: #{tpu_custom_call.1} parent=35 // pred_check
          %p367 = pneg %p60
        $region38: #{tpu_custom_call.1} parent=35 // pred_check_branch
          %369 = sbr.rel (%p367) target = $region40
        $region39: #{tpu_custom_call.1} parent=35 // pred_region
          %s370 = sand.u32 %s50, 1
          %s371 = scalar_lea.sflag [#allocation10], %s370
          %s372 = sand.u32 %s50, 1
          %s373 = smul.addr %s372, 16
          %s374 = scalar_lea.vmem [#allocation9], %s373
          %s375 = smul.u32 2, %s34
          %377 = vsyncadd %s371, 0
          %s378 = smul.addr %s33, 2
          %s379 = sadd.s32 %s375, %s378
          %s380 = smul.addr %s379, 8
          %s381 = scalar_lea.hbm %s0, %s380
          %s382 = sshll.u32 %s381, 4
          %s383 = int_to_ptr.hbm [resolvable:$true] %s382
          %s384 = sshll.u32 %s374, 4
          %s385 = int_to_ptr.vmem [resolvable:$true] %s384
          %390 = dma.hbm_to_vmem [thread:$0]  %s383, 256, %s385, %s371, 128, 128, 8
        $region40: #{tpu_custom_call.1} parent=35 // pred_fallthru
          _
        // Predicated region
        $region41: #{tpu_custom_call.1} parent=35 // pred_check
          %p391 = pneg %p88
        $region42: #{tpu_custom_call.1} parent=35 // pred_check_branch
          %393 = sbr.rel (%p391) target = $region44
        $region43: #{tpu_custom_call.1} parent=35 // pred_region
          %s394 = sand.u32 %s78, 1
          %s395 = scalar_lea.sflag [#allocation13], %s394
          %s396 = sand.u32 %s78, 1
          %s397 = smul.addr %s396, 16
          %s398 = scalar_lea.vmem [#allocation12], %s397
          %s399 = smul.u32 2, %s34
          %401 = vsyncadd %s395, 0
          %s402 = smul.addr %s33, 2
          %s403 = sadd.s32 %s399, %s402
          %s404 = smul.addr %s403, 8
          %s405 = scalar_lea.hbm %s1, %s404
          %s406 = sshll.u32 %s405, 4
          %s407 = int_to_ptr.hbm [resolvable:$true] %s406
          %s408 = sshll.u32 %s398, 4
          %s409 = int_to_ptr.vmem [resolvable:$true] %s408
          %414 = dma.hbm_to_vmem [thread:$0]  %s407, 256, %s409, %s395, 128, 128, 8
        $region44: #{tpu_custom_call.1} parent=35 // pred_fallthru
          _
        // Predicated region
        $region45: #{tpu_custom_call.1} parent=35 // pred_check
          %p415 = pneg %p114
        $region46: #{tpu_custom_call.1} parent=35 // pred_check_branch
          %417 = sbr.rel (%p415) target = $region48
        $region47: #{tpu_custom_call.1} parent=35 // pred_region
          %p418 = scmp.lt.s32.totalorder %s33, 1
          %s419 = scalar_select %p418, %s33, 1
          %s420 = smul.addr %s419, 4
          %s421 = smul.addr %s420, 8
          %s422 = scalar_lea.vmem %s2, %s421
        $region48: #{tpu_custom_call.1} parent=35 // pred_fallthru
          _
        // Predicated region
        $region49: #{tpu_custom_call.1} parent=35 // pred_check
          %p423 = pneg %p142
        $region50: #{tpu_custom_call.1} parent=35 // pred_check_branch
          %425 = sbr.rel (%p423) target = $region52
        $region51: #{tpu_custom_call.1} parent=35 // pred_region
          %s426 = smul.u32 2, %s34
          %p427 = scmp.lt.s32.totalorder %s33, 1
          %s428 = scalar_select %p427, %s33, 1
          %p429 = scmp.lt.s32.totalorder %s426, 1
          %s430 = scalar_select %p429, %s426, 1
          %s431 = smul.addr %s428, 2
          %s432 = sadd.s32 %s430, %s431
          %s433 = smul.addr %s432, 8
          %s434 = scalar_lea.vmem %s3, %s433
          %s435 = smul.u32 2, %s34
        $region52: #{tpu_custom_call.1} parent=35 // pred_fallthru
          _
        // Predicated region
        $region53: #{tpu_custom_call.1} parent=35 // pred_check
          %p436 = pneg %p170
        $region54: #{tpu_custom_call.1} parent=35 // pred_check_branch
          %438 = sbr.rel (%p436) target = $region56
        $region55: #{tpu_custom_call.1} parent=35 // pred_region
          %s439 = smul.u32 2, %s34
          %p440 = scmp.lt.s32.totalorder %s33, 1
          %s441 = scalar_select %p440, %s33, 1
          %p442 = scmp.lt.s32.totalorder %s439, 1
          %s443 = scalar_select %p442, %s439, 1
          %s444 = smul.addr %s441, 2
          %s445 = sadd.s32 %s443, %s444
          %s446 = smul.addr %s445, 8
          %s447 = scalar_lea.vmem %s4, %s446
          %s448 = smul.u32 2, %s34
        $region56: #{tpu_custom_call.1} parent=35 // pred_fallthru
          _
        // Predicated region
        $region57: #{tpu_custom_call.1} parent=35 // pred_check
          %p449 = pneg %p196
        $region58: #{tpu_custom_call.1} parent=35 // pred_check_branch
          %451 = sbr.rel (%p449) target = $region60
        $region59: #{tpu_custom_call.1} parent=35 // pred_region
          %p452 = scmp.lt.s32.totalorder %s33, 1
          %s453 = scalar_select %p452, %s33, 1
          %s454 = scalar_lea.vmem %s5, %s453
        $region60: #{tpu_custom_call.1} parent=35 // pred_fallthru
          _
      $region36: #{tpu_custom_call.1} parent=5 // pred_fallthru
        _
      %p455 = scmp.le.s32.totalorder 1, %s26
      %p456 = scmp.lt.s32.totalorder %s26, 3
      %p457 = pnand %p455, %p456
      %p458 = pneg %p457
      // Predicated region
      $region61: #{tpu_custom_call.1} parent=5 // pred_check
        _
      $region62: #{tpu_custom_call.1} parent=5 // pred_check_branch
        %460 = sbr.rel (%p457) target = $region64
      $region63: #{tpu_custom_call.1} parent=5 // pred_region
        %s461 = ssub.s32 %s26, 1
        %s462 = sand.u32 %s53, 1
        %s463 = scalar_lea.sflag [#allocation10], %s462
        %s464 = sand.u32 %s53, 1
        %s465 = smul.addr %s464, 16
        %s466 = scalar_lea.vmem [#allocation9], %s465
        // Predicated region
        $region65: #{tpu_custom_call.1} parent=63 // pred_check
          %p467 = pneg %p66
        $region66: #{tpu_custom_call.1} parent=63 // pred_check_branch
          %469 = sbr.rel (%p467) target = $region68
        $region67: #{tpu_custom_call.1} parent=63 // pred_region
          %471 = dma.done %s463, 256
        $region68: #{tpu_custom_call.1} parent=63 // pred_fallthru
          _
        %s472 = sand.u32 %s81, 1
        %s473 = scalar_lea.sflag [#allocation13], %s472
        %s474 = sand.u32 %s81, 1
        %s475 = smul.addr %s474, 16
        %s476 = scalar_lea.vmem [#allocation12], %s475
        // Predicated region
        $region69: #{tpu_custom_call.1} parent=63 // pred_check
          %p477 = pneg %p94
        $region70: #{tpu_custom_call.1} parent=63 // pred_check_branch
          %479 = sbr.rel (%p477) target = $region72
        $region71: #{tpu_custom_call.1} parent=63 // pred_region
          %481 = dma.done %s473, 256
        $region72: #{tpu_custom_call.1} parent=63 // pred_fallthru
          _
        %s482 = sand.u32 %s53, 1
        %s483 = scalar_lea.sflag [#allocation10], %s482
        %s484 = sand.u32 %s53, 1
        %s485 = smul.addr %s484, 16
        %s486 = scalar_lea.vmem [#allocation9], %s485
        %p487 = pneg %p66
        %p488 = pneg %p63
        %s489 = sand.u32 %s81, 1
        %s490 = scalar_lea.sflag [#allocation13], %s489
        %s491 = sand.u32 %s81, 1
        %s492 = smul.addr %s491, 16
        %s493 = scalar_lea.vmem [#allocation12], %s492
        %p494 = pneg %p94
        %p495 = pneg %p91
        %p496 = scmp.lt.s32.totalorder %s35, 1
        %s497 = scalar_select %p496, %s35, 1
        %s498 = smul.addr %s497, 4
        %s499 = smul.addr %s498, 8
        %s500 = scalar_lea.vmem %s2, %s499
        %p501 = pneg %p120
        %p502 = pneg %p117
        %s503 = smul.u32 2, %s36
        %p504 = scmp.lt.s32.totalorder %s35, 1
        %s505 = scalar_select %p504, %s35, 1
        %p506 = scmp.lt.s32.totalorder %s503, 1
        %s507 = scalar_select %p506, %s503, 1
        %s508 = smul.addr %s505, 2
        %s509 = sadd.s32 %s507, %s508
        %s510 = smul.addr %s509, 8
        %s511 = scalar_lea.vmem %s3, %s510
        %p512 = pneg %p148
        %p513 = pneg %p145
        %s514 = smul.u32 2, %s36
        %p515 = scmp.lt.s32.totalorder %s35, 1
        %s516 = scalar_select %p515, %s35, 1
        %p517 = scmp.lt.s32.totalorder %s514, 1
        %s518 = scalar_select %p517, %s514, 1
        %s519 = smul.addr %s516, 2
        %s520 = sadd.s32 %s518, %s519
        %s521 = smul.addr %s520, 8
        %s522 = scalar_lea.vmem %s4, %s521
        %p523 = pneg %p176
        %p524 = pneg %p173
        %p525 = scmp.lt.s32.totalorder %s35, 1
        %s526 = scalar_select %p525, %s35, 1
        %s527 = scalar_lea.vmem %s5, %s526
        %p528 = pneg %p202
        %p529 = pneg %p199
        %p530 = pneg %p223
        %p531 = pneg %p220
        %p532 = pneg %p244
        %p533 = pneg %p241
        %p534 = pneg %p265
        %p535 = pneg %p262
        %p536 = pneg %p286
        %p537 = pneg %p283
        %p538 = pneg %p307
        %p539 = pneg %p304
        %p540 = pneg %p333
        %p541 = pneg %p330
        %s542 = sand.u32 %s320, 1
        %s543 = scalar_lea.sflag [#allocation11], %s542
        %s544 = sand.u32 %s320, 1
        %s545 = scalar_lea.vmem [#allocation14], %s544
        %s546 = smul.u32 2, %s36
        %s547 = smul.u32 2, %s36
        %p548 = scmp.lt.s32.totalorder %s35, 1
        %s549 = scalar_select %p548, %s35, 1
        %s550 = smul.addr %s549, 4
        %s551 = smul.addr %s550, 8
        %s552 = scalar_lea.vmem %s2, %s551
        %s553 = smul.u32 2, %s36
        %p554 = scmp.lt.s32.totalorder %s35, 1
        %s555 = scalar_select %p554, %s35, 1
        %p556 = scmp.lt.s32.totalorder %s553, 1
        %s557 = scalar_select %p556, %s553, 1
        %s558 = smul.addr %s555, 2
        %s559 = sadd.s32 %s557, %s558
        %s560 = smul.addr %s559, 8
        %s561 = scalar_lea.vmem %s3, %s560
        %s562 = smul.u32 2, %s36
        %s563 = smul.u32 2, %s36
        %p564 = scmp.lt.s32.totalorder %s35, 1
        %s565 = scalar_select %p564, %s35, 1
        %p566 = scmp.lt.s32.totalorder %s563, 1
        %s567 = scalar_select %p566, %s563, 1
        %s568 = smul.addr %s565, 2
        %s569 = sadd.s32 %s567, %s568
        %s570 = smul.addr %s569, 8
        %s571 = scalar_lea.vmem %s4, %s570
        %s572 = smul.u32 2, %s36
        %p573 = scmp.lt.s32.totalorder %s35, 1
        %s574 = scalar_select %p573, %s35, 1
        %s575 = scalar_lea.vmem %s5, %s574
        %p576 = scmp.eq.s32.totalorder %s36, 0
        // Predicated region
        $region73: #{tpu_custom_call.1} parent=63 // pred_check
          %p577 = pneg %p576
        $region74: #{tpu_custom_call.1} parent=63 // pred_check_branch
          %579 = sbr.rel (%p577) target = $region76
        $region75: #{tpu_custom_call.1} parent=63 // pred_region
          %vm580 = vcmask 122880
          %581 = vst.msk [vmem:[#allocation2] sm:$0x1] %vm580, 0.0
          %582 = vst.msk [vmem:[#allocation3] sm:$0x1] %vm580, 0.0
          %583 = vst.msk [vmem:[#allocation4] sm:$0x1] %vm580, 0.0
          %vm584 = vcmask 0
          %585 = vst.msk [vmem:[#allocation5] sm:$0x1] %vm584, -1e+30
          %586 = vst [vmem:[#allocation6] sm:$0x1] 0.0
          %587 = vst [vmem:[#allocation7] sm:$0x1] 0.0
          %588 = vst [vmem:[#allocation8] sm:$0x1] 0.0
        $region76: #{tpu_custom_call.1} parent=63 // pred_fallthru
          _
        %v589 = vld [vmem:[%s466] sm:$0xff]
        %v590 = vld [vmem:[%s466 + $0x8] sm:$0xff]
        %591 = vmax.xlane.f32.xlu0 %v589
        %v592 = vpop.xlane.xlu0 %591
        %593 = vmax.xlane.f32.xlu0 %v590
        %v594 = vpop.xlane.xlu0 %593
        %v595 = vsub.f32 %v589, %v592
        %v596 = vsub.f32 %v590, %v594
        %v597 = vmul.f32 %v595, 1.442695
        %v598 = vpow.pop %v597
        %v599 = vmul.f32 %v596, 1.442695
        %v600 = vpow.pop %v599
        %601 = vadd.xlane.f32.xlu0 %v598
        %v602 = vpop.xlane.xlu0 %601
        %603 = vadd.xlane.f32.xlu0 %v600
        %v604 = vpop.xlane.xlu0 %603
        %v605 = vlog2.pop %v602
        %v606 = vmul.f32 %v605, 0.6931472
        %v607 = vlog2.pop %v604
        %v608 = vmul.f32 %v607, 0.6931472
        %v609 = vadd.f32 %v592, %v606
        %v610 = vadd.f32 %v594, %v608
        %v611 = vld [vmem:[#allocation2] sm:$0x1]
        %v612 = vsub.f32 %v609, %v589
        %v613 = vsub.f32 %v610, %v590
        %v614 = vmul.f32 %v612, 0.1
        %v615 = vmul.f32 %v613, 0.1
        %v618 = vrot.slane %v614, 1
        %v619 = vrot.slane %v614, 2
        %v620 = vrot.slane %v614, 3
        %v621 = vrot.slane %v614, 4
        %v622 = vrot.slane %v614, 5
        %v623 = vrot.slane %v614, 6
        %v624 = vrot.slane %v614, 7
        %v625 = vrot.slane %v615, 1
        %v626 = vrot.slane %v615, 2
        %v627 = vrot.slane %v615, 3
        %v628 = vrot.slane %v615, 4
        %v629 = vrot.slane %v615, 5
        %v630 = vrot.slane %v615, 6
        %v631 = vrot.slane %v615, 7
        %632 = vst [vmem:[#allocation1] ss:$9 sm:$0xff] %v614
        %s633 = scalar_lea.vmem [#allocation1], 1
        %634 = vst [vmem:[%s633] ss:$9 sm:$0xff] %v618
        %s635 = scalar_lea.vmem [#allocation1], 2
        %636 = vst [vmem:[%s635] ss:$9 sm:$0xff] %v619
        %s637 = scalar_lea.vmem [#allocation1], 3
        %638 = vst [vmem:[%s637] ss:$9 sm:$0xff] %v620
        %s639 = scalar_lea.vmem [#allocation1], 4
        %640 = vst [vmem:[%s639] ss:$9 sm:$0xff] %v621
        %s641 = scalar_lea.vmem [#allocation1], 5
        %642 = vst [vmem:[%s641] ss:$9 sm:$0xff] %v622
        %s643 = scalar_lea.vmem [#allocation1], 6
        %644 = vst [vmem:[%s643] ss:$9 sm:$0xff] %v623
        %s645 = scalar_lea.vmem [#allocation1], 7
        %646 = vst [vmem:[%s645] ss:$9 sm:$0xff] %v624
        %v647 = vld [vmem:[#allocation1] sm:$0xff]
        %648 = vst [vmem:[#allocation1] ss:$9 sm:$0xff] %v615
        %649 = vst [vmem:[%s633] ss:$9 sm:$0xff] %v625
        %650 = vst [vmem:[%s635] ss:$9 sm:$0xff] %v626
        %651 = vst [vmem:[%s637] ss:$9 sm:$0xff] %v627
        %652 = vst [vmem:[%s639] ss:$9 sm:$0xff] %v628
        %653 = vst [vmem:[%s641] ss:$9 sm:$0xff] %v629
        %654 = vst [vmem:[%s643] ss:$9 sm:$0xff] %v630
        %655 = vst [vmem:[%s645] ss:$9 sm:$0xff] %v631
        %v656 = vld [vmem:[#allocation1] sm:$0xff]
        %657 = vset.pattern.permute.xlu0 127
        %658 = vperm.xlu0 %657, %v647
        %v659 = vpop.permute.xlu0 %658
        %660 = vset.pattern.permute.xlu0 127
        %661 = vperm.xlu0 %660, %v656
        %v662 = vpop.permute.xlu0 %661
        %v663 = vlaneseq
        %v664 = vand.u32 %v663, 127
        %v665 = vperm.slane %v659, %v664
        %v666 = vadd.s32 %v664, 4294967288
        %v667 = vperm.slane %v662, %v666
        %vm668 = vcmask 130112
        %v669 = vsel %vm668, %v667, %v665
        %v671 = vadd.f32 %v611, %v669
        %vm672 = vcmask 122880
        %673 = vst.msk [vmem:[#allocation2] sm:$0x1] %vm672, %v671
        %675 = vset.pattern.permute.xlu0 127
        %676 = vperm.xlu0 %675, %v589
        %v677 = vpop.permute.xlu0 %676
        %680 = vset.pattern.permute.xlu0 127
        %681 = vperm.xlu0 %680, %v590
        %v682 = vpop.permute.xlu0 %681
        %vm684 = vcmp.ge.f32.partialorder %v589, %v677
        %vm685 = vcmp.ge.f32.partialorder %v590, %v682
        %v686 = vsel %vm684, 1, 0
        %v687 = vsel %vm685, 1, 0
        %v688 = vcvt.s32.f32 %v686
        %v689 = vcvt.s32.f32 %v687
        %v690 = vld [vmem:[#allocation4] sm:$0x1]
        %691 = vadd.xlane.f32.xlu0 %v688
        %v692 = vpop.xlane.xlu0 %691
        %693 = vadd.xlane.f32.xlu0 %v689
        %v694 = vpop.xlane.xlu0 %693
        %vm695 = vcmp.ge.f32.partialorder %v692, 2.0
        %vm696 = vcmp.ge.f32.partialorder %v694, 2.0
        %v697 = vsel %vm695, 1, 0
        %v698 = vsel %vm696, 1, 0
        %v699 = vcvt.s32.f32 %v697
        %v700 = vcvt.s32.f32 %v698
        %v703 = vperm.slane %v699, 0
        %v704 = vperm.slane %v699, 1
        %v705 = vperm.slane %v699, 2
        %v706 = vperm.slane %v699, 3
        %v707 = vperm.slane %v699, 4
        %v708 = vperm.slane %v699, 5
        %v709 = vperm.slane %v699, 6
        %v710 = vperm.slane %v699, 7
        %v711 = vperm.slane %v700, 0
        %v712 = vperm.slane %v700, 1
        %v713 = vperm.slane %v700, 2
        %v714 = vperm.slane %v700, 3
        %v715 = vperm.slane %v700, 4
        %v716 = vperm.slane %v700, 5
        %v717 = vperm.slane %v700, 6
        %v718 = vperm.slane %v700, 7
        %719 = vst [vmem:[#allocation1] ss:$9 sm:$0xff] %v703
        %s720 = scalar_lea.vmem [#allocation1], 1
        %721 = vst [vmem:[%s720] ss:$9 sm:$0xff] %v704
        %s722 = scalar_lea.vmem [#allocation1], 2
        %723 = vst [vmem:[%s722] ss:$9 sm:$0xff] %v705
        %s724 = scalar_lea.vmem [#allocation1], 3
        %725 = vst [vmem:[%s724] ss:$9 sm:$0xff] %v706
        %s726 = scalar_lea.vmem [#allocation1], 4
        %727 = vst [vmem:[%s726] ss:$9 sm:$0xff] %v707
        %s728 = scalar_lea.vmem [#allocation1], 5
        %729 = vst [vmem:[%s728] ss:$9 sm:$0xff] %v708
        %s730 = scalar_lea.vmem [#allocation1], 6
        %731 = vst [vmem:[%s730] ss:$9 sm:$0xff] %v709
        %s732 = scalar_lea.vmem [#allocation1], 7
        %733 = vst [vmem:[%s732] ss:$9 sm:$0xff] %v710
        %v734 = vld [vmem:[#allocation1] sm:$0xff]
        %735 = vst [vmem:[#allocation1] ss:$9 sm:$0xff] %v711
        %736 = vst [vmem:[%s720] ss:$9 sm:$0xff] %v712
        %737 = vst [vmem:[%s722] ss:$9 sm:$0xff] %v713
        %738 = vst [vmem:[%s724] ss:$9 sm:$0xff] %v714
        %739 = vst [vmem:[%s726] ss:$9 sm:$0xff] %v715
        %740 = vst [vmem:[%s728] ss:$9 sm:$0xff] %v716
        %741 = vst [vmem:[%s730] ss:$9 sm:$0xff] %v717
        %742 = vst [vmem:[%s732] ss:$9 sm:$0xff] %v718
        %v743 = vld [vmem:[#allocation1] sm:$0xff]
        %744 = vset.pattern.permute.xlu0 0
        %745 = vperm.xlu0 %744, %v734
        %v746 = vpop.permute.xlu0 %745
        %747 = vset.pattern.permute.xlu0 0
        %748 = vperm.xlu0 %747, %v743
        %v749 = vpop.permute.xlu0 %748
        %v750 = vperm.slane %v746, %v664
        %v751 = vperm.slane %v749, %v666
        %v752 = vsel %vm668, %v751, %v750
        %v754 = vadd.f32 %v690, %v752
        %755 = vst.msk [vmem:[#allocation4] sm:$0x1] %vm672, %v754
        %v756 = vld [vmem:[%s476] sm:$0xff]
        %v757 = vld [vmem:[%s476 + $0x8] sm:$0xff]
        %v758 = vmul.f32 %v756, 14.285714
        %v759 = vmul.f32 %v757, 14.285714
        %v760 = vld [vmem:[%s552] sm:$0xff]
        %v761 = vld [vmem:[%s552 + $0x8] sm:$0xff]
        %v762 = vld [vmem:[%s552 + $0x10] sm:$0xff]
        %v763 = vld [vmem:[%s552 + $0x18] sm:$0xff]
        %vm764 = vcmask 261120
        %v766 = vsel %vm764, %v758, 0
        %v769 = vsel %vm764, %v759, 0
        %771 = vmatpush.msra.mxu0 0.0
        %772 = vmatpush.msra.mxu0 0.0
        %773 = vmatpush.msra.mxu0 0.0
        %774 = vmatpush.msra.mxu0 0.0
        %775 = vmatpush.msra.mxu0 0.0
        %776 = vmatpush.msra.mxu0 0.0
        %777 = vmatpush.msra.mxu0 0.0
        %778 = vmatpush.msra.mxu0 0.0
        %779 = vmatpush.msra.mxu0 0.0
        %780 = vmatpush.msra.mxu0 0.0
        %781 = vmatpush.msra.mxu0 0.0
        %782 = vmatpush.msra.mxu0 0.0
        %783 = vmatpush.msra.mxu0 %v763
        %784 = vmatpush.msra.mxu0 %v762
        %785 = vmatpush.msra.mxu0 %v761
        %786 = vmatpush.msra.mxu0 %v760
        %787 = vmatmul.f32.gmra.mxu0 %v766
        %v788 = vpop.f32.mrf.mxu0
        %v789 = vadd.f32 0.0, %v788
        %790 = vmatmul.f32.gmra.mxu0 %v769
        %v791 = vpop.f32.mrf.mxu0
        %v792 = vadd.f32 0.0, %v791
        %793 = vdwg.mxu0
        %v794 = vld [vmem:[%s561] sm:$0xff]
        %v795 = vld [vmem:[%s561 + $0x8] sm:$0xff]
        %v796 = vld [vmem:[%s571] sm:$0xff]
        %v797 = vld [vmem:[%s571 + $0x8] sm:$0xff]
        %798 = vset.pattern.permute.xlu0 0
        %799 = vperm.xlu0 %798, %v794
        %v800 = vpop.permute.xlu0 %799
        %801 = vset.pattern.permute.xlu0 0
        %802 = vperm.xlu0 %801, %v795
        %v803 = vpop.permute.xlu0 %802
        %vm804 = vcmp.ge.s32.totalorder %v664, %v800
        %vm805 = vcmp.ge.s32.totalorder %v664, %v803
        %806 = vset.pattern.permute.xlu0 0
        %807 = vperm.xlu0 %806, %v796
        %v808 = vpop.permute.xlu0 %807
        %809 = vset.pattern.permute.xlu0 0
        %810 = vperm.xlu0 %809, %v797
        %v811 = vpop.permute.xlu0 %810
        %vm812 = vcmp.lt.s32.totalorder %v664, %v808
        %vm813 = vcmp.lt.s32.totalorder %v664, %v811
        %vm814 = vmand %vm804, %vm812
        %vm815 = vmand %vm805, %vm813
        %v816 = vsel %vm814, 1, 0
        %v817 = vsel %vm815, 1, 0
        %v818 = vcvt.s32.f32 %v816
        %v819 = vcvt.s32.f32 %v817
        %v820 = vsub.f32 0.0, %v789
        %v821 = vsub.f32 0.0, %v792
        %v822 = vmul.f32 %v820, %v818
        %v823 = vmul.f32 %v821, %v819
        %824 = vmax.xlane.f32.xlu0 %v789
        %v825 = vpop.xlane.xlu0 %824
        %826 = vmax.xlane.f32.xlu0 %v792
        %v827 = vpop.xlane.xlu0 %826
        %v828 = vmax.f32 %v825, %v827
        %v829 = vrot.slane %v828, 4
        %v830 = vmax.f32 %v828, %v829
        %v831 = vrot.slane %v830, 2
        %v832 = vmax.f32 %v830, %v831
        %v833 = vrot.slane %v832, 1
        %v834 = vmax.f32 %v832, %v833
        %v835 = vld [vmem:[#allocation5] sm:$0x1]
        %v836 = vmax.f32 %v835, %v834
        %v838 = vperm.slane %v836, 0
        %839 = vset.pattern.permute.xlu0 0
        %840 = vperm.xlu0 %839, %v838
        %v841 = vpop.permute.xlu0 %840
        %v843 = vsub.f32 %v789, %v841
        %v844 = vsub.f32 %v792, %v841
        %v845 = vmul.f32 %v843, 1.442695
        %v846 = vpow.pop %v845
        %v847 = vmul.f32 %v844, 1.442695
        %v848 = vpow.pop %v847
        %849 = vadd.xlane.f32.xlu0 %v846
        %v850 = vpop.xlane.xlu0 %849
        %851 = vadd.xlane.f32.xlu0 %v848
        %v852 = vpop.xlane.xlu0 %851
        %v853 = vlog2.pop %v850
        %v854 = vmul.f32 %v853, 0.6931472
        %v855 = vlog2.pop %v852
        %v856 = vmul.f32 %v855, 0.6931472
        %857 = vset.pattern.permute.xlu0 0
        %858 = vperm.xlu0 %857, %v836
        %v859 = vpop.permute.xlu0 %858
        %v861 = vperm.slane %v859, 0
        %v862 = vadd.f32 %v861, %v854
        %v863 = vadd.f32 %v861, %v856
        %864 = vadd.xlane.f32.xlu0 %v822
        %v865 = vpop.xlane.xlu0 %864
        %866 = vadd.xlane.f32.xlu0 %v823
        %v867 = vpop.xlane.xlu0 %866
        %vm868 = vcmp.lt.s32.totalorder %v796, 128
        %v869 = vsel %vm868, %v796, 128
        %vm870 = vcmp.lt.s32.totalorder %v797, 128
        %v871 = vsel %vm870, %v797, 128
        %vm872 = vcmp.gt.s32.totalorder %v794, 0
        %v873 = vsel %vm872, %v794, 0
        %vm874 = vcmp.gt.s32.totalorder %v795, 0
        %v875 = vsel %vm874, %v795, 0
        %v876 = vsub.s32 %v869, %v873
        %v877 = vsub.s32 %v871, %v875
        %vm878 = vcmp.gt.s32.totalorder %v876, 0
        %v879 = vsel %vm878, %v876, 0
        %vm880 = vcmp.gt.s32.totalorder %v877, 0
        %v881 = vsel %vm880, %v877, 0
        %v882 = vcvt.s32.f32 %v879
        %v883 = vcvt.s32.f32 %v881
        %v884 = vld [vmem:[#allocation3] sm:$0x1]
        %vm885 = vcmp.gt.f32.partialorder %v882, 0.0
        %vm886 = vcmp.gt.f32.partialorder %v883, 0.0
        %v887 = vadd.f32 %v882, 1e-06
        %v888 = vadd.f32 %v883, 1e-06
        %v889 = vrcp.pop %v887
        %v890 = vmul.f32 %v887, %v889
        %v891 = vsub.f32 1.0, %v890
        %v892 = vmul.f32 %v889, %v891
        %v893 = vadd.f32 %v889, %v892
        %vm894 = vweird.f32 %v887
        %vm895 = vweird.f32 %v889
        %vm896 = vmor %vm894, %vm895
        %v897 = vsel %vm896, %v889, %v893
        %v898 = vand.u32 2147483647, %v887
        %vm899 = vcmp.eq.f32.partialorder %v898, 8.507059e+37
        %v900 = vand.u32 %v887, 2147483648
        %v901 = vor.u32 1.1754944e-38, %v900
        %v902 = vsel %vm899, %v901, %v897
        %v903 = vmul.f32 %v865, %v902
        %v904 = vrcp.pop %v888
        %v905 = vmul.f32 %v888, %v904
        %v906 = vsub.f32 1.0, %v905
        %v907 = vmul.f32 %v904, %v906
        %v908 = vadd.f32 %v904, %v907
        %vm909 = vweird.f32 %v888
        %vm910 = vweird.f32 %v904
        %vm911 = vmor %vm909, %vm910
        %v912 = vsel %vm911, %v904, %v908
        %v913 = vand.u32 2147483647, %v888
        %vm914 = vcmp.eq.f32.partialorder %v913, 8.507059e+37
        %v915 = vand.u32 %v888, 2147483648
        %v916 = vor.u32 1.1754944e-38, %v915
        %v917 = vsel %vm914, %v916, %v912
        %v918 = vmul.f32 %v867, %v917
        %v919 = vadd.f32 %v903, %v862
        %v920 = vadd.f32 %v918, %v863
        %v921 = vsel %vm885, %v919, 0.0
        %v922 = vsel %vm886, %v920, 0.0
        %v925 = vrot.slane %v921, 1
        %v926 = vrot.slane %v921, 2
        %v927 = vrot.slane %v921, 3
        %v928 = vrot.slane %v921, 4
        %v929 = vrot.slane %v921, 5
        %v930 = vrot.slane %v921, 6
        %v931 = vrot.slane %v921, 7
        %v932 = vrot.slane %v922, 1
        %v933 = vrot.slane %v922, 2
        %v934 = vrot.slane %v922, 3
        %v935 = vrot.slane %v922, 4
        %v936 = vrot.slane %v922, 5
        %v937 = vrot.slane %v922, 6
        %v938 = vrot.slane %v922, 7
        %939 = vst [vmem:[#allocation1] ss:$9 sm:$0xff] %v921
        %s940 = scalar_lea.vmem [#allocation1], 1
        %941 = vst [vmem:[%s940] ss:$9 sm:$0xff] %v925
        %s942 = scalar_lea.vmem [#allocation1], 2
        %943 = vst [vmem:[%s942] ss:$9 sm:$0xff] %v926
        %s944 = scalar_lea.vmem [#allocation1], 3
        %945 = vst [vmem:[%s944] ss:$9 sm:$0xff] %v927
        %s946 = scalar_lea.vmem [#allocation1], 4
        %947 = vst [vmem:[%s946] ss:$9 sm:$0xff] %v928
        %s948 = scalar_lea.vmem [#allocation1], 5
        %949 = vst [vmem:[%s948] ss:$9 sm:$0xff] %v929
        %s950 = scalar_lea.vmem [#allocation1], 6
        %951 = vst [vmem:[%s950] ss:$9 sm:$0xff] %v930
        %s952 = scalar_lea.vmem [#allocation1], 7
        %953 = vst [vmem:[%s952] ss:$9 sm:$0xff] %v931
        %v954 = vld [vmem:[#allocation1] sm:$0xff]
        %955 = vst [vmem:[#allocation1] ss:$9 sm:$0xff] %v922
        %956 = vst [vmem:[%s940] ss:$9 sm:$0xff] %v932
        %957 = vst [vmem:[%s942] ss:$9 sm:$0xff] %v933
        %958 = vst [vmem:[%s944] ss:$9 sm:$0xff] %v934
        %959 = vst [vmem:[%s946] ss:$9 sm:$0xff] %v935
        %960 = vst [vmem:[%s948] ss:$9 sm:$0xff] %v936
        %961 = vst [vmem:[%s950] ss:$9 sm:$0xff] %v937
        %962 = vst [vmem:[%s952] ss:$9 sm:$0xff] %v938
        %v963 = vld [vmem:[#allocation1] sm:$0xff]
        %964 = vset.pattern.permute.xlu0 0
        %965 = vperm.xlu0 %964, %v954
        %v966 = vpop.permute.xlu0 %965
        %967 = vset.pattern.permute.xlu0 0
        %968 = vperm.xlu0 %967, %v963
        %v969 = vpop.permute.xlu0 %968
        %v970 = vperm.slane %v966, %v664
        %v971 = vperm.slane %v969, %v666
        %v972 = vsel %vm668, %v971, %v970
        %v974 = vadd.f32 %v884, %v972
        %975 = vst.msk [vmem:[#allocation3] sm:$0x1] %vm672, %v974
        %v976 = vld [vmem:[#allocation6] sm:$0x1]
        %v977 = vsub.f32 %v835, %v836
        %v978 = vmul.f32 %v977, 1.442695
        %v979 = vpow.pop %v978
        %981 = vset.pattern.permute.xlu0 0
        %982 = vperm.xlu0 %981, %v979
        %v983 = vpop.permute.xlu0 %982
        %v985 = vperm.slane %v983, 0
        %v986 = vmul.f32 %v976, %v985
        %v987 = vadd.f32 %v846, %v848
        %v988 = vrot.slane %v987, 4
        %v989 = vadd.f32 %v987, %v988
        %v990 = vrot.slane %v989, 2
        %v991 = vadd.f32 %v989, %v990
        %v992 = vrot.slane %v991, 1
        %v993 = vadd.f32 %v991, %v992
        %v994 = vadd.f32 %v986, %v993
        %995 = vst [vmem:[#allocation6] sm:$0x1] %v994
        %vm996 = vcmask 0
        %997 = vst.msk [vmem:[#allocation5] sm:$0x1] %vm996, %v836
        %v998 = vld [vmem:[#allocation7] sm:$0x1]
        %v999 = vadd.f32 %v822, %v823
        %v1000 = vrot.slane %v999, 4
        %v1001 = vadd.f32 %v999, %v1000
        %v1002 = vrot.slane %v1001, 2
        %v1003 = vadd.f32 %v1001, %v1002
        %v1004 = vrot.slane %v1003, 1
        %v1005 = vadd.f32 %v1003, %v1004
        %v1006 = vadd.f32 %v998, %v1005
        %1007 = vst [vmem:[#allocation7] sm:$0x1] %v1006
        %v1008 = vld [vmem:[#allocation8] sm:$0x1]
        %v1009 = vadd.f32 %v818, %v819
        %v1010 = vrot.slane %v1009, 4
        %v1011 = vadd.f32 %v1009, %v1010
        %v1012 = vrot.slane %v1011, 2
        %v1013 = vadd.f32 %v1011, %v1012
        %v1014 = vrot.slane %v1013, 1
        %v1015 = vadd.f32 %v1013, %v1014
        %v1016 = vadd.f32 %v1008, %v1015
        %1017 = vst [vmem:[#allocation8] sm:$0x1] %v1016
        // Predicated region
        $region77: #{tpu_custom_call.1} parent=63 // pred_check
          %p1018 = pneg %p576
        $region78: #{tpu_custom_call.1} parent=63 // pred_check_branch
          %1020 = sbr.rel (%p1018) target = $region80
        $region79: #{tpu_custom_call.1} parent=63 // pred_region
          %p1021 = scmp.eq.s32.totalorder %s35, 0
          %v1022 = vld [vmem:[%s6] sm:$0xff]
          %v1023 = vld [vmem:[%s7] sm:$0xff]
          %v1024 = vld [vmem:[%s8] sm:$0xff]
          %1025 = vmax.xlane.f32.xlu0 %v1022
          %v1026 = vpop.xlane.xlu0 %1025
          %v1027 = vsub.f32 %v1022, %v1026
          %v1028 = vmul.f32 %v1027, 1.442695
          %v1029 = vpow.pop %v1028
          %1030 = vadd.xlane.f32.xlu0 %v1029
          %v1031 = vpop.xlane.xlu0 %1030
          %v1032 = vlog2.pop %v1031
          %v1033 = vmul.f32 %v1032, 0.6931472
          %v1034 = vadd.f32 %v1026, %v1033
          %v1035 = vsub.f32 %v1022, %v1034
          %v1036 = vmul.f32 %v1035, %v1023
          %1037 = vadd.xlane.f32.xlu0 %v1036
          %v1038 = vpop.xlane.xlu0 %1037
          %v1039 = vsub.f32 0.0, %v1038
          %v1040 = vsub.f32 %v1034, %v1022
          %v1041 = vmul.f32 %v1040, 0.1
          %v1042 = vsub.f32 %v1039, %v1041
          %1044 = vrot.lane.b32.xlu0 %v1024, 127
          %v1045 = vpop.permute.xlu0 %1044
          %v1047 = vmul.f32 %v1042, %v1045
          %v1048 = vadd.f32 %v1047, 0.0
          %vm1049 = vcmask 1048568
          %v1050 = vsel %vm1049, %v1048, 0.0
          %v1051 = vrot.slane %v1050, 4
          %v1052 = vadd.f32 %v1050, %v1051
          %v1053 = vrot.slane %v1052, 2
          %v1054 = vadd.f32 %v1052, %v1053
          %v1055 = vrot.slane %v1054, 1
          %v1056 = vadd.f32 %v1054, %v1055
          %v1057 = vld [vmem:[#allocation2] sm:$0x1]
          %v1058 = vsel %vm672, %v1057, 0.0
          %1059 = vadd.xlane.f32.xlu0 %v1058
          %v1060 = vpop.xlane.xlu0 %1059
          %v1061 = vadd.f32 %v1060, 0.0
          %s1062 = scalar_select %p1021, 1, 0
          %v1063 = vstv %s1062
          %vm1064 = vcmp.eq.s32.totalorder %v1063, 1
          %v1065 = vsel %vm1064, %v1056, 0.0
          %v1066 = vadd.f32 %v1061, %v1065
          %v1067 = vld [vmem:[#allocation4] sm:$0x1]
          %v1068 = vsel %vm672, %v1067, 0.0
          %1069 = vadd.xlane.f32.xlu0 %v1068
          %v1070 = vpop.xlane.xlu0 %1069
          %v1071 = vadd.f32 %v1070, 0.0
          %v1072 = vld [vmem:[%s575] sm:$0x1]
          %v1073 = vsub.f32 %v1071, %v1072
          %v1074 = vand.u32 2147483647, %v1073
          %v1075 = vmul.f32 %v1074, 0.5
          %v1076 = vld [vmem:[%s9] sm:$0xff]
          %v1077 = vld [vmem:[%s10] sm:$0xff]
          %v1078 = vsub.f32 %v1076, %v1077
          %v1079 = vand.u32 2147483647, %v1078
          %1080 = vset.pattern.permute.xlu0 0
          %1081 = vperm.xlu0 %1080, %v1024
          %v1082 = vpop.permute.xlu0 %1081
          %v1084 = vmul.f32 %v1079, %v1082
          %vm1085 = vcmask 31744
          %v1086 = vsel %vm1085, %v1084, 0.0
          %1087 = vadd.xlane.f32.xlu0 %v1086
          %v1088 = vpop.xlane.xlu0 %1087
          %v1089 = vrot.slane %v1088, 4
          %v1090 = vadd.f32 %v1088, %v1089
          %v1091 = vrot.slane %v1090, 2
          %v1092 = vadd.f32 %v1090, %v1091
          %v1093 = vrot.slane %v1092, 1
          %v1094 = vadd.f32 %v1092, %v1093
          %v1095 = vmul.f32 %v1076, 0.5
          %1097 = vrot.lane.b32.xlu0 %v1095, 126
          %v1098 = vpop.permute.xlu0 %1097
          %v1100 = vsub.f32 %v1076, %v1098
          %v1101 = vadd.f32 %v1076, %v1098
          %v1102 = vmul.f32 %v1077, 0.5
          %1104 = vrot.lane.b32.xlu0 %v1102, 126
          %v1105 = vpop.permute.xlu0 %1104
          %v1107 = vsub.f32 %v1077, %v1105
          %v1108 = vadd.f32 %v1077, %v1105
          %v1109 = vsub.f32 %v1101, %v1100
          %1111 = vrot.lane.b32.xlu0 %v1109, 127
          %v1112 = vpop.permute.xlu0 %1111
          %v1114 = vmul.f32 %v1109, %v1112
          %v1115 = vsub.f32 %v1108, %v1107
          %1117 = vrot.lane.b32.xlu0 %v1115, 127
          %v1118 = vpop.permute.xlu0 %1117
          %v1120 = vmul.f32 %v1115, %v1118
          %v1121 = vmin.f32 %v1101, %v1108
          %v1122 = vmax.f32 %v1100, %v1107
          %v1123 = vsub.f32 %v1121, %v1122
          %v1124 = vmax.f32 %v1123, 0.0
          %1126 = vrot.lane.b32.xlu0 %v1124, 127
          %v1127 = vpop.permute.xlu0 %1126
          %v1129 = vmul.f32 %v1124, %v1127
          %v1130 = vadd.f32 %v1114, %v1120
          %v1131 = vsub.f32 %v1130, %v1129
          %v1132 = vadd.f32 %v1131, 1e-12
          %v1133 = vrcp.pop %v1132
          %v1134 = vmul.f32 %v1132, %v1133
          %v1135 = vsub.f32 1.0, %v1134
          %v1136 = vmul.f32 %v1133, %v1135
          %v1137 = vadd.f32 %v1133, %v1136
          %vm1138 = vweird.f32 %v1132
          %vm1139 = vweird.f32 %v1133
          %vm1140 = vmor %vm1138, %vm1139
          %v1141 = vsel %vm1140, %v1133, %v1137
          %v1142 = vand.u32 2147483647, %v1132
          %vm1143 = vcmp.eq.f32.partialorder %v1142, 8.507059e+37
          %v1144 = vand.u32 %v1132, 2147483648
          %v1145 = vor.u32 1.1754944e-38, %v1144
          %v1146 = vsel %vm1143, %v1145, %v1141
          %v1147 = vmul.f32 %v1129, %v1146
          %v1148 = vmax.f32 %v1101, %v1108
          %v1149 = vmin.f32 %v1100, %v1107
          %v1150 = vsub.f32 %v1148, %v1149
          %v1151 = vmax.f32 %v1150, 0.0
          %1153 = vrot.lane.b32.xlu0 %v1151, 127
          %v1154 = vpop.permute.xlu0 %1153
          %v1156 = vmul.f32 %v1151, %v1154
          %v1157 = vsub.f32 %v1156, %v1131
          %v1158 = vadd.f32 %v1156, 1e-12
          %v1159 = vrcp.pop %v1158
          %v1160 = vmul.f32 %v1158, %v1159
          %v1161 = vsub.f32 1.0, %v1160
          %v1162 = vmul.f32 %v1159, %v1161
          %v1163 = vadd.f32 %v1159, %v1162
          %vm1164 = vweird.f32 %v1158
          %vm1165 = vweird.f32 %v1159
          %vm1166 = vmor %vm1164, %vm1165
          %v1167 = vsel %vm1166, %v1159, %v1163
          %v1168 = vand.u32 2147483647, %v1158
          %vm1169 = vcmp.eq.f32.partialorder %v1168, 8.507059e+37
          %v1170 = vand.u32 %v1158, 2147483648
          %v1171 = vor.u32 1.1754944e-38, %v1170
          %v1172 = vsel %vm1169, %v1171, %v1167
          %v1173 = vmul.f32 %v1157, %v1172
          %v1174 = vsub.f32 %v1147, %v1173
          %vm1175 = vcmp.gt.f32.partialorder %v1024, 0.0
          %v1176 = vsub.f32 1.0, %v1174
          %v1177 = vsel %vm1175, %v1176, 0.0
          %v1178 = vadd.f32 %v1177, 0.0
          %vm1179 = vcmask 7168
          %v1180 = vsel %vm1179, %v1178, 0.0
          %v1181 = vrot.slane %v1180, 4
          %v1182 = vadd.f32 %v1180, %v1181
          %v1183 = vrot.slane %v1182, 2
          %v1184 = vadd.f32 %v1182, %v1183
          %v1185 = vrot.slane %v1184, 1
          %v1186 = vadd.f32 %v1184, %v1185
          %v1187 = vsel %vm1064, %v1094, 0.0
          %v1188 = vsel %vm1064, %v1186, 0.0
          %v1189 = vld [vmem:[#allocation5] sm:$0x1]
          %v1190 = vld [vmem:[#allocation6] sm:$0x1]
          %v1191 = vlog2.pop %v1190
          %v1192 = vmul.f32 %v1191, 0.6931472
          %1194 = vset.pattern.permute.xlu0 0
          %1195 = vperm.xlu0 %1194, %v1189
          %v1196 = vpop.permute.xlu0 %1195
          %v1198 = vperm.slane %v1196, 0
          %v1199 = vadd.f32 %v1198, %v1192
          %v1200 = vld [vmem:[#allocation8] sm:$0x1]
          %vm1201 = vcmp.gt.f32.partialorder %v1200, 0.0
          %v1202 = vld [vmem:[#allocation7] sm:$0x1]
          %v1203 = vadd.f32 %v1200, 1e-06
          %v1204 = vrcp.pop %v1203
          %v1205 = vmul.f32 %v1203, %v1204
          %v1206 = vsub.f32 1.0, %v1205
          %v1207 = vmul.f32 %v1204, %v1206
          %v1208 = vadd.f32 %v1204, %v1207
          %vm1209 = vweird.f32 %v1203
          %vm1210 = vweird.f32 %v1204
          %vm1211 = vmor %vm1209, %vm1210
          %v1212 = vsel %vm1211, %v1204, %v1208
          %v1213 = vand.u32 2147483647, %v1203
          %vm1214 = vcmp.eq.f32.partialorder %v1213, 8.507059e+37
          %v1215 = vand.u32 %v1203, 2147483648
          %v1216 = vor.u32 1.1754944e-38, %v1215
          %v1217 = vsel %vm1214, %v1216, %v1212
          %v1218 = vmul.f32 %v1202, %v1217
          %v1219 = vadd.f32 %v1218, %v1199
          %v1220 = vsel %vm1201, %v1219, 0.0
          %vm1221 = vcmask 1040384
          %v1222 = vsel %vm1221, %v1220, 0.0
          %1223 = vadd.xlane.f32.xlu0 %v1222
          %v1224 = vpop.xlane.xlu0 %1223
          %v1225 = vadd.f32 %v1224, 0.0
          %v1226 = vld [vmem:[#allocation3] sm:$0x1]
          %v1227 = vsel %vm672, %v1226, 0.0
          %1228 = vadd.xlane.f32.xlu0 %v1227
          %v1229 = vpop.xlane.xlu0 %1228
          %v1230 = vadd.f32 %v1229, 0.0
          %v1231 = vadd.f32 %v1230, %v1225
          %v1232 = vmul.f32 %v1231, 0.5
          %vm1233 = vcmp.eq.s32.totalorder %v664, 0
          %1235 = vset.pattern.permute.xlu0 127
          %1236 = vperm.xlu0 %1235, %v1066
          %v1237 = vpop.permute.xlu0 %1236
          %v1239 = vsel %vm1233, %v1237, 0.0
          %vm1240 = vcmp.eq.s32.totalorder %v664, 1
          %1242 = vset.pattern.permute.xlu0 0
          %1243 = vperm.xlu0 %1242, %v1075
          %v1244 = vpop.permute.xlu0 %1243
          %v1246 = vsel %vm1240, %v1244, 0.0
          %v1247 = vadd.f32 %v1239, %v1246
          %vm1248 = vcmp.eq.s32.totalorder %v664, 2
          %v1249 = vsel %vm1248, %v1187, 0.0
          %v1250 = vadd.f32 %v1247, %v1249
          %vm1251 = vcmp.eq.s32.totalorder %v664, 3
          %1253 = vset.pattern.permute.xlu0 0
          %1254 = vperm.xlu0 %1253, %v1188
          %v1255 = vpop.permute.xlu0 %1254
          %v1257 = vsel %vm1251, %v1255, 0.0
          %v1258 = vadd.f32 %v1250, %v1257
          %vm1259 = vcmp.eq.s32.totalorder %v664, 4
          %v1260 = vsel %vm1259, %v1232, 0.0
          %v1261 = vadd.f32 %v1258, %v1260
          %1262 = vst [vmem:[%s545] sm:$0x1] %v1261
        $region80: #{tpu_custom_call.1} parent=63 // pred_fallthru
          _
        %s1263 = sand.u32 %s320, 1
        %s1264 = scalar_lea.sflag [#allocation11], %s1263
        %s1265 = sand.u32 %s320, 1
        %s1266 = scalar_lea.vmem [#allocation14], %s1265
        // Predicated region
        $region81: #{tpu_custom_call.1} parent=63 // pred_check
          %p1267 = pneg %p330
        $region82: #{tpu_custom_call.1} parent=63 // pred_check_branch
          %1269 = sbr.rel (%p1267) target = $region84
        $region83: #{tpu_custom_call.1} parent=63 // pred_region
          %1271 = vsyncadd %s1264, 0
          %s1272 = scalar_lea.hbm %s11, %s35
          %s1274 = sshll.u32 %s1266, 4
          %s1275 = int_to_ptr.vmem [resolvable:$true] %s1274
          %s1276 = sshll.u32 %s1272, 4
          %s1277 = int_to_ptr.hbm [resolvable:$true] %s1276
          %1279 = dma.vmem_to_hbm [thread:$0]  %s1275, 16, %s1277, %s1264
        $region84: #{tpu_custom_call.1} parent=63 // pred_fallthru
          _
      $region64: #{tpu_custom_call.1} parent=5 // pred_fallthru
        _
      %p1280 = scmp.le.s32.totalorder 2, %s26
      // Predicated region
      $region85: #{tpu_custom_call.1} parent=5 // pred_check
        %p1281 = pneg %p1280
      $region86: #{tpu_custom_call.1} parent=5 // pred_check_branch
        %1283 = sbr.rel (%p1281) target = $region88
      $region87: #{tpu_custom_call.1} parent=5 // pred_region
        %s1284 = ssub.s32 %s26, 2
        // Predicated region
        $region89: #{tpu_custom_call.1} parent=87 // pred_check
          %p1285 = pneg %p336
        $region90: #{tpu_custom_call.1} parent=87 // pred_check_branch
          %1287 = sbr.rel (%p1285) target = $region92
        $region91: #{tpu_custom_call.1} parent=87 // pred_region
          %s1288 = sand.u32 %s321, 1
          %s1289 = scalar_lea.sflag [#allocation11], %s1288
          %s1290 = sand.u32 %s321, 1
          %s1291 = scalar_lea.vmem [#allocation14], %s1290
          %1293 = dma.done %s1289, 16
        $region92: #{tpu_custom_call.1} parent=87 // pred_fallthru
          _
      $region88: #{tpu_custom_call.1} parent=5 // pred_fallthru
        _
    $region6: #{tpu_custom_call.1} parent=1 // loop_footer
      %s30 = sadd.s32 1, %s26
    $region7: #{tpu_custom_call.1} parent=1 // loop_footer_branch
      %25 = sbr.rel target = $region3
    $region8: #{tpu_custom_call.1} parent=1 // loop_exit
      _
    %1294 = vsyncpa [#allocation10], 1
    %s1295 = scalar_lea.sflag [#allocation10], 1
    %1296 = vsyncpa %s1295, 1
    %1297 = vsyncpa [#allocation13], 1
    %s1298 = scalar_lea.sflag [#allocation13], 1
    %1299 = vsyncpa %s1298, 1
    %1300 = vsyncpa [#allocation11], 1
    %s1301 = scalar_lea.sflag [#allocation11], 1
    %1302 = vsyncpa %s1301, 1

// kernel: tpu_custom_call.1
$region0: #{tpu_custom_call.1}
  #allocation0 [shape = 'u32[]', space=smem, size = 0x4, offset = 0x4, fixed_abs, tag = 'smem constant byte address 0x4 - core index']
  #allocation1 [shape = 'u32[72,128]{1,0:T(1,128)}', space=vmem, size = 0x9000, scoped, tag = 'internal scratch']
  #allocation2 [shape = 'f32[1,16]{1,0:T(1,128)}', space=vmem, size = 0x200, scoped, tag = 'scratch operand']
  #allocation3 [shape = 'f32[1,16]{1,0:T(1,128)}', space=vmem, size = 0x200, scoped, tag = 'scratch operand']
  #allocation4 [shape = 'f32[1,16]{1,0:T(1,128)}', space=vmem, size = 0x200, scoped, tag = 'scratch operand']
  #allocation5 [shape = 'f32[1,1]{1,0:T(1,128)}', space=vmem, size = 0x200, scoped, tag = 'scratch operand']
  #allocation6 [shape = 'f32[1,128]{1,0:T(1,128)}', space=vmem, size = 0x200, scoped, tag = 'scratch operand']
  #allocation7 [shape = 'f32[1,128]{1,0:T(1,128)}', space=vmem, size = 0x200, scoped, tag = 'scratch operand']
  #allocation8 [shape = 'f32[1,128]{1,0:T(1,128)}', space=vmem, size = 0x200, scoped, tag = 'scratch operand']
  %s0 = inlined_call_operand.hbm [shape: f32[2,16,128], index: 0, kind: input, shape index: {}]
  %s1 = inlined_call_operand.hbm [shape: f32[2,16,32], index: 1, kind: input, shape index: {}]
  %s2 = inlined_call_operand.vmem [shape: f32[2,32,128], index: 2, kind: input, shape index: {}]
  %s3 = inlined_call_operand.vmem [shape: s32[2,16,1], index: 3, kind: input, shape index: {}]
  %s4 = inlined_call_operand.vmem [shape: s32[2,16,1], index: 4, kind: input, shape index: {}]
  %s5 = inlined_call_operand.vmem [shape: f32[2,1,1], index: 5, kind: input, shape index: {}]
  %s6 = inlined_call_operand.vmem [shape: f32[8,128], index: 6, kind: input, shape index: {}]
  %s7 = inlined_call_operand.vmem [shape: f32[8,128], index: 7, kind: input, shape index: {}]
  %s8 = inlined_call_operand.vmem [shape: f32[8,1], index: 8, kind: input, shape index: {}]
  %s9 = inlined_call_operand.vmem [shape: f32[8,4], index: 9, kind: input, shape index: {}]
  %s10 = inlined_call_operand.vmem [shape: f32[8,4], index: 10, kind: input, shape index: {}]
  %s11 = inlined_call_operand.hbm [shape: f32[2,1,128], index: 11, kind: output, shape index: {}]
  %s12 = sld [smem:[#allocation0]]
  $region93: #{tpu_custom_call.1} parent=0
    _
  %s14 = ssub.s32 1, %s12
  %s15 = scalar_select 0, %s14, %s12
  $region1: #{tpu_custom_call.1} parent=0
    #allocation9 [shape = 'u8[16384]{0}', space=vmem, size = 0x4000, scoped, tag = 'input window, operand 0']
    #allocation10 [shape = 's32[2]{0}', space=sflag, size = 0x8, scoped, tag = 'scoped memory for tpu_custom_call.1']
    #allocation11 [shape = 's32[2]{0}', space=sflag, size = 0x8, scoped, tag = 'scoped memory for tpu_custom_call.1']
    #allocation12 [shape = 'u8[16384]{0}', space=vmem, size = 0x4000, scoped, tag = 'input window, operand 1']
    #allocation13 [shape = 's32[2]{0}', space=sflag, size = 0x8, scoped, tag = 'scoped memory for tpu_custom_call.1']
    #allocation14 [shape = 'u8[1024]{0}', space=vmem, size = 0x400, scoped, tag = 'output window, operand 0']
    %16 = vsyncpa [#allocation10], 0
    %s17 = scalar_lea.sflag [#allocation10], 1
    %18 = vsyncpa %s17, 0
    %19 = vsyncpa [#allocation13], 0
    %s20 = scalar_lea.sflag [#allocation13], 1
    %21 = vsyncpa %s20, 0
    %22 = vsyncpa [#allocation11], 0
    %s23 = scalar_lea.sflag [#allocation11], 1
    %24 = vsyncpa %s23, 0
    loop: start=0, step=1, limit=4
    $region2: #{tpu_custom_call.1} parent=1 // loop_pre_header
      _
    $region3: #{tpu_custom_call.1} parent=1 // loop_header
      %s26 = sphi 0, %s30
      %p27 = scmp.ge.s32.totalorder %s26, 4
      %s33 = sphi 0, %s45
      %s34 = sphi 0, %s41
      %s35 = sphi 0, %s33
      %s36 = sphi 0, %s34
      %s37 = sphi 0, %s35
      %s38 = sphi 0, %s36
      %s50 = sphi 0, %s52
      %s53 = sphi 0, %s50
      %s54 = sphi 0, %s53
      %s70 = sphi 0, %s54
      %s78 = sphi 0, %s80
      %s81 = sphi 0, %s78
      %s82 = sphi 0, %s81
      %s98 = sphi 0, %s82
      %s104 = sphi 0, %s106
      %s107 = sphi 0, %s104
      %s108 = sphi 0, %s107
      %s124 = sphi 0, %s108
      %s132 = sphi 0, %s134
      %s135 = sphi 0, %s132
      %s136 = sphi 0, %s135
      %s152 = sphi 0, %s136
      %s160 = sphi 0, %s162
      %s163 = sphi 0, %s160
      %s164 = sphi 0, %s163
      %s180 = sphi 0, %s164
      %s186 = sphi 0, %s188
      %s189 = sphi 0, %s186
      %s190 = sphi 0, %s189
      %s206 = sphi 0, %s190
      %s210 = sphi 0, %s210
      %s212 = sphi 0, %s210
      %s213 = sphi 0, %s212
      %s227 = sphi 0, %s213
      %s231 = sphi 0, %s231
      %s233 = sphi 0, %s231
      %s234 = sphi 0, %s233
      %s248 = sphi 0, %s234
      %s252 = sphi 0, %s252
      %s254 = sphi 0, %s252
      %s255 = sphi 0, %s254
      %s269 = sphi 0, %s255
      %s273 = sphi 0, %s273
      %s275 = sphi 0, %s273
      %s276 = sphi 0, %s275
      %s290 = sphi 0, %s276
      %s294 = sphi 0, %s294
      %s296 = sphi 0, %s294
      %s297 = sphi 0, %s296
      %s311 = sphi 0, %s297
      %s317 = sphi 0, %s319
      %s320 = sphi 0, %s317
      %s321 = sphi 0, %s320
      %s337 = sphi 0, %s321
    $region4: #{tpu_custom_call.1} parent=1 // loop_header_branch
      %29 = sbr.rel (%p27) target = $region8
    $region5: #{tpu_custom_call.1} parent=1 // loop_body
      %s31 = ssub.s32 %s26, 1
      %s32 = ssub.s32 %s26, 2
      %s39 = sadd.s32 1, %s34
      %p40 = scmp.ge.s32.totalorder %s39, 1
      %s41 = scalar_select %p40, 0, %s39
      %s42 = sadd.s32 1, %s33
      %s43 = scalar_select %p40, %s42, %s33
      %p44 = scmp.ge.s32.totalorder %s43, 2
      %s45 = scalar_select %p44, 0, %s43
      %s46 = ssub.s32 %s33, %s45
      %s47 = ssub.s32 %s34, %s41
      %s48 = sor.u32 %s46, %s47
      %p49 = scmp.eq.s32.totalorder %s48, 0
      %s51 = sadd.s32 %s50, 1
      %s52 = scalar_select %p49, %s50, %s51
      %p55 = pneg %p49
      %p56 = scmp.eq.s32.totalorder %s26, 1
      %p57 = por %p55, %p56
      %p58 = scmp.ne.s32.totalorder %s50, %s53
      %p59 = scmp.eq.s32.totalorder %s26, 0
      %p60 = por %p58, %p59
      %p61 = scmp.ne.s32.totalorder %s50, %s53
      %p62 = scmp.eq.s32.totalorder %s31, 1
      %p63 = por %p61, %p62
      %p64 = scmp.ne.s32.totalorder %s53, %s54
      %p65 = scmp.eq.s32.totalorder %s31, 0
      %p66 = por %p64, %p65
      %p67 = scmp.ne.s32.totalorder %s53, %s54
      %p68 = scmp.eq.s32.totalorder %s32, 1
      %p69 = por %p67, %p68
      %p71 = scmp.ne.s32.totalorder %s54, %s70
      %p72 = scmp.eq.s32.totalorder %s32, 0
      %p73 = por %p71, %p72
      %s74 = ssub.s32 %s33, %s45
      %s75 = ssub.s32 %s34, %s41
      %s76 = sor.u32 %s74, %s75
      %p77 = scmp.eq.s32.totalorder %s76, 0
      %s79 = sadd.s32 %s78, 1
      %s80 = scalar_select %p77, %s78, %s79
      %p83 = pneg %p77
      %p84 = scmp.eq.s32.totalorder %s26, 1
      %p85 = por %p83, %p84
      %p86 = scmp.ne.s32.totalorder %s78, %s81
      %p87 = scmp.eq.s32.totalorder %s26, 0
      %p88 = por %p86, %p87
      %p89 = scmp.ne.s32.totalorder %s78, %s81
      %p90 = scmp.eq.s32.totalorder %s31, 1
      %p91 = por %p89, %p90
      %p92 = scmp.ne.s32.totalorder %s81, %s82
      %p93 = scmp.eq.s32.totalorder %s31, 0
      %p94 = por %p92, %p93
      %p95 = scmp.ne.s32.totalorder %s81, %s82
      %p96 = scmp.eq.s32.totalorder %s32, 1
      %p97 = por %p95, %p96
      %p99 = scmp.ne.s32.totalorder %s82, %s98
      %p100 = scmp.eq.s32.totalorder %s32, 0
      %p101 = por %p99, %p100
      %s102 = ssub.s32 %s33, %s45
      %p103 = scmp.eq.s32.totalorder %s102, 0
      %s105 = sadd.s32 %s104, 1
      %s106 = scalar_select %p103, %s104, %s105
      %p109 = pneg %p103
      %p110 = scmp.eq.s32.totalorder %s26, 1
      %p111 = por %p109, %p110
      %p112 = scmp.ne.s32.totalorder %s104, %s107
      %p113 = scmp.eq.s32.totalorder %s26, 0
      %p114 = por %p112, %p113
      %p115 = scmp.ne.s32.totalorder %s104, %s107
      %p116 = scmp.eq.s32.totalorder %s31, 1
      %p117 = por %p115, %p116
      %p118 = scmp.ne.s32.totalorder %s107, %s108
      %p119 = scmp.eq.s32.totalorder %s31, 0
      %p120 = por %p118, %p119
      %p121 = scmp.ne.s32.totalorder %s107, %s108
      %p122 = scmp.eq.s32.totalorder %s32, 1
      %p123 = por %p121, %p122
      %p125 = scmp.ne.s32.totalorder %s108, %s124
      %p126 = scmp.eq.s32.totalorder %s32, 0
      %p127 = por %p125, %p126
      %s128 = ssub.s32 %s33, %s45
      %s129 = ssub.s32 %s34, %s41
      %s130 = sor.u32 %s128, %s129
      %p131 = scmp.eq.s32.totalorder %s130, 0
      %s133 = sadd.s32 %s132, 1
      %s134 = scalar_select %p131, %s132, %s133
      %p137 = pneg %p131
      %p138 = scmp.eq.s32.totalorder %s26, 1
      %p139 = por %p137, %p138
      %p140 = scmp.ne.s32.totalorder %s132, %s135
      %p141 = scmp.eq.s32.totalorder %s26, 0
      %p142 = por %p140, %p141
      %p143 = scmp.ne.s32.totalorder %s132, %s135
      %p144 = scmp.eq.s32.totalorder %s31, 1
      %p145 = por %p143, %p144
      %p146 = scmp.ne.s32.totalorder %s135, %s136
      %p147 = scmp.eq.s32.totalorder %s31, 0
      %p148 = por %p146, %p147
      %p149 = scmp.ne.s32.totalorder %s135, %s136
      %p150 = scmp.eq.s32.totalorder %s32, 1
      %p151 = por %p149, %p150
      %p153 = scmp.ne.s32.totalorder %s136, %s152
      %p154 = scmp.eq.s32.totalorder %s32, 0
      %p155 = por %p153, %p154
      %s156 = ssub.s32 %s33, %s45
      %s157 = ssub.s32 %s34, %s41
      %s158 = sor.u32 %s156, %s157
      %p159 = scmp.eq.s32.totalorder %s158, 0
      %s161 = sadd.s32 %s160, 1
      %s162 = scalar_select %p159, %s160, %s161
      %p165 = pneg %p159
      %p166 = scmp.eq.s32.totalorder %s26, 1
      %p167 = por %p165, %p166
      %p168 = scmp.ne.s32.totalorder %s160, %s163
      %p169 = scmp.eq.s32.totalorder %s26, 0
      %p170 = por %p168, %p169
      %p171 = scmp.ne.s32.totalorder %s160, %s163
      %p172 = scmp.eq.s32.totalorder %s31, 1
      %p173 = por %p171, %p172
      %p174 = scmp.ne.s32.totalorder %s163, %s164
      %p175 = scmp.eq.s32.totalorder %s31, 0
      %p176 = por %p174, %p175
      %p177 = scmp.ne.s32.totalorder %s163, %s164
      %p178 = scmp.eq.s32.totalorder %s32, 1
      %p179 = por %p177, %p178
      %p181 = scmp.ne.s32.totalorder %s164, %s180
      %p182 = scmp.eq.s32.totalorder %s32, 0
      %p183 = por %p181, %p182
      %s184 = ssub.s32 %s33, %s45
      %p185 = scmp.eq.s32.totalorder %s184, 0
      %s187 = sadd.s32 %s186, 1
      %s188 = scalar_select %p185, %s186, %s187
      %p191 = pneg %p185
      %p192 = scmp.eq.s32.totalorder %s26, 1
      %p193 = por %p191, %p192
      %p194 = scmp.ne.s32.totalorder %s186, %s189
      %p195 = scmp.eq.s32.totalorder %s26, 0
      %p196 = por %p194, %p195
      %p197 = scmp.ne.s32.totalorder %s186, %s189
      %p198 = scmp.eq.s32.totalorder %s31, 1
      %p199 = por %p197, %p198
      %p200 = scmp.ne.s32.totalorder %s189, %s190
      %p201 = scmp.eq.s32.totalorder %s31, 0
      %p202 = por %p200, %p201
      %p203 = scmp.ne.s32.totalorder %s189, %s190
      %p204 = scmp.eq.s32.totalorder %s32, 1
      %p205 = por %p203, %p204
      %p207 = scmp.ne.s32.totalorder %s190, %s206
      %p208 = scmp.eq.s32.totalorder %s32, 0
      %p209 = por %p207, %p208
      %s211 = sadd.s32 %s210, 1
      %p214 = scmp.eq.s32.totalorder %s26, 1
      %p215 = scmp.ne.s32.totalorder %s210, %s212
      %p216 = scmp.eq.s32.totalorder %s26, 0
      %p217 = por %p215, %p216
      %p218 = scmp.ne.s32.totalorder %s210, %s212
      %p219 = scmp.eq.s32.totalorder %s31, 1
      %p220 = por %p218, %p219
      %p221 = scmp.ne.s32.totalorder %s212, %s213
      %p222 = scmp.eq.s32.totalorder %s31, 0
      %p223 = por %p221, %p222
      %p224 = scmp.ne.s32.totalorder %s212, %s213
      %p225 = scmp.eq.s32.totalorder %s32, 1
      %p226 = por %p224, %p225
      %p228 = scmp.ne.s32.totalorder %s213, %s227
      %p229 = scmp.eq.s32.totalorder %s32, 0
      %p230 = por %p228, %p229
      %s232 = sadd.s32 %s231, 1
      %p235 = scmp.eq.s32.totalorder %s26, 1
      %p236 = scmp.ne.s32.totalorder %s231, %s233
      %p237 = scmp.eq.s32.totalorder %s26, 0
      %p238 = por %p236, %p237
      %p239 = scmp.ne.s32.totalorder %s231, %s233
      %p240 = scmp.eq.s32.totalorder %s31, 1
      %p241 = por %p239, %p240
      %p242 = scmp.ne.s32.totalorder %s233, %s234
      %p243 = scmp.eq.s32.totalorder %s31, 0
      %p244 = por %p242, %p243
      %p245 = scmp.ne.s32.totalorder %s233, %s234
      %p246 = scmp.eq.s32.totalorder %s32, 1
      %p247 = por %p245, %p246
      %p249 = scmp.ne.s32.totalorder %s234, %s248
      %p250 = scmp.eq.s32.totalorder %s32, 0
      %p251 = por %p249, %p250
      %s253 = sadd.s32 %s252, 1
      %p256 = scmp.eq.s32.totalorder %s26, 1
      %p257 = scmp.ne.s32.totalorder %s252, %s254
      %p258 = scmp.eq.s32.totalorder %s26, 0
      %p259 = por %p257, %p258
      %p260 = scmp.ne.s32.totalorder %s252, %s254
      %p261 = scmp.eq.s32.totalorder %s31, 1
      %p262 = por %p260, %p261
      %p263 = scmp.ne.s32.totalorder %s254, %s255
      %p264 = scmp.eq.s32.totalorder %s31, 0
      %p265 = por %p263, %p264
      %p266 = scmp.ne.s32.totalorder %s254, %s255
      %p267 = scmp.eq.s32.totalorder %s32, 1
      %p268 = por %p266, %p267
      %p270 = scmp.ne.s32.totalorder %s255, %s269
      %p271 = scmp.eq.s32.totalorder %s32, 0
      %p272 = por %p270, %p271
      %s274 = sadd.s32 %s273, 1
      %p277 = scmp.eq.s32.totalorder %s26, 1
      %p278 = scmp.ne.s32.totalorder %s273, %s275
      %p279 = scmp.eq.s32.totalorder %s26, 0
      %p280 = por %p278, %p279
      %p281 = scmp.ne.s32.totalorder %s273, %s275
      %p282 = scmp.eq.s32.totalorder %s31, 1
      %p283 = por %p281, %p282
      %p284 = scmp.ne.s32.totalorder %s275, %s276
      %p285 = scmp.eq.s32.totalorder %s31, 0
      %p286 = por %p284, %p285
      %p287 = scmp.ne.s32.totalorder %s275, %s276
      %p288 = scmp.eq.s32.totalorder %s32, 1
      %p289 = por %p287, %p288
      %p291 = scmp.ne.s32.totalorder %s276, %s290
      %p292 = scmp.eq.s32.totalorder %s32, 0
      %p293 = por %p291, %p292
      %s295 = sadd.s32 %s294, 1
      %p298 = scmp.eq.s32.totalorder %s26, 1
      %p299 = scmp.ne.s32.totalorder %s294, %s296
      %p300 = scmp.eq.s32.totalorder %s26, 0
      %p301 = por %p299, %p300
      %p302 = scmp.ne.s32.totalorder %s294, %s296
      %p303 = scmp.eq.s32.totalorder %s31, 1
      %p304 = por %p302, %p303
      %p305 = scmp.ne.s32.totalorder %s296, %s297
      %p306 = scmp.eq.s32.totalorder %s31, 0
      %p307 = por %p305, %p306
      %p308 = scmp.ne.s32.totalorder %s296, %s297
      %p309 = scmp.eq.s32.totalorder %s32, 1
      %p310 = por %p308, %p309
      %p312 = scmp.ne.s32.totalorder %s297, %s311
      %p313 = scmp.eq.s32.totalorder %s32, 0
      %p314 = por %p312, %p313
      %s315 = ssub.s32 %s33, %s45
      %p316 = scmp.eq.s32.totalorder %s315, 0
      %s318 = sadd.s32 %s317, 1
      %s319 = scalar_select %p316, %s317, %s318
      %p322 = pneg %p316
      %p323 = scmp.eq.s32.totalorder %s26, 1
      %p324 = por %p322, %p323
      %p325 = scmp.ne.s32.totalorder %s317, %s320
      %p326 = scmp.eq.s32.totalorder %s26, 0
      %p327 = por %p325, %p326
      %p328 = scmp.ne.s32.totalorder %s317, %s320
      %p329 = scmp.eq.s32.totalorder %s31, 1
      %p330 = por %p328, %p329
      %p331 = scmp.ne.s32.totalorder %s320, %s321
      %p332 = scmp.eq.s32.totalorder %s31, 0
      %p333 = por %p331, %p332
      %p334 = scmp.ne.s32.totalorder %s320, %s321
      %p335 = scmp.eq.s32.totalorder %s32, 1
      %p336 = por %p334, %p335
      %p338 = scmp.ne.s32.totalorder %s321, %s337
      %p339 = scmp.eq.s32.totalorder %s32, 0
      %p340 = por %p338, %p339
      %p341 = scmp.le.s32.totalorder 1, %s26
      %p342 = scmp.lt.s32.totalorder %s26, 3
      %p343 = pnand %p341, %p342
      %p344 = pneg %p343
      // Predicated region
      $region9: #{tpu_custom_call.1} parent=5 // pred_check
        _
      $region10: #{tpu_custom_call.1} parent=5 // pred_check_branch
        %346 = sbr.rel (%p343) target = $region12
      $region11: #{tpu_custom_call.1} parent=5 // pred_region
        %s347 = ssub.s32 %s26, 1
        // Predicated region
        $region13: #{tpu_custom_call.1} parent=11 // pred_check
          %p348 = pneg %p223
        $region14: #{tpu_custom_call.1} parent=11 // pred_check_branch
          %350 = sbr.rel (%p348) target = $region16
        $region15: #{tpu_custom_call.1} parent=11 // pred_region
          _
        $region16: #{tpu_custom_call.1} parent=11 // pred_fallthru
          _
        // Predicated region
        $region17: #{tpu_custom_call.1} parent=11 // pred_check
          %p351 = pneg %p244
        $region18: #{tpu_custom_call.1} parent=11 // pred_check_branch
          %353 = sbr.rel (%p351) target = $region20
        $region19: #{tpu_custom_call.1} parent=11 // pred_region
          _
        $region20: #{tpu_custom_call.1} parent=11 // pred_fallthru
          _
        // Predicated region
        $region21: #{tpu_custom_call.1} parent=11 // pred_check
          %p354 = pneg %p265
        $region22: #{tpu_custom_call.1} parent=11 // pred_check_branch
          %356 = sbr.rel (%p354) target = $region24
        $region23: #{tpu_custom_call.1} parent=11 // pred_region
          _
        $region24: #{tpu_custom_call.1} parent=11 // pred_fallthru
          _
        // Predicated region
        $region25: #{tpu_custom_call.1} parent=11 // pred_check
          %p357 = pneg %p286
        $region26: #{tpu_custom_call.1} parent=11 // pred_check_branch
          %359 = sbr.rel (%p357) target = $region28
        $region27: #{tpu_custom_call.1} parent=11 // pred_region
          _
        $region28: #{tpu_custom_call.1} parent=11 // pred_fallthru
          _
        // Predicated region
        $region29: #{tpu_custom_call.1} parent=11 // pred_check
          %p360 = pneg %p307
        $region30: #{tpu_custom_call.1} parent=11 // pred_check_branch
          %362 = sbr.rel (%p360) target = $region32
        $region31: #{tpu_custom_call.1} parent=11 // pred_region
          _
        $region32: #{tpu_custom_call.1} parent=11 // pred_fallthru
          _
      $region12: #{tpu_custom_call.1} parent=5 // pred_fallthru
        _
      %p363 = scmp.lt.s32.totalorder %s26, 2
      // Predicated region
      $region33: #{tpu_custom_call.1} parent=5 // pred_check
        %p364 = pneg %p363
      $region34: #{tpu_custom_call.1} parent=5 // pred_check_branch
        %366 = sbr.rel (%p364) target = $region36
      $region35: #{tpu_custom_call.1} parent=5 // pred_region
        // Predicated region
        $region37: #{tpu_custom_call.1} parent=35 // pred_check
          %p367 = pneg %p60
        $region38: #{tpu_custom_call.1} parent=35 // pred_check_branch
          %369 = sbr.rel (%p367) target = $region40
        $region39: #{tpu_custom_call.1} parent=35 // pred_region
          %s370 = sand.u32 %s50, 1
          %s371 = scalar_lea.sflag [#allocation10], %s370
          %s372 = sand.u32 %s50, 1
          %s373 = smul.addr %s372, 16
          %s374 = scalar_lea.vmem [#allocation9], %s373
          %s375 = smul.u32 2, %s34
          %377 = vsyncadd %s371, 0
          %s378 = smul.addr %s33, 2
          %s379 = sadd.s32 %s375, %s378
          %s380 = smul.addr %s379, 8
          %s381 = scalar_lea.hbm %s0, %s380
          %s382 = sshll.u32 %s381, 4
          %s383 = int_to_ptr.hbm [resolvable:$true] %s382
          %s384 = sshll.u32 %s374, 4
          %s385 = int_to_ptr.vmem [resolvable:$true] %s384
          %390 = dma.hbm_to_vmem [thread:$0]  %s383, 256, %s385, %s371, 128, 128, 8
        $region40: #{tpu_custom_call.1} parent=35 // pred_fallthru
          _
        // Predicated region
        $region41: #{tpu_custom_call.1} parent=35 // pred_check
          %p391 = pneg %p88
        $region42: #{tpu_custom_call.1} parent=35 // pred_check_branch
          %393 = sbr.rel (%p391) target = $region44
        $region43: #{tpu_custom_call.1} parent=35 // pred_region
          %s394 = sand.u32 %s78, 1
          %s395 = scalar_lea.sflag [#allocation13], %s394
          %s396 = sand.u32 %s78, 1
          %s397 = smul.addr %s396, 16
          %s398 = scalar_lea.vmem [#allocation12], %s397
          %s399 = smul.u32 2, %s34
          %401 = vsyncadd %s395, 0
          %s402 = smul.addr %s33, 2
          %s403 = sadd.s32 %s399, %s402
          %s404 = smul.addr %s403, 8
          %s405 = scalar_lea.hbm %s1, %s404
          %s406 = sshll.u32 %s405, 4
          %s407 = int_to_ptr.hbm [resolvable:$true] %s406
          %s408 = sshll.u32 %s398, 4
          %s409 = int_to_ptr.vmem [resolvable:$true] %s408
          %414 = dma.hbm_to_vmem [thread:$0]  %s407, 256, %s409, %s395, 128, 128, 8
        $region44: #{tpu_custom_call.1} parent=35 // pred_fallthru
          _
        // Predicated region
        $region45: #{tpu_custom_call.1} parent=35 // pred_check
          %p415 = pneg %p114
        $region46: #{tpu_custom_call.1} parent=35 // pred_check_branch
          %417 = sbr.rel (%p415) target = $region48
        $region47: #{tpu_custom_call.1} parent=35 // pred_region
          %p418 = scmp.lt.s32.totalorder %s33, 1
          %s419 = scalar_select %p418, %s33, 1
          %s420 = smul.addr %s419, 4
          %s421 = smul.addr %s420, 8
          %s422 = scalar_lea.vmem %s2, %s421
        $region48: #{tpu_custom_call.1} parent=35 // pred_fallthru
          _
        // Predicated region
        $region49: #{tpu_custom_call.1} parent=35 // pred_check
          %p423 = pneg %p142
        $region50: #{tpu_custom_call.1} parent=35 // pred_check_branch
          %425 = sbr.rel (%p423) target = $region52
        $region51: #{tpu_custom_call.1} parent=35 // pred_region
          %s426 = smul.u32 2, %s34
          %p427 = scmp.lt.s32.totalorder %s33, 1
          %s428 = scalar_select %p427, %s33, 1
          %p429 = scmp.lt.s32.totalorder %s426, 1
          %s430 = scalar_select %p429, %s426, 1
          %s431 = smul.addr %s428, 2
          %s432 = sadd.s32 %s430, %s431
          %s433 = smul.addr %s432, 8
          %s434 = scalar_lea.vmem %s3, %s433
          %s435 = smul.u32 2, %s34
        $region52: #{tpu_custom_call.1} parent=35 // pred_fallthru
          _
        // Predicated region
        $region53: #{tpu_custom_call.1} parent=35 // pred_check
          %p436 = pneg %p170
        $region54: #{tpu_custom_call.1} parent=35 // pred_check_branch
          %438 = sbr.rel (%p436) target = $region56
        $region55: #{tpu_custom_call.1} parent=35 // pred_region
          %s439 = smul.u32 2, %s34
          %p440 = scmp.lt.s32.totalorder %s33, 1
          %s441 = scalar_select %p440, %s33, 1
          %p442 = scmp.lt.s32.totalorder %s439, 1
          %s443 = scalar_select %p442, %s439, 1
          %s444 = smul.addr %s441, 2
          %s445 = sadd.s32 %s443, %s444
          %s446 = smul.addr %s445, 8
          %s447 = scalar_lea.vmem %s4, %s446
          %s448 = smul.u32 2, %s34
        $region56: #{tpu_custom_call.1} parent=35 // pred_fallthru
          _
        // Predicated region
        $region57: #{tpu_custom_call.1} parent=35 // pred_check
          %p449 = pneg %p196
        $region58: #{tpu_custom_call.1} parent=35 // pred_check_branch
          %451 = sbr.rel (%p449) target = $region60
        $region59: #{tpu_custom_call.1} parent=35 // pred_region
          %p452 = scmp.lt.s32.totalorder %s33, 1
          %s453 = scalar_select %p452, %s33, 1
          %s454 = scalar_lea.vmem %s5, %s453
        $region60: #{tpu_custom_call.1} parent=35 // pred_fallthru
          _
      $region36: #{tpu_custom_call.1} parent=5 // pred_fallthru
        _
      %p455 = scmp.le.s32.totalorder 1, %s26
      %p456 = scmp.lt.s32.totalorder %s26, 3
      %p457 = pnand %p455, %p456
      %p458 = pneg %p457
      // Predicated region
      $region61: #{tpu_custom_call.1} parent=5 // pred_check
        _
      $region62: #{tpu_custom_call.1} parent=5 // pred_check_branch
        %460 = sbr.rel (%p457) target = $region64
      $region63: #{tpu_custom_call.1} parent=5 // pred_region
        %s461 = ssub.s32 %s26, 1
        %s462 = sand.u32 %s53, 1
        %s463 = scalar_lea.sflag [#allocation10], %s462
        %s464 = sand.u32 %s53, 1
        %s465 = smul.addr %s464, 16
        %s466 = scalar_lea.vmem [#allocation9], %s465
        // Predicated region
        $region65: #{tpu_custom_call.1} parent=63 // pred_check
          %p467 = pneg %p66
        $region66: #{tpu_custom_call.1} parent=63 // pred_check_branch
          %469 = sbr.rel (%p467) target = $region68
        $region67: #{tpu_custom_call.1} parent=63 // pred_region
          %471 = dma.done %s463, 256
        $region68: #{tpu_custom_call.1} parent=63 // pred_fallthru
          _
        %s472 = sand.u32 %s81, 1
        %s473 = scalar_lea.sflag [#allocation13], %s472
        %s474 = sand.u32 %s81, 1
        %s475 = smul.addr %s474, 16
        %s476 = scalar_lea.vmem [#allocation12], %s475
        // Predicated region
        $region69: #{tpu_custom_call.1} parent=63 // pred_check
          %p477 = pneg %p94
        $region70: #{tpu_custom_call.1} parent=63 // pred_check_branch
          %479 = sbr.rel (%p477) target = $region72
        $region71: #{tpu_custom_call.1} parent=63 // pred_region
          %481 = dma.done %s473, 256
        $region72: #{tpu_custom_call.1} parent=63 // pred_fallthru
          _
        %s482 = sand.u32 %s53, 1
        %s483 = scalar_lea.sflag [#allocation10], %s482
        %s484 = sand.u32 %s53, 1
        %s485 = smul.addr %s484, 16
        %s486 = scalar_lea.vmem [#allocation9], %s485
        %p487 = pneg %p66
        %p488 = pneg %p63
        %s489 = sand.u32 %s81, 1
        %s490 = scalar_lea.sflag [#allocation13], %s489
        %s491 = sand.u32 %s81, 1
        %s492 = smul.addr %s491, 16
        %s493 = scalar_lea.vmem [#allocation12], %s492
        %p494 = pneg %p94
        %p495 = pneg %p91
        %p496 = scmp.lt.s32.totalorder %s35, 1
        %s497 = scalar_select %p496, %s35, 1
        %s498 = smul.addr %s497, 4
        %s499 = smul.addr %s498, 8
        %s500 = scalar_lea.vmem %s2, %s499
        %p501 = pneg %p120
        %p502 = pneg %p117
        %s503 = smul.u32 2, %s36
        %p504 = scmp.lt.s32.totalorder %s35, 1
        %s505 = scalar_select %p504, %s35, 1
        %p506 = scmp.lt.s32.totalorder %s503, 1
        %s507 = scalar_select %p506, %s503, 1
        %s508 = smul.addr %s505, 2
        %s509 = sadd.s32 %s507, %s508
        %s510 = smul.addr %s509, 8
        %s511 = scalar_lea.vmem %s3, %s510
        %p512 = pneg %p148
        %p513 = pneg %p145
        %s514 = smul.u32 2, %s36
        %p515 = scmp.lt.s32.totalorder %s35, 1
        %s516 = scalar_select %p515, %s35, 1
        %p517 = scmp.lt.s32.totalorder %s514, 1
        %s518 = scalar_select %p517, %s514, 1
        %s519 = smul.addr %s516, 2
        %s520 = sadd.s32 %s518, %s519
        %s521 = smul.addr %s520, 8
        %s522 = scalar_lea.vmem %s4, %s521
        %p523 = pneg %p176
        %p524 = pneg %p173
        %p525 = scmp.lt.s32.totalorder %s35, 1
        %s526 = scalar_select %p525, %s35, 1
        %s527 = scalar_lea.vmem %s5, %s526
        %p528 = pneg %p202
        %p529 = pneg %p199
        %p530 = pneg %p223
        %p531 = pneg %p220
        %p532 = pneg %p244
        %p533 = pneg %p241
        %p534 = pneg %p265
        %p535 = pneg %p262
        %p536 = pneg %p286
        %p537 = pneg %p283
        %p538 = pneg %p307
        %p539 = pneg %p304
        %p540 = pneg %p333
        %p541 = pneg %p330
        %s542 = sand.u32 %s320, 1
        %s543 = scalar_lea.sflag [#allocation11], %s542
        %s544 = sand.u32 %s320, 1
        %s545 = scalar_lea.vmem [#allocation14], %s544
        %s546 = smul.u32 2, %s36
        %s547 = smul.u32 2, %s36
        %p548 = scmp.lt.s32.totalorder %s35, 1
        %s549 = scalar_select %p548, %s35, 1
        %s550 = smul.addr %s549, 4
        %s551 = smul.addr %s550, 8
        %s552 = scalar_lea.vmem %s2, %s551
        %s553 = smul.u32 2, %s36
        %p554 = scmp.lt.s32.totalorder %s35, 1
        %s555 = scalar_select %p554, %s35, 1
        %p556 = scmp.lt.s32.totalorder %s553, 1
        %s557 = scalar_select %p556, %s553, 1
        %s558 = smul.addr %s555, 2
        %s559 = sadd.s32 %s557, %s558
        %s560 = smul.addr %s559, 8
        %s561 = scalar_lea.vmem %s3, %s560
        %s562 = smul.u32 2, %s36
        %s563 = smul.u32 2, %s36
        %p564 = scmp.lt.s32.totalorder %s35, 1
        %s565 = scalar_select %p564, %s35, 1
        %p566 = scmp.lt.s32.totalorder %s563, 1
        %s567 = scalar_select %p566, %s563, 1
        %s568 = smul.addr %s565, 2
        %s569 = sadd.s32 %s567, %s568
        %s570 = smul.addr %s569, 8
        %s571 = scalar_lea.vmem %s4, %s570
        %s572 = smul.u32 2, %s36
        %p573 = scmp.lt.s32.totalorder %s35, 1
        %s574 = scalar_select %p573, %s35, 1
        %s575 = scalar_lea.vmem %s5, %s574
        %p576 = scmp.eq.s32.totalorder %s36, 0
        // Predicated region
        $region73: #{tpu_custom_call.1} parent=63 // pred_check
          %p577 = pneg %p576
        $region74: #{tpu_custom_call.1} parent=63 // pred_check_branch
          %579 = sbr.rel (%p577) target = $region76
        $region75: #{tpu_custom_call.1} parent=63 // pred_region
          %vm580 = vcmask 122880
          %581 = vst.msk [vmem:[#allocation2] sm:$0x1] %vm580, 0.0
          %582 = vst.msk [vmem:[#allocation3] sm:$0x1] %vm580, 0.0
          %583 = vst.msk [vmem:[#allocation4] sm:$0x1] %vm580, 0.0
          %vm584 = vcmask 0
          %585 = vst.msk [vmem:[#allocation5] sm:$0x1] %vm584, -1e+30
          %586 = vst [vmem:[#allocation6] sm:$0x1] 0.0
          %587 = vst [vmem:[#allocation7] sm:$0x1] 0.0
          %588 = vst [vmem:[#allocation8] sm:$0x1] 0.0
        $region76: #{tpu_custom_call.1} parent=63 // pred_fallthru
          _
        %v589 = vld [vmem:[%s466] sm:$0xff]
        %v590 = vld [vmem:[%s466 + $0x8] sm:$0xff]
        %591 = vmax.xlane.f32.xlu0 %v589
        %v592 = vpop.xlane.xlu0 %591
        %593 = vmax.xlane.f32.xlu0 %v590
        %v594 = vpop.xlane.xlu0 %593
        %v595 = vsub.f32 %v589, %v592
        %v596 = vsub.f32 %v590, %v594
        %v597 = vmul.f32 %v595, 1.442695
        %v598 = vpow.pop %v597
        %v599 = vmul.f32 %v596, 1.442695
        %v600 = vpow.pop %v599
        %601 = vadd.xlane.f32.xlu0 %v598
        %v602 = vpop.xlane.xlu0 %601
        %603 = vadd.xlane.f32.xlu0 %v600
        %v604 = vpop.xlane.xlu0 %603
        %v605 = vlog2.pop %v602
        %v606 = vmul.f32 %v605, 0.6931472
        %v607 = vlog2.pop %v604
        %v608 = vmul.f32 %v607, 0.6931472
        %v609 = vadd.f32 %v592, %v606
        %v610 = vadd.f32 %v594, %v608
        %v611 = vld [vmem:[#allocation2] sm:$0x1]
        %v612 = vsub.f32 %v609, %v589
        %v613 = vsub.f32 %v610, %v590
        %v614 = vmul.f32 %v612, 0.1
        %v615 = vmul.f32 %v613, 0.1
        %v618 = vrot.slane %v614, 1
        %v619 = vrot.slane %v614, 2
        %v620 = vrot.slane %v614, 3
        %v621 = vrot.slane %v614, 4
        %v622 = vrot.slane %v614, 5
        %v623 = vrot.slane %v614, 6
        %v624 = vrot.slane %v614, 7
        %v625 = vrot.slane %v615, 1
        %v626 = vrot.slane %v615, 2
        %v627 = vrot.slane %v615, 3
        %v628 = vrot.slane %v615, 4
        %v629 = vrot.slane %v615, 5
        %v630 = vrot.slane %v615, 6
        %v631 = vrot.slane %v615, 7
        %632 = vst [vmem:[#allocation1] ss:$9 sm:$0xff] %v614
        %s633 = scalar_lea.vmem [#allocation1], 1
        %634 = vst [vmem:[%s633] ss:$9 sm:$0xff] %v618
        %s635 = scalar_lea.vmem [#allocation1], 2
        %636 = vst [vmem:[%s635] ss:$9 sm:$0xff] %v619
        %s637 = scalar_lea.vmem [#allocation1], 3
        %638 = vst [vmem:[%s637] ss:$9 sm:$0xff] %v620
        %s639 = scalar_lea.vmem [#allocation1], 4
        %640 = vst [vmem:[%s639] ss:$9 sm:$0xff] %v621
        %s641 = scalar_lea.vmem [#allocation1], 5
        %642 = vst [vmem:[%s641] ss:$9 sm:$0xff] %v622
        %s643 = scalar_lea.vmem [#allocation1], 6
        %644 = vst [vmem:[%s643] ss:$9 sm:$0xff] %v623
        %s645 = scalar_lea.vmem [#allocation1], 7
        %646 = vst [vmem:[%s645] ss:$9 sm:$0xff] %v624
        %v647 = vld [vmem:[#allocation1] sm:$0xff]
        %648 = vst [vmem:[#allocation1] ss:$9 sm:$0xff] %v615
        %649 = vst [vmem:[%s633] ss:$9 sm:$0xff] %v625
        %650 = vst [vmem:[%s635] ss:$9 sm:$0xff] %v626
        %651 = vst [vmem:[%s637] ss:$9 sm:$0xff] %v627
        %652 = vst [vmem:[%s639] ss:$9 sm:$0xff] %v628
        %653 = vst [vmem:[%s641] ss:$9 sm:$0xff] %v629
        %654 = vst [vmem:[%s643] ss:$9 sm:$0xff] %v630
        %655 = vst [vmem:[%s645] ss:$9 sm:$0xff] %v631
        %v656 = vld [vmem:[#allocation1] sm:$0xff]
        %657 = vset.pattern.permute.xlu0 127
        %658 = vperm.xlu0 %657, %v647
        %v659 = vpop.permute.xlu0 %658
        %660 = vset.pattern.permute.xlu0 127
        %661 = vperm.xlu0 %660, %v656
        %v662 = vpop.permute.xlu0 %661
        %v663 = vlaneseq
        %v664 = vand.u32 %v663, 127
        %v665 = vperm.slane %v659, %v664
        %v666 = vadd.s32 %v664, 4294967288
        %v667 = vperm.slane %v662, %v666
        %vm668 = vcmask 130112
        %v669 = vsel %vm668, %v667, %v665
        %v671 = vadd.f32 %v611, %v669
        %vm672 = vcmask 122880
        %673 = vst.msk [vmem:[#allocation2] sm:$0x1] %vm672, %v671
        %675 = vset.pattern.permute.xlu0 127
        %676 = vperm.xlu0 %675, %v589
        %v677 = vpop.permute.xlu0 %676
        %680 = vset.pattern.permute.xlu0 127
        %681 = vperm.xlu0 %680, %v590
        %v682 = vpop.permute.xlu0 %681
        %vm684 = vcmp.ge.f32.partialorder %v589, %v677
        %vm685 = vcmp.ge.f32.partialorder %v590, %v682
        %v686 = vsel %vm684, 1, 0
        %v687 = vsel %vm685, 1, 0
        %v688 = vcvt.s32.f32 %v686
        %v689 = vcvt.s32.f32 %v687
        %v690 = vld [vmem:[#allocation4] sm:$0x1]
        %691 = vadd.xlane.f32.xlu0 %v688
        %v692 = vpop.xlane.xlu0 %691
        %693 = vadd.xlane.f32.xlu0 %v689
        %v694 = vpop.xlane.xlu0 %693
        %vm695 = vcmp.ge.f32.partialorder %v692, 2.0
        %vm696 = vcmp.ge.f32.partialorder %v694, 2.0
        %v697 = vsel %vm695, 1, 0
        %v698 = vsel %vm696, 1, 0
        %v699 = vcvt.s32.f32 %v697
        %v700 = vcvt.s32.f32 %v698
        %v703 = vperm.slane %v699, 0
        %v704 = vperm.slane %v699, 1
        %v705 = vperm.slane %v699, 2
        %v706 = vperm.slane %v699, 3
        %v707 = vperm.slane %v699, 4
        %v708 = vperm.slane %v699, 5
        %v709 = vperm.slane %v699, 6
        %v710 = vperm.slane %v699, 7
        %v711 = vperm.slane %v700, 0
        %v712 = vperm.slane %v700, 1
        %v713 = vperm.slane %v700, 2
        %v714 = vperm.slane %v700, 3
        %v715 = vperm.slane %v700, 4
        %v716 = vperm.slane %v700, 5
        %v717 = vperm.slane %v700, 6
        %v718 = vperm.slane %v700, 7
        %719 = vst [vmem:[#allocation1] ss:$9 sm:$0xff] %v703
        %s720 = scalar_lea.vmem [#allocation1], 1
        %721 = vst [vmem:[%s720] ss:$9 sm:$0xff] %v704
        %s722 = scalar_lea.vmem [#allocation1], 2
        %723 = vst [vmem:[%s722] ss:$9 sm:$0xff] %v705
        %s724 = scalar_lea.vmem [#allocation1], 3
        %725 = vst [vmem:[%s724] ss:$9 sm:$0xff] %v706
        %s726 = scalar_lea.vmem [#allocation1], 4
        %727 = vst [vmem:[%s726] ss:$9 sm:$0xff] %v707
        %s728 = scalar_lea.vmem [#allocation1], 5
        %729 = vst [vmem:[%s728] ss:$9 sm:$0xff] %v708
        %s730 = scalar_lea.vmem [#allocation1], 6
        %731 = vst [vmem:[%s730] ss:$9 sm:$0xff] %v709
        %s732 = scalar_lea.vmem [#allocation1], 7
        %733 = vst [vmem:[%s732] ss:$9 sm:$0xff] %v710
        %v734 = vld [vmem:[#allocation1] sm:$0xff]
        %735 = vst [vmem:[#allocation1] ss:$9 sm:$0xff] %v711
        %736 = vst [vmem:[%s720] ss:$9 sm:$0xff] %v712
        %737 = vst [vmem:[%s722] ss:$9 sm:$0xff] %v713
        %738 = vst [vmem:[%s724] ss:$9 sm:$0xff] %v714
        %739 = vst [vmem:[%s726] ss:$9 sm:$0xff] %v715
        %740 = vst [vmem:[%s728] ss:$9 sm:$0xff] %v716
        %741 = vst [vmem:[%s730] ss:$9 sm:$0xff] %v717
        %742 = vst [vmem:[%s732] ss:$9 sm:$0xff] %v718
        %v743 = vld [vmem:[#allocation1] sm:$0xff]
        %744 = vset.pattern.permute.xlu0 0
        %745 = vperm.xlu0 %744, %v734
        %v746 = vpop.permute.xlu0 %745
        %747 = vset.pattern.permute.xlu0 0
        %748 = vperm.xlu0 %747, %v743
        %v749 = vpop.permute.xlu0 %748
        %v750 = vperm.slane %v746, %v664
        %v751 = vperm.slane %v749, %v666
        %v752 = vsel %vm668, %v751, %v750
        %v754 = vadd.f32 %v690, %v752
        %755 = vst.msk [vmem:[#allocation4] sm:$0x1] %vm672, %v754
        %v756 = vld [vmem:[%s476] sm:$0xff]
        %v757 = vld [vmem:[%s476 + $0x8] sm:$0xff]
        %v758 = vmul.f32 %v756, 14.285714
        %v759 = vmul.f32 %v757, 14.285714
        %v760 = vld [vmem:[%s552] sm:$0xff]
        %v761 = vld [vmem:[%s552 + $0x8] sm:$0xff]
        %v762 = vld [vmem:[%s552 + $0x10] sm:$0xff]
        %v763 = vld [vmem:[%s552 + $0x18] sm:$0xff]
        %vm764 = vcmask 261120
        %v766 = vsel %vm764, %v758, 0
        %v769 = vsel %vm764, %v759, 0
        %771 = vmatpush.msra.mxu0 0.0
        %772 = vmatpush.msra.mxu0 0.0
        %773 = vmatpush.msra.mxu0 0.0
        %774 = vmatpush.msra.mxu0 0.0
        %775 = vmatpush.msra.mxu0 0.0
        %776 = vmatpush.msra.mxu0 0.0
        %777 = vmatpush.msra.mxu0 0.0
        %778 = vmatpush.msra.mxu0 0.0
        %779 = vmatpush.msra.mxu0 0.0
        %780 = vmatpush.msra.mxu0 0.0
        %781 = vmatpush.msra.mxu0 0.0
        %782 = vmatpush.msra.mxu0 0.0
        %783 = vmatpush.msra.mxu0 %v763
        %784 = vmatpush.msra.mxu0 %v762
        %785 = vmatpush.msra.mxu0 %v761
        %786 = vmatpush.msra.mxu0 %v760
        %787 = vmatmul.f32.gmra.mxu0 %v766
        %v788 = vpop.f32.mrf.mxu0
        %v789 = vadd.f32 0.0, %v788
        %790 = vmatmul.f32.gmra.mxu0 %v769
        %v791 = vpop.f32.mrf.mxu0
        %v792 = vadd.f32 0.0, %v791
        %793 = vdwg.mxu0
        %v794 = vld [vmem:[%s561] sm:$0xff]
        %v795 = vld [vmem:[%s561 + $0x8] sm:$0xff]
        %v796 = vld [vmem:[%s571] sm:$0xff]
        %v797 = vld [vmem:[%s571 + $0x8] sm:$0xff]
        %798 = vset.pattern.permute.xlu0 0
        %799 = vperm.xlu0 %798, %v794
        %v800 = vpop.permute.xlu0 %799
        %801 = vset.pattern.permute.xlu0 0
        %802 = vperm.xlu0 %801, %v795
        %v803 = vpop.permute.xlu0 %802
        %vm804 = vcmp.ge.s32.totalorder %v664, %v800
        %vm805 = vcmp.ge.s32.totalorder %v664, %v803
        %806 = vset.pattern.permute.xlu0 0
        %807 = vperm.xlu0 %806, %v796
        %v808 = vpop.permute.xlu0 %807
        %809 = vset.pattern.permute.xlu0 0
        %810 = vperm.xlu0 %809, %v797
        %v811 = vpop.permute.xlu0 %810
        %vm812 = vcmp.lt.s32.totalorder %v664, %v808
        %vm813 = vcmp.lt.s32.totalorder %v664, %v811
        %vm814 = vmand %vm804, %vm812
        %vm815 = vmand %vm805, %vm813
        %v816 = vsel %vm814, 1, 0
        %v817 = vsel %vm815, 1, 0
        %v818 = vcvt.s32.f32 %v816
        %v819 = vcvt.s32.f32 %v817
        %v820 = vsub.f32 0.0, %v789
        %v821 = vsub.f32 0.0, %v792
        %v822 = vmul.f32 %v820, %v818
        %v823 = vmul.f32 %v821, %v819
        %824 = vmax.xlane.f32.xlu0 %v789
        %v825 = vpop.xlane.xlu0 %824
        %826 = vmax.xlane.f32.xlu0 %v792
        %v827 = vpop.xlane.xlu0 %826
        %v828 = vmax.f32 %v825, %v827
        %v829 = vrot.slane %v828, 4
        %v830 = vmax.f32 %v828, %v829
        %v831 = vrot.slane %v830, 2
        %v832 = vmax.f32 %v830, %v831
        %v833 = vrot.slane %v832, 1
        %v834 = vmax.f32 %v832, %v833
        %v835 = vld [vmem:[#allocation5] sm:$0x1]
        %v836 = vmax.f32 %v835, %v834
        %v838 = vperm.slane %v836, 0
        %839 = vset.pattern.permute.xlu0 0
        %840 = vperm.xlu0 %839, %v838
        %v841 = vpop.permute.xlu0 %840
        %v843 = vsub.f32 %v789, %v841
        %v844 = vsub.f32 %v792, %v841
        %v845 = vmul.f32 %v843, 1.442695
        %v846 = vpow.pop %v845
        %v847 = vmul.f32 %v844, 1.442695
        %v848 = vpow.pop %v847
        %849 = vadd.xlane.f32.xlu0 %v846
        %v850 = vpop.xlane.xlu0 %849
        %851 = vadd.xlane.f32.xlu0 %v848
        %v852 = vpop.xlane.xlu0 %851
        %v853 = vlog2.pop %v850
        %v854 = vmul.f32 %v853, 0.6931472
        %v855 = vlog2.pop %v852
        %v856 = vmul.f32 %v855, 0.6931472
        %857 = vset.pattern.permute.xlu0 0
        %858 = vperm.xlu0 %857, %v836
        %v859 = vpop.permute.xlu0 %858
        %v861 = vperm.slane %v859, 0
        %v862 = vadd.f32 %v861, %v854
        %v863 = vadd.f32 %v861, %v856
        %864 = vadd.xlane.f32.xlu0 %v822
        %v865 = vpop.xlane.xlu0 %864
        %866 = vadd.xlane.f32.xlu0 %v823
        %v867 = vpop.xlane.xlu0 %866
        %vm868 = vcmp.lt.s32.totalorder %v796, 128
        %v869 = vsel %vm868, %v796, 128
        %vm870 = vcmp.lt.s32.totalorder %v797, 128
        %v871 = vsel %vm870, %v797, 128
        %vm872 = vcmp.gt.s32.totalorder %v794, 0
        %v873 = vsel %vm872, %v794, 0
        %vm874 = vcmp.gt.s32.totalorder %v795, 0
        %v875 = vsel %vm874, %v795, 0
        %v876 = vsub.s32 %v869, %v873
        %v877 = vsub.s32 %v871, %v875
        %vm878 = vcmp.gt.s32.totalorder %v876, 0
        %v879 = vsel %vm878, %v876, 0
        %vm880 = vcmp.gt.s32.totalorder %v877, 0
        %v881 = vsel %vm880, %v877, 0
        %v882 = vcvt.s32.f32 %v879
        %v883 = vcvt.s32.f32 %v881
        %v884 = vld [vmem:[#allocation3] sm:$0x1]
        %vm885 = vcmp.gt.f32.partialorder %v882, 0.0
        %vm886 = vcmp.gt.f32.partialorder %v883, 0.0
        %v887 = vadd.f32 %v882, 1e-06
        %v888 = vadd.f32 %v883, 1e-06
        %v889 = vrcp.pop %v887
        %v890 = vmul.f32 %v887, %v889
        %v891 = vsub.f32 1.0, %v890
        %v892 = vmul.f32 %v889, %v891
        %v893 = vadd.f32 %v889, %v892
        %vm894 = vweird.f32 %v887
        %vm895 = vweird.f32 %v889
        %vm896 = vmor %vm894, %vm895
        %v897 = vsel %vm896, %v889, %v893
        %v898 = vand.u32 2147483647, %v887
        %vm899 = vcmp.eq.f32.partialorder %v898, 8.507059e+37
        %v900 = vand.u32 %v887, 2147483648
        %v901 = vor.u32 1.1754944e-38, %v900
        %v902 = vsel %vm899, %v901, %v897
        %v903 = vmul.f32 %v865, %v902
        %v904 = vrcp.pop %v888
        %v905 = vmul.f32 %v888, %v904
        %v906 = vsub.f32 1.0, %v905
        %v907 = vmul.f32 %v904, %v906
        %v908 = vadd.f32 %v904, %v907
        %vm909 = vweird.f32 %v888
        %vm910 = vweird.f32 %v904
        %vm911 = vmor %vm909, %vm910
        %v912 = vsel %vm911, %v904, %v908
        %v913 = vand.u32 2147483647, %v888
        %vm914 = vcmp.eq.f32.partialorder %v913, 8.507059e+37
        %v915 = vand.u32 %v888, 2147483648
        %v916 = vor.u32 1.1754944e-38, %v915
        %v917 = vsel %vm914, %v916, %v912
        %v918 = vmul.f32 %v867, %v917
        %v919 = vadd.f32 %v903, %v862
        %v920 = vadd.f32 %v918, %v863
        %v921 = vsel %vm885, %v919, 0.0
        %v922 = vsel %vm886, %v920, 0.0
        %v925 = vrot.slane %v921, 1
        %v926 = vrot.slane %v921, 2
        %v927 = vrot.slane %v921, 3
        %v928 = vrot.slane %v921, 4
        %v929 = vrot.slane %v921, 5
        %v930 = vrot.slane %v921, 6
        %v931 = vrot.slane %v921, 7
        %v932 = vrot.slane %v922, 1
        %v933 = vrot.slane %v922, 2
        %v934 = vrot.slane %v922, 3
        %v935 = vrot.slane %v922, 4
        %v936 = vrot.slane %v922, 5
        %v937 = vrot.slane %v922, 6
        %v938 = vrot.slane %v922, 7
        %939 = vst [vmem:[#allocation1] ss:$9 sm:$0xff] %v921
        %s940 = scalar_lea.vmem [#allocation1], 1
        %941 = vst [vmem:[%s940] ss:$9 sm:$0xff] %v925
        %s942 = scalar_lea.vmem [#allocation1], 2
        %943 = vst [vmem:[%s942] ss:$9 sm:$0xff] %v926
        %s944 = scalar_lea.vmem [#allocation1], 3
        %945 = vst [vmem:[%s944] ss:$9 sm:$0xff] %v927
        %s946 = scalar_lea.vmem [#allocation1], 4
        %947 = vst [vmem:[%s946] ss:$9 sm:$0xff] %v928
        %s948 = scalar_lea.vmem [#allocation1], 5
        %949 = vst [vmem:[%s948] ss:$9 sm:$0xff] %v929
        %s950 = scalar_lea.vmem [#allocation1], 6
        %951 = vst [vmem:[%s950] ss:$9 sm:$0xff] %v930
        %s952 = scalar_lea.vmem [#allocation1], 7
        %953 = vst [vmem:[%s952] ss:$9 sm:$0xff] %v931
        %v954 = vld [vmem:[#allocation1] sm:$0xff]
        %955 = vst [vmem:[#allocation1] ss:$9 sm:$0xff] %v922
        %956 = vst [vmem:[%s940] ss:$9 sm:$0xff] %v932
        %957 = vst [vmem:[%s942] ss:$9 sm:$0xff] %v933
        %958 = vst [vmem:[%s944] ss:$9 sm:$0xff] %v934
        %959 = vst [vmem:[%s946] ss:$9 sm:$0xff] %v935
        %960 = vst [vmem:[%s948] ss:$9 sm:$0xff] %v936
        %961 = vst [vmem:[%s950] ss:$9 sm:$0xff] %v937
        %962 = vst [vmem:[%s952] ss:$9 sm:$0xff] %v938
        %v963 = vld [vmem:[#allocation1] sm:$0xff]
        %964 = vset.pattern.permute.xlu0 0
        %965 = vperm.xlu0 %964, %v954
        %v966 = vpop.permute.xlu0 %965
        %967 = vset.pattern.permute.xlu0 0
        %968 = vperm.xlu0 %967, %v963
        %v969 = vpop.permute.xlu0 %968
        %v970 = vperm.slane %v966, %v664
        %v971 = vperm.slane %v969, %v666
        %v972 = vsel %vm668, %v971, %v970
        %v974 = vadd.f32 %v884, %v972
        %975 = vst.msk [vmem:[#allocation3] sm:$0x1] %vm672, %v974
        %v976 = vld [vmem:[#allocation6] sm:$0x1]
        %v977 = vsub.f32 %v835, %v836
        %v978 = vmul.f32 %v977, 1.442695
        %v979 = vpow.pop %v978
        %981 = vset.pattern.permute.xlu0 0
        %982 = vperm.xlu0 %981, %v979
        %v983 = vpop.permute.xlu0 %982
        %v985 = vperm.slane %v983, 0
        %v986 = vmul.f32 %v976, %v985
        %v987 = vadd.f32 %v846, %v848
        %v988 = vrot.slane %v987, 4
        %v989 = vadd.f32 %v987, %v988
        %v990 = vrot.slane %v989, 2
        %v991 = vadd.f32 %v989, %v990
        %v992 = vrot.slane %v991, 1
        %v993 = vadd.f32 %v991, %v992
        %v994 = vadd.f32 %v986, %v993
        %995 = vst [vmem:[#allocation6] sm:$0x1] %v994
        %vm996 = vcmask 0
        %997 = vst.msk [vmem:[#allocation5] sm:$0x1] %vm996, %v836
        %v998 = vld [vmem:[#allocation7] sm:$0x1]
        %v999 = vadd.f32 %v822, %v823
        %v1000 = vrot.slane %v999, 4
        %v1001 = vadd.f32 %v999, %v1000
        %v1002 = vrot.slane %v1001, 2
        %v1003 = vadd.f32 %v1001, %v1002
        %v1004 = vrot.slane %v1003, 1
        %v1005 = vadd.f32 %v1003, %v1004
        %v1006 = vadd.f32 %v998, %v1005
        %1007 = vst [vmem:[#allocation7] sm:$0x1] %v1006
        %v1008 = vld [vmem:[#allocation8] sm:$0x1]
        %v1009 = vadd.f32 %v818, %v819
        %v1010 = vrot.slane %v1009, 4
        %v1011 = vadd.f32 %v1009, %v1010
        %v1012 = vrot.slane %v1011, 2
        %v1013 = vadd.f32 %v1011, %v1012
        %v1014 = vrot.slane %v1013, 1
        %v1015 = vadd.f32 %v1013, %v1014
        %v1016 = vadd.f32 %v1008, %v1015
        %1017 = vst [vmem:[#allocation8] sm:$0x1] %v1016
        // Predicated region
        $region77: #{tpu_custom_call.1} parent=63 // pred_check
          %p1018 = pneg %p576
        $region78: #{tpu_custom_call.1} parent=63 // pred_check_branch
          %1020 = sbr.rel (%p1018) target = $region80
        $region79: #{tpu_custom_call.1} parent=63 // pred_region
          %p1021 = scmp.eq.s32.totalorder %s35, 0
          %v1022 = vld [vmem:[%s6] sm:$0xff]
          %v1023 = vld [vmem:[%s7] sm:$0xff]
          %v1024 = vld [vmem:[%s8] sm:$0xff]
          %1025 = vmax.xlane.f32.xlu0 %v1022
          %v1026 = vpop.xlane.xlu0 %1025
          %v1027 = vsub.f32 %v1022, %v1026
          %v1028 = vmul.f32 %v1027, 1.442695
          %v1029 = vpow.pop %v1028
          %1030 = vadd.xlane.f32.xlu0 %v1029
          %v1031 = vpop.xlane.xlu0 %1030
          %v1032 = vlog2.pop %v1031
          %v1033 = vmul.f32 %v1032, 0.6931472
          %v1034 = vadd.f32 %v1026, %v1033
          %v1035 = vsub.f32 %v1022, %v1034
          %v1036 = vmul.f32 %v1035, %v1023
          %1037 = vadd.xlane.f32.xlu0 %v1036
          %v1038 = vpop.xlane.xlu0 %1037
          %v1039 = vsub.f32 0.0, %v1038
          %v1040 = vsub.f32 %v1034, %v1022
          %v1041 = vmul.f32 %v1040, 0.1
          %v1042 = vsub.f32 %v1039, %v1041
          %1044 = vrot.lane.b32.xlu0 %v1024, 127
          %v1045 = vpop.permute.xlu0 %1044
          %v1047 = vmul.f32 %v1042, %v1045
          %v1048 = vadd.f32 %v1047, 0.0
          %vm1049 = vcmask 1048568
          %v1050 = vsel %vm1049, %v1048, 0.0
          %v1051 = vrot.slane %v1050, 4
          %v1052 = vadd.f32 %v1050, %v1051
          %v1053 = vrot.slane %v1052, 2
          %v1054 = vadd.f32 %v1052, %v1053
          %v1055 = vrot.slane %v1054, 1
          %v1056 = vadd.f32 %v1054, %v1055
          %v1057 = vld [vmem:[#allocation2] sm:$0x1]
          %v1058 = vsel %vm672, %v1057, 0.0
          %1059 = vadd.xlane.f32.xlu0 %v1058
          %v1060 = vpop.xlane.xlu0 %1059
          %v1061 = vadd.f32 %v1060, 0.0
          %s1062 = scalar_select %p1021, 1, 0
          %v1063 = vstv %s1062
          %vm1064 = vcmp.eq.s32.totalorder %v1063, 1
          %v1065 = vsel %vm1064, %v1056, 0.0
          %v1066 = vadd.f32 %v1061, %v1065
          %v1067 = vld [vmem:[#allocation4] sm:$0x1]
          %v1068 = vsel %vm672, %v1067, 0.0
          %1069 = vadd.xlane.f32.xlu0 %v1068
          %v1070 = vpop.xlane.xlu0 %1069
          %v1071 = vadd.f32 %v1070, 0.0
          %v1072 = vld [vmem:[%s575] sm:$0x1]
          %v1073 = vsub.f32 %v1071, %v1072
          %v1074 = vand.u32 2147483647, %v1073
          %v1075 = vmul.f32 %v1074, 0.5
          %v1076 = vld [vmem:[%s9] sm:$0xff]
          %v1077 = vld [vmem:[%s10] sm:$0xff]
          %v1078 = vsub.f32 %v1076, %v1077
          %v1079 = vand.u32 2147483647, %v1078
          %1080 = vset.pattern.permute.xlu0 0
          %1081 = vperm.xlu0 %1080, %v1024
          %v1082 = vpop.permute.xlu0 %1081
          %v1084 = vmul.f32 %v1079, %v1082
          %vm1085 = vcmask 31744
          %v1086 = vsel %vm1085, %v1084, 0.0
          %1087 = vadd.xlane.f32.xlu0 %v1086
          %v1088 = vpop.xlane.xlu0 %1087
          %v1089 = vrot.slane %v1088, 4
          %v1090 = vadd.f32 %v1088, %v1089
          %v1091 = vrot.slane %v1090, 2
          %v1092 = vadd.f32 %v1090, %v1091
          %v1093 = vrot.slane %v1092, 1
          %v1094 = vadd.f32 %v1092, %v1093
          %v1095 = vmul.f32 %v1076, 0.5
          %1097 = vrot.lane.b32.xlu0 %v1095, 126
          %v1098 = vpop.permute.xlu0 %1097
          %v1100 = vsub.f32 %v1076, %v1098
          %v1101 = vadd.f32 %v1076, %v1098
          %v1102 = vmul.f32 %v1077, 0.5
          %1104 = vrot.lane.b32.xlu0 %v1102, 126
          %v1105 = vpop.permute.xlu0 %1104
          %v1107 = vsub.f32 %v1077, %v1105
          %v1108 = vadd.f32 %v1077, %v1105
          %v1109 = vsub.f32 %v1101, %v1100
          %1111 = vrot.lane.b32.xlu0 %v1109, 127
          %v1112 = vpop.permute.xlu0 %1111
          %v1114 = vmul.f32 %v1109, %v1112
          %v1115 = vsub.f32 %v1108, %v1107
          %1117 = vrot.lane.b32.xlu0 %v1115, 127
          %v1118 = vpop.permute.xlu0 %1117
          %v1120 = vmul.f32 %v1115, %v1118
          %v1121 = vmin.f32 %v1101, %v1108
          %v1122 = vmax.f32 %v1100, %v1107
          %v1123 = vsub.f32 %v1121, %v1122
          %v1124 = vmax.f32 %v1123, 0.0
          %1126 = vrot.lane.b32.xlu0 %v1124, 127
          %v1127 = vpop.permute.xlu0 %1126
          %v1129 = vmul.f32 %v1124, %v1127
          %v1130 = vadd.f32 %v1114, %v1120
          %v1131 = vsub.f32 %v1130, %v1129
          %v1132 = vadd.f32 %v1131, 1e-12
          %v1133 = vrcp.pop %v1132
          %v1134 = vmul.f32 %v1132, %v1133
          %v1135 = vsub.f32 1.0, %v1134
          %v1136 = vmul.f32 %v1133, %v1135
          %v1137 = vadd.f32 %v1133, %v1136
          %vm1138 = vweird.f32 %v1132
          %vm1139 = vweird.f32 %v1133
          %vm1140 = vmor %vm1138, %vm1139
          %v1141 = vsel %vm1140, %v1133, %v1137
          %v1142 = vand.u32 2147483647, %v1132
          %vm1143 = vcmp.eq.f32.partialorder %v1142, 8.507059e+37
          %v1144 = vand.u32 %v1132, 2147483648
          %v1145 = vor.u32 1.1754944e-38, %v1144
          %v1146 = vsel %vm1143, %v1145, %v1141
          %v1147 = vmul.f32 %v1129, %v1146
          %v1148 = vmax.f32 %v1101, %v1108
          %v1149 = vmin.f32 %v1100, %v1107
          %v1150 = vsub.f32 %v1148, %v1149
          %v1151 = vmax.f32 %v1150, 0.0
          %1153 = vrot.lane.b32.xlu0 %v1151, 127
          %v1154 = vpop.permute.xlu0 %1153
          %v1156 = vmul.f32 %v1151, %v1154
          %v1157 = vsub.f32 %v1156, %v1131
          %v1158 = vadd.f32 %v1156, 1e-12
          %v1159 = vrcp.pop %v1158
          %v1160 = vmul.f32 %v1158, %v1159
          %v1161 = vsub.f32 1.0, %v1160
          %v1162 = vmul.f32 %v1159, %v1161
          %v1163 = vadd.f32 %v1159, %v1162
          %vm1164 = vweird.f32 %v1158
          %vm1165 = vweird.f32 %v1159
          %vm1166 = vmor %vm1164, %vm1165
          %v1167 = vsel %vm1166, %v1159, %v1163
          %v1168 = vand.u32 2147483647, %v1158
          %vm1169 = vcmp.eq.f32.partialorder %v1168, 8.507059e+37
          %v1170 = vand.u32 %v1158, 2147483648
          %v1171 = vor.u32 1.1754944e-38, %v1170
          %v1172 = vsel %vm1169, %v1171, %v1167
          %v1173 = vmul.f32 %v1157, %v1172
          %v1174 = vsub.f32 %v1147, %v1173
          %vm1175 = vcmp.gt.f32.partialorder %v1024, 0.0
          %v1176 = vsub.f32 1.0, %v1174
          %v1177 = vsel %vm1175, %v1176, 0.0
          %v1178 = vadd.f32 %v1177, 0.0
          %vm1179 = vcmask 7168
          %v1180 = vsel %vm1179, %v1178, 0.0
          %v1181 = vrot.slane %v1180, 4
          %v1182 = vadd.f32 %v1180, %v1181
          %v1183 = vrot.slane %v1182, 2
          %v1184 = vadd.f32 %v1182, %v1183
          %v1185 = vrot.slane %v1184, 1
          %v1186 = vadd.f32 %v1184, %v1185
          %v1187 = vsel %vm1064, %v1094, 0.0
          %v1188 = vsel %vm1064, %v1186, 0.0
          %v1189 = vld [vmem:[#allocation5] sm:$0x1]
          %v1190 = vld [vmem:[#allocation6] sm:$0x1]
          %v1191 = vlog2.pop %v1190
          %v1192 = vmul.f32 %v1191, 0.6931472
          %1194 = vset.pattern.permute.xlu0 0
          %1195 = vperm.xlu0 %1194, %v1189
          %v1196 = vpop.permute.xlu0 %1195
          %v1198 = vperm.slane %v1196, 0
          %v1199 = vadd.f32 %v1198, %v1192
          %v1200 = vld [vmem:[#allocation8] sm:$0x1]
          %vm1201 = vcmp.gt.f32.partialorder %v1200, 0.0
          %v1202 = vld [vmem:[#allocation7] sm:$0x1]
          %v1203 = vadd.f32 %v1200, 1e-06
          %v1204 = vrcp.pop %v1203
          %v1205 = vmul.f32 %v1203, %v1204
          %v1206 = vsub.f32 1.0, %v1205
          %v1207 = vmul.f32 %v1204, %v1206
          %v1208 = vadd.f32 %v1204, %v1207
          %vm1209 = vweird.f32 %v1203
          %vm1210 = vweird.f32 %v1204
          %vm1211 = vmor %vm1209, %vm1210
          %v1212 = vsel %vm1211, %v1204, %v1208
          %v1213 = vand.u32 2147483647, %v1203
          %vm1214 = vcmp.eq.f32.partialorder %v1213, 8.507059e+37
          %v1215 = vand.u32 %v1203, 2147483648
          %v1216 = vor.u32 1.1754944e-38, %v1215
          %v1217 = vsel %vm1214, %v1216, %v1212
          %v1218 = vmul.f32 %v1202, %v1217
          %v1219 = vadd.f32 %v1218, %v1199
          %v1220 = vsel %vm1201, %v1219, 0.0
          %vm1221 = vcmask 1040384
          %v1222 = vsel %vm1221, %v1220, 0.0
          %1223 = vadd.xlane.f32.xlu0 %v1222
          %v1224 = vpop.xlane.xlu0 %1223
          %v1225 = vadd.f32 %v1224, 0.0
          %v1226 = vld [vmem:[#allocation3] sm:$0x1]
          %v1227 = vsel %vm672, %v1226, 0.0
          %1228 = vadd.xlane.f32.xlu0 %v1227
          %v1229 = vpop.xlane.xlu0 %1228
          %v1230 = vadd.f32 %v1229, 0.0
          %v1231 = vadd.f32 %v1230, %v1225
          %v1232 = vmul.f32 %v1231, 0.5
          %vm1233 = vcmp.eq.s32.totalorder %v664, 0
          %1235 = vset.pattern.permute.xlu0 127
          %1236 = vperm.xlu0 %1235, %v1066
          %v1237 = vpop.permute.xlu0 %1236
          %v1239 = vsel %vm1233, %v1237, 0.0
          %vm1240 = vcmp.eq.s32.totalorder %v664, 1
          %1242 = vset.pattern.permute.xlu0 0
          %1243 = vperm.xlu0 %1242, %v1075
          %v1244 = vpop.permute.xlu0 %1243
          %v1246 = vsel %vm1240, %v1244, 0.0
          %v1247 = vadd.f32 %v1239, %v1246
          %vm1248 = vcmp.eq.s32.totalorder %v664, 2
          %v1249 = vsel %vm1248, %v1187, 0.0
          %v1250 = vadd.f32 %v1247, %v1249
          %vm1251 = vcmp.eq.s32.totalorder %v664, 3
          %1253 = vset.pattern.permute.xlu0 0
          %1254 = vperm.xlu0 %1253, %v1188
          %v1255 = vpop.permute.xlu0 %1254
          %v1257 = vsel %vm1251, %v1255, 0.0
          %v1258 = vadd.f32 %v1250, %v1257
          %vm1259 = vcmp.eq.s32.totalorder %v664, 4
          %v1260 = vsel %vm1259, %v1232, 0.0
          %v1261 = vadd.f32 %v1258, %v1260
          %1262 = vst [vmem:[%s545] sm:$0x1] %v1261
        $region80: #{tpu_custom_call.1} parent=63 // pred_fallthru
          _
        %s1263 = sand.u32 %s320, 1
        %s1264 = scalar_lea.sflag [#allocation11], %s1263
        %s1265 = sand.u32 %s320, 1
        %s1266 = scalar_lea.vmem [#allocation14], %s1265
        // Predicated region
        $region81: #{tpu_custom_call.1} parent=63 // pred_check
          %p1267 = pneg %p330
        $region82: #{tpu_custom_call.1} parent=63 // pred_check_branch
          %1269 = sbr.rel (%p1267) target = $region84
        $region83: #{tpu_custom_call.1} parent=63 // pred_region
          %1271 = vsyncadd %s1264, 0
          %s1272 = scalar_lea.hbm %s11, %s35
          %s1274 = sshll.u32 %s1266, 4
          %s1275 = int_to_ptr.vmem [resolvable:$true] %s1274
          %s1276 = sshll.u32 %s1272, 4
          %s1277 = int_to_ptr.hbm [resolvable:$true] %s1276
          %1279 = dma.vmem_to_hbm [thread:$0]  %s1275, 16, %s1277, %s1264
        $region84: #{tpu_custom_call.1} parent=63 // pred_fallthru
          _
      $region64: #{tpu_custom_call.1} parent=5 // pred_fallthru
        _
      %p1280 = scmp.le.s32.totalorder 2, %s26
      // Predicated region
      $region85: #{tpu_custom_call.1} parent=5 // pred_check
        %p1281 = pneg %p1280
      $region86: #{tpu_custom_call.1} parent=5 // pred_check_branch
        %1283 = sbr.rel (%p1281) target = $region88
      $region87: #{tpu_custom_call.1} parent=5 // pred_region
        %s1284 = ssub.s32 %s26, 2
        // Predicated region
        $region89: #{tpu_custom_call.1} parent=87 // pred_check
          %p1285 = pneg %p336
        $region90: #{tpu_custom_call.1} parent=87 // pred_check_branch
          %1287 = sbr.rel (%p1285) target = $region92
        $region91: #{tpu_custom_call.1} parent=87 // pred_region
          %s1288 = sand.u32 %s321, 1
          %s1289 = scalar_lea.sflag [#allocation11], %s1288
          %s1290 = sand.u32 %s321, 1
          %s1291 = scalar_lea.vmem [#allocation14], %s1290
          %1293 = dma.done %s1289, 16
        $region92: #{tpu_custom_call.1} parent=87 // pred_fallthru
          _
      $region88: #{tpu_custom_call.1} parent=5 // pred_fallthru
        _
    $region6: #{tpu_custom_call.1} parent=1 // loop_footer
      %s30 = sadd.s32 1, %s26
    $region7: #{tpu_custom_call.1} parent=1 // loop_footer_branch
      %25 = sbr.rel target = $region3
    $region8: #{tpu_custom_call.1} parent=1 // loop_exit
      _
    %1294 = vsyncpa [#allocation10], 1
    %s1295 = scalar_lea.sflag [#allocation10], 1
    %1296 = vsyncpa %s1295, 1
    %1297 = vsyncpa [#allocation13], 1
    %s1298 = scalar_lea.sflag [#allocation13], 1
    %1299 = vsyncpa %s1298, 1
    %1300 = vsyncpa [#allocation11], 1
    %s1301 = scalar_lea.sflag [#allocation11], 1
    %1302 = vsyncpa %s1301, 1

</llo_original>
